<compile_context>
chip_gen: v5e
topology: v5e:2x2
jax: 0.10.0
libtpu: 0.0.40
codegen_flags: <defaults>
</compile_context>

<pallas_src>
import numpy as np
import jax
import jax.numpy as jnp
from jax.experimental import pallas as pl
from jax.experimental.pallas import tpu as pltpu

# ---- architecture constants implied by the module (28x28 input -> 320 feats) ----
CIN, C1, C2 = 1, 10, 20
C1P, C2P = 16, 32            # lane-padded channel counts
K = 5
HIN = WIN = 28
H1 = W1 = HIN - K + 1        # 24
HP1 = WP1 = H1 // 2          # 12
H2 = W2 = HP1 - K + 1        # 8
HP2 = WP2 = H2 // 2          # 4
NFC1_IN = C2 * HP2 * WP2     # 320
NFC1_OUT = 50
NCLS = 10
NPAD = 128                   # lane-padded fc widths

LP1 = W1 * C1P               # 384  conv1-out / pooled-1 lane width
LP2 = W2 * C2P               # 256  conv2-out / pooled-2 lane width
TB = 8                       # batch images per grid step


# --------------------------- parameter initialization ---------------------------
def init_params(key):
    """Deterministic synthetic parameters in PyTorch-native shapes/layouts."""
    ks = jax.random.split(key, 8)

    def u(k, shape, fan_in):
        b = 1.0 / np.sqrt(fan_in)
        return jax.random.uniform(k, shape, jnp.float32, -b, b)

    return {
        "w1": u(ks[0], (C1, CIN, K, K), CIN * K * K),
        "b1": u(ks[1], (C1,), CIN * K * K),
        "w2": u(ks[2], (C2, C1, K, K), C1 * K * K),
        "b2": u(ks[3], (C2,), C1 * K * K),
        "fc1_w": u(ks[4], (NFC1_OUT, NFC1_IN), NFC1_IN),
        "fc1_b": u(ks[5], (NFC1_OUT,), NFC1_IN),
        "fc2_w": u(ks[6], (NCLS, NFC1_OUT), NFC1_OUT),
        "fc2_b": u(ks[7], (NCLS,), NFC1_OUT),
    }


# -------------------- constant (weight-layout) matrices, built once -------------
def _build_t1(w1):
    # conv1 Toeplitz, K taps concatenated along the contraction axis.
    T = np.zeros((K * WIN, W1 * C1P), np.float32)
    for kh in range(K):
        for j in range(W1):
            for kw in range(K):
                T[kh * WIN + j + kw, j * C1P:j * C1P + C1] = w1[:, 0, kh, kw]
    return T


def _build_b1(b1):
    bp = np.zeros((1, W1 * C1P), np.float32)
    for j in range(W1):
        bp[0, j * C1P:j * C1P + C1] = b1
    return bp


def _build_t2(w2):
    # conv2 Toeplitz reading only the EVEN (valid pooled) channel blocks of h1.
    T = np.zeros((K * LP1, W2 * C2P), np.float32)
    for kh in range(K):
        for j in range(W2):
            for kw in range(K):
                for c in range(C1):
                    T[kh * LP1 + 2 * (j + kw) * C1P + c,
                      j * C2P:j * C2P + C2] = w2[:, c, kh, kw]
    return T


def _build_b2(b2):
    bp = np.zeros((1, W2 * C2P), np.float32)
    for j in range(W2):
        bp[0, j * C2P:j * C2P + C2] = b2
    return bp


def _build_fw1(fc1_w):
    # fc1 weights permuted to the kernel's (row i, even col block j, channel o)
    # feature order; PyTorch view(-1,320) order is (o, i, j).
    Fw = np.zeros((HP2 * LP2, NPAD), np.float32)
    for i in range(HP2):
        for j in range(WP2):
            for o in range(C2):
                Fw[i * LP2 + 2 * j * C2P + o, :NFC1_OUT] = \
                    fc1_w[:, o * HP2 * WP2 + i * WP2 + j]
    return Fw


def _build_fb1(fc1_b):
    fb = np.zeros((1, NPAD), np.float32)
    fb[0, :NFC1_OUT] = fc1_b
    return fb


def _build_fw2(fc2_w):
    Fw = np.zeros((NPAD, NPAD), np.float32)
    Fw[:NFC1_OUT, :NCLS] = fc2_w.T
    return Fw


def _build_fb2(fc2_b):
    fb = np.full((1, NPAD), -1e30, np.float32)   # pad classes get ~0 softmax mass
    fb[0, :NCLS] = fc2_b
    return fb


# ------------------------------------ kernel ------------------------------------
def _net_kernel(x_ref, t1_ref, b1_ref, t2_ref, b2_ref,
                fw1_ref, fb1_ref, fw2_ref, fb2_ref, out_ref):
    f32, bf16 = jnp.float32, jnp.bfloat16

    def conv_taps(a, h_out):
        # rows = (image_row, batch): the K row shifts are static sublane slices,
        # concatenated along the contraction axis -> one deep GEMM per conv.
        return jnp.concatenate(
            [a[kh * TB:(kh + h_out) * TB, :] for kh in range(K)], axis=1)

    def pool2x2_relu(a, h_in, cp):
        # Column max: lane-shift by one channel block, elementwise max.  The
        # pooled value lands at even channel blocks; odd blocks hold garbage
        # that downstream weight matrices zero out (lane width stays 128*k).
        shifted = jnp.concatenate([a[:, cp:], a[:, :cp]], axis=1)
        cmax = jnp.maximum(a, shifted)
        # Row max: rows are (image_row, batch), adjacent image rows are TB apart.
        L = cmax.shape[1]
        r3 = cmax.reshape(h_in // 2, 2 * TB, L)
        rmax = jnp.maximum(r3[:, :TB, :], r3[:, TB:, :])
        return jnp.maximum(rmax.reshape((h_in // 2) * TB, L), 0.0)

    x = x_ref[...]                                               # (28*TB, 28) bf16
    a1 = jnp.dot(conv_taps(x, H1), t1_ref[...],
                 preferred_element_type=f32) + b1_ref[...]       # (24*TB, 384)
    h1 = pool2x2_relu(a1, H1, C1P).astype(bf16)                  # (12*TB, 384)
    # nn.Dropout2d -> identity (eval mode)
    a2 = jnp.dot(conv_taps(h1, H2), t2_ref[...],
                 preferred_element_type=f32) + b2_ref[...]       # (8*TB, 256)
    h2 = pool2x2_relu(a2, H2, C2P).astype(bf16)                  # (4*TB, 256)

    # flatten: 4 row-block slices -> (TB, 1024); fw1 encodes PyTorch (o,i,j) order
    feat = jnp.concatenate([h2[i * TB:(i + 1) * TB, :] for i in range(HP2)],
                           axis=1)                               # (TB, 1024)
    z1 = jnp.maximum(jnp.dot(feat, fw1_ref[...],
                             preferred_element_type=f32) + fb1_ref[...], 0.0)
    # F.dropout -> identity (eval mode)
    z2 = jnp.dot(z1.astype(bf16), fw2_ref[...],
                 preferred_element_type=f32) + fb2_ref[...]      # (TB, 128)

    m = jnp.max(z2, axis=-1, keepdims=True)
    s = z2 - m
    lse = jnp.log(jnp.sum(jnp.exp(s), axis=-1, keepdims=True))
    out_ref[...] = s - lse                                       # log_softmax


# ------------------------------------ wrapper -----------------------------------
def make_net(params, batch):
    w1 = np.asarray(params["w1"]); b1 = np.asarray(params["b1"])
    w2 = np.asarray(params["w2"]); b2 = np.asarray(params["b2"])
    fc1_w = np.asarray(params["fc1_w"]); fc1_b = np.asarray(params["fc1_b"])
    fc2_w = np.asarray(params["fc2_w"]); fc2_b = np.asarray(params["fc2_b"])

    const_specs_np = [
        (_build_t1(w1), jnp.bfloat16),   # (140, 384)
        (_build_b1(b1), jnp.float32),    # (1, 384)
        (_build_t2(w2), jnp.bfloat16),   # (1920, 256)
        (_build_b2(b2), jnp.float32),    # (1, 256)
        (_build_fw1(fc1_w), jnp.bfloat16),  # (1024, 128)
        (_build_fb1(fc1_b), jnp.float32),   # (1, 128)
        (_build_fw2(fc2_w), jnp.bfloat16),  # (128, 128)
        (_build_fb2(fc2_b), jnp.float32),   # (1, 128)
    ]
    const_args = [jnp.asarray(c, dtype=dt) for c, dt in const_specs_np]

    G = -(-batch // TB)       # number of batch tiles (grid steps)
    Bp = G * TB               # padded batch

    const_specs = [pl.BlockSpec(c.shape, lambda g: (0, 0)) for c in const_args]

    grid_call = pl.pallas_call(
        _net_kernel,
        out_shape=jax.ShapeDtypeStruct((Bp, NPAD), jnp.float32),
        grid=(G,),
        in_specs=[pl.BlockSpec((HIN * TB, WIN), lambda g: (g, 0))] + const_specs,
        out_specs=pl.BlockSpec((TB, NPAD), lambda g: (g, 0)),
        compiler_params=pltpu.CompilerParams(
            dimension_semantics=("parallel",)),
    )

    def forward(x_nchw):
        x = x_nchw[:, 0, :, :].astype(jnp.float32)               # (B, 28, 28)
        if Bp != batch:
            x = jnp.pad(x, ((0, Bp - batch), (0, 0), (0, 0)))
        # layout plumbing: rows = (image_row, batch_in_tile) per grid step
        x2d = (x.reshape(G, TB, HIN, WIN)
                 .transpose(0, 2, 1, 3)
                 .reshape(G * HIN * TB, WIN)
                 .astype(jnp.bfloat16))
        out = grid_call(x2d, *const_args)
        return out[:batch, :NCLS]

    return jax.jit(forward)


# --------------------------- pure-JAX reference (check) --------------------------
def reference_forward(x, p):
    hi = jax.lax.Precision.HIGHEST
    c1 = jax.lax.conv_general_dilated(
        x, p["w1"], (1, 1), "VALID",
        dimension_numbers=("NCHW", "OIHW", "NCHW"), precision=hi)
    c1 = c1 + p["b1"][None, :, None, None]
    p1 = jax.lax.reduce_window(c1, -jnp.inf, jax.lax.max,
                               (1, 1, 2, 2), (1, 1, 2, 2), "VALID")
    h1 = jax.nn.relu(p1)
    c2 = jax.lax.conv_general_dilated(
        h1, p["w2"], (1, 1), "VALID",
        dimension_numbers=("NCHW", "OIHW", "NCHW"), precision=hi)
    c2 = c2 + p["b2"][None, :, None, None]
    p2 = jax.lax.reduce_window(c2, -jnp.inf, jax.lax.max,
                               (1, 1, 2, 2), (1, 1, 2, 2), "VALID")
    h2 = jax.nn.relu(p2)
    feat = h2.reshape(x.shape[0], -1)                    # PyTorch view(-1, 320)
    z1 = jax.nn.relu(jnp.dot(feat, p["fc1_w"].T, precision=hi) + p["fc1_b"])
    z2 = jnp.dot(z1, p["fc2_w"].T, precision=hi) + p["fc2_b"]
    return jax.nn.log_softmax(z2, axis=-1)


if __name__ == "__main__":
    key = jax.random.PRNGKey(0)
    pkey, xkey = jax.random.split(key)
    params = init_params(pkey)

    batch = 2
    x = jax.random.normal(xkey, (batch, CIN, HIN, WIN), jnp.float32)

    net = make_net(params, batch)
    out = jax.block_until_ready(net(x))

    ref = jax.block_until_ready(reference_forward(x, params))
    assert out.shape == (batch, NCLS), out.shape
    err = float(jnp.max(jnp.abs(out - ref)))
    # bf16 operands with f32 accumulation: allow a slightly looser tolerance.
    assert err < 5e-2, f"mismatch vs reference: max abs err {err}"
    print("KERNEL_OK")
</pallas_src>

<mosaic_0001>
module attributes {stable_mosaic.version = 11 : i64} {
  func.func @_net_kernel(%arg0: i32, %arg1: memref<224x28xbf16, #tpu.memory_space<vmem>>, %arg2: memref<140x384xbf16, #tpu.memory_space<vmem>>, %arg3: memref<1x384xf32, #tpu.memory_space<vmem>>, %arg4: memref<1920x256xbf16, #tpu.memory_space<vmem>>, %arg5: memref<1x256xf32, #tpu.memory_space<vmem>>, %arg6: memref<1024x128xbf16, #tpu.memory_space<vmem>>, %arg7: memref<1x128xf32, #tpu.memory_space<vmem>>, %arg8: memref<128x128xbf16, #tpu.memory_space<vmem>>, %arg9: memref<1x128xf32, #tpu.memory_space<vmem>>, %arg10: memref<8x128xf32, #tpu.memory_space<vmem>>) attributes {dimension_semantics = [#tpu.dimension_semantics<parallel>], iteration_bounds = array<i64: 1>, scalar_prefetch = 0 : i64, scratch_operands = 0 : i64, tpu.core_type = #tpu.core_type<tc>, window_params = [{transform_indices = @transform_0, window_bounds = array<i64: 224, 28>}, {pipeline_mode = #tpu.pipeline_mode<synchronous>, transform_indices = @transform_1, window_bounds = array<i64: 140, 384>}, {pipeline_mode = #tpu.pipeline_mode<synchronous>, transform_indices = @transform_2, window_bounds = array<i64: 1, 384>}, {pipeline_mode = #tpu.pipeline_mode<synchronous>, transform_indices = @transform_3, window_bounds = array<i64: 1920, 256>}, {pipeline_mode = #tpu.pipeline_mode<synchronous>, transform_indices = @transform_4, window_bounds = array<i64: 1, 256>}, {pipeline_mode = #tpu.pipeline_mode<synchronous>, transform_indices = @transform_5, window_bounds = array<i64: 1024, 128>}, {pipeline_mode = #tpu.pipeline_mode<synchronous>, transform_indices = @transform_6, window_bounds = array<i64: 1, 128>}, {pipeline_mode = #tpu.pipeline_mode<synchronous>, transform_indices = @transform_7, window_bounds = array<i64: 128, 128>}, {pipeline_mode = #tpu.pipeline_mode<synchronous>, transform_indices = @transform_8, window_bounds = array<i64: 1, 128>}, {transform_indices = @transform_9, window_bounds = array<i64: 8, 128>}]} {
    %c0 = arith.constant 0 : index
    %c0_0 = arith.constant 0 : index
    %0 = vector.load %arg1[%c0, %c0_0] : memref<224x28xbf16, #tpu.memory_space<vmem>>, vector<224x28xbf16>
    %1 = vector.extract_strided_slice %0 {offsets = [0, 0], sizes = [192, 28], strides = [1, 1]} : vector<224x28xbf16> to vector<192x28xbf16>
    %2 = vector.extract_strided_slice %0 {offsets = [8, 0], sizes = [192, 28], strides = [1, 1]} : vector<224x28xbf16> to vector<192x28xbf16>
    %3 = vector.extract_strided_slice %0 {offsets = [16, 0], sizes = [192, 28], strides = [1, 1]} : vector<224x28xbf16> to vector<192x28xbf16>
    %4 = vector.extract_strided_slice %0 {offsets = [24, 0], sizes = [192, 28], strides = [1, 1]} : vector<224x28xbf16> to vector<192x28xbf16>
    %5 = vector.extract_strided_slice %0 {offsets = [32, 0], sizes = [192, 28], strides = [1, 1]} : vector<224x28xbf16> to vector<192x28xbf16>
    %6 = tpu.concatenate %1, %2, %3, %4, %5 in 1 : vector<192x28xbf16>, vector<192x28xbf16>, vector<192x28xbf16>, vector<192x28xbf16>, vector<192x28xbf16> -> vector<192x140xbf16>
    %c0_1 = arith.constant 0 : index
    %c0_2 = arith.constant 0 : index
    %7 = vector.load %arg2[%c0_1, %c0_2] : memref<140x384xbf16, #tpu.memory_space<vmem>>, vector<140x384xbf16>
    %cst = arith.constant dense<0.000000e+00> : vector<192x384xf32>
    %8 = tpu.matmul %6, %7, %cst {dimension_numbers = #tpu.dot_dimension_numbers<[1], [0], [0], [1], [0, 0, 1, 1], [], []>} : vector<192x140xbf16>, vector<140x384xbf16>, vector<192x384xf32> -> vector<192x384xf32>
    %c0_3 = arith.constant 0 : index
    %c0_4 = arith.constant 0 : index
    %9 = vector.load %arg3[%c0_3, %c0_4] : memref<1x384xf32, #tpu.memory_space<vmem>>, vector<1x384xf32>
    %10 = vector.broadcast %9 : vector<1x384xf32> to vector<192x384xf32>
    %11 = arith.addf %8, %10 : vector<192x384xf32>
    %12 = vector.extract_strided_slice %11 {offsets = [0, 16], sizes = [192, 368], strides = [1, 1]} : vector<192x384xf32> to vector<192x368xf32>
    %13 = vector.extract_strided_slice %11 {offsets = [0, 0], sizes = [192, 16], strides = [1, 1]} : vector<192x384xf32> to vector<192x16xf32>
    %14 = tpu.concatenate %12, %13 in 1 : vector<192x368xf32>, vector<192x16xf32> -> vector<192x384xf32>
    %15 = arith.maximumf %11, %14 : vector<192x384xf32>
    %16 = vector.shape_cast %15 : vector<192x384xf32> to vector<12x16x384xf32>
    %17 = vector.extract_strided_slice %16 {offsets = [0, 0, 0], sizes = [12, 8, 384], strides = [1, 1, 1]} : vector<12x16x384xf32> to vector<12x8x384xf32>
    %18 = vector.extract_strided_slice %16 {offsets = [0, 8, 0], sizes = [12, 8, 384], strides = [1, 1, 1]} : vector<12x16x384xf32> to vector<12x8x384xf32>
    %19 = arith.maximumf %17, %18 : vector<12x8x384xf32>
    %20 = vector.shape_cast %19 : vector<12x8x384xf32> to vector<96x384xf32>
    %cst_5 = arith.constant 0.000000e+00 : f32
    %21 = vector.broadcast %cst_5 : f32 to vector<96x384xf32>
    %22 = arith.maximumf %20, %21 : vector<96x384xf32>
    %23 = arith.truncf %22 : vector<96x384xf32> to vector<96x384xbf16>
    %24 = vector.extract_strided_slice %23 {offsets = [0, 0], sizes = [64, 384], strides = [1, 1]} : vector<96x384xbf16> to vector<64x384xbf16>
    %25 = vector.extract_strided_slice %23 {offsets = [8, 0], sizes = [64, 384], strides = [1, 1]} : vector<96x384xbf16> to vector<64x384xbf16>
    %26 = vector.extract_strided_slice %23 {offsets = [16, 0], sizes = [64, 384], strides = [1, 1]} : vector<96x384xbf16> to vector<64x384xbf16>
    %27 = vector.extract_strided_slice %23 {offsets = [24, 0], sizes = [64, 384], strides = [1, 1]} : vector<96x384xbf16> to vector<64x384xbf16>
    %28 = vector.extract_strided_slice %23 {offsets = [32, 0], sizes = [64, 384], strides = [1, 1]} : vector<96x384xbf16> to vector<64x384xbf16>
    %29 = tpu.concatenate %24, %25, %26, %27, %28 in 1 : vector<64x384xbf16>, vector<64x384xbf16>, vector<64x384xbf16>, vector<64x384xbf16>, vector<64x384xbf16> -> vector<64x1920xbf16>
    %c0_6 = arith.constant 0 : index
    %c0_7 = arith.constant 0 : index
    %30 = vector.load %arg4[%c0_6, %c0_7] : memref<1920x256xbf16, #tpu.memory_space<vmem>>, vector<1920x256xbf16>
    %cst_8 = arith.constant dense<0.000000e+00> : vector<64x256xf32>
    %31 = tpu.matmul %29, %30, %cst_8 {dimension_numbers = #tpu.dot_dimension_numbers<[1], [0], [0], [1], [0, 0, 1, 1], [], []>} : vector<64x1920xbf16>, vector<1920x256xbf16>, vector<64x256xf32> -> vector<64x256xf32>
    %c0_9 = arith.constant 0 : index
    %c0_10 = arith.constant 0 : index
    %32 = vector.load %arg5[%c0_9, %c0_10] : memref<1x256xf32, #tpu.memory_space<vmem>>, vector<1x256xf32>
    %33 = vector.broadcast %32 : vector<1x256xf32> to vector<64x256xf32>
    %34 = arith.addf %31, %33 : vector<64x256xf32>
    %35 = vector.extract_strided_slice %34 {offsets = [0, 32], sizes = [64, 224], strides = [1, 1]} : vector<64x256xf32> to vector<64x224xf32>
    %36 = vector.extract_strided_slice %34 {offsets = [0, 0], sizes = [64, 32], strides = [1, 1]} : vector<64x256xf32> to vector<64x32xf32>
    %37 = tpu.concatenate %35, %36 in 1 : vector<64x224xf32>, vector<64x32xf32> -> vector<64x256xf32>
    %38 = arith.maximumf %34, %37 : vector<64x256xf32>
    %39 = vector.shape_cast %38 : vector<64x256xf32> to vector<4x16x256xf32>
    %40 = vector.extract_strided_slice %39 {offsets = [0, 0, 0], sizes = [4, 8, 256], strides = [1, 1, 1]} : vector<4x16x256xf32> to vector<4x8x256xf32>
    %41 = vector.extract_strided_slice %39 {offsets = [0, 8, 0], sizes = [4, 8, 256], strides = [1, 1, 1]} : vector<4x16x256xf32> to vector<4x8x256xf32>
    %42 = arith.maximumf %40, %41 : vector<4x8x256xf32>
    %43 = vector.shape_cast %42 : vector<4x8x256xf32> to vector<32x256xf32>
    %cst_11 = arith.constant 0.000000e+00 : f32
    %44 = vector.broadcast %cst_11 : f32 to vector<32x256xf32>
    %45 = arith.maximumf %43, %44 : vector<32x256xf32>
    %46 = arith.truncf %45 : vector<32x256xf32> to vector<32x256xbf16>
    %47 = vector.extract_strided_slice %46 {offsets = [0, 0], sizes = [8, 256], strides = [1, 1]} : vector<32x256xbf16> to vector<8x256xbf16>
    %48 = vector.extract_strided_slice %46 {offsets = [8, 0], sizes = [8, 256], strides = [1, 1]} : vector<32x256xbf16> to vector<8x256xbf16>
    %49 = vector.extract_strided_slice %46 {offsets = [16, 0], sizes = [8, 256], strides = [1, 1]} : vector<32x256xbf16> to vector<8x256xbf16>
    %50 = vector.extract_strided_slice %46 {offsets = [24, 0], sizes = [8, 256], strides = [1, 1]} : vector<32x256xbf16> to vector<8x256xbf16>
    %51 = tpu.concatenate %47, %48, %49, %50 in 1 : vector<8x256xbf16>, vector<8x256xbf16>, vector<8x256xbf16>, vector<8x256xbf16> -> vector<8x1024xbf16>
    %c0_12 = arith.constant 0 : index
    %c0_13 = arith.constant 0 : index
    %52 = vector.load %arg6[%c0_12, %c0_13] : memref<1024x128xbf16, #tpu.memory_space<vmem>>, vector<1024x128xbf16>
    %cst_14 = arith.constant dense<0.000000e+00> : vector<8x128xf32>
    %53 = tpu.matmul %51, %52, %cst_14 {dimension_numbers = #tpu.dot_dimension_numbers<[1], [0], [0], [1], [0, 0, 1, 1], [], []>} : vector<8x1024xbf16>, vector<1024x128xbf16>, vector<8x128xf32> -> vector<8x128xf32>
    %c0_15 = arith.constant 0 : index
    %c0_16 = arith.constant 0 : index
    %54 = vector.load %arg7[%c0_15, %c0_16] : memref<1x128xf32, #tpu.memory_space<vmem>>, vector<1x128xf32>
    %55 = vector.broadcast %54 : vector<1x128xf32> to vector<8x128xf32>
    %56 = arith.addf %53, %55 : vector<8x128xf32>
    %cst_17 = arith.constant 0.000000e+00 : f32
    %57 = vector.broadcast %cst_17 : f32 to vector<8x128xf32>
    %58 = arith.maximumf %56, %57 : vector<8x128xf32>
    %59 = arith.truncf %58 : vector<8x128xf32> to vector<8x128xbf16>
    %c0_18 = arith.constant 0 : index
    %c0_19 = arith.constant 0 : index
    %60 = vector.load %arg8[%c0_18, %c0_19] : memref<128x128xbf16, #tpu.memory_space<vmem>>, vector<128x128xbf16>
    %cst_20 = arith.constant dense<0.000000e+00> : vector<8x128xf32>
    %61 = tpu.matmul %59, %60, %cst_20 {dimension_numbers = #tpu.dot_dimension_numbers<[1], [0], [0], [1], [0, 0, 1, 1], [], []>} : vector<8x128xbf16>, vector<128x128xbf16>, vector<8x128xf32> -> vector<8x128xf32>
    %c0_21 = arith.constant 0 : index
    %c0_22 = arith.constant 0 : index
    %62 = vector.load %arg9[%c0_21, %c0_22] : memref<1x128xf32, #tpu.memory_space<vmem>>, vector<1x128xf32>
    %63 = vector.broadcast %62 : vector<1x128xf32> to vector<8x128xf32>
    %64 = arith.addf %61, %63 : vector<8x128xf32>
    %cst_23 = arith.constant dense<0xFF800000> : vector<8xf32>
    %65 = vector.multi_reduction <maximumf>, %64, %cst_23 [1] : vector<8x128xf32> to vector<8xf32>
    %66 = vector.shape_cast %65 : vector<8xf32> to vector<8x1xf32>
    %67 = vector.broadcast %66 : vector<8x1xf32> to vector<8x128xf32>
    %68 = arith.subf %64, %67 : vector<8x128xf32>
    %69 = math.exp %68 : vector<8x128xf32>
    %cst_24 = arith.constant dense<0.000000e+00> : vector<8xf32>
    %70 = vector.multi_reduction <add>, %69, %cst_24 [1] : vector<8x128xf32> to vector<8xf32>
    %71 = vector.shape_cast %70 : vector<8xf32> to vector<8x1xf32>
    %72 = math.log %71 : vector<8x1xf32>
    %73 = vector.broadcast %72 : vector<8x1xf32> to vector<8x128xf32>
    %74 = arith.subf %68, %73 : vector<8x128xf32>
    %c0_25 = arith.constant 0 : index
    %c0_26 = arith.constant 0 : index
    %75 = vector.load %arg10[%c0_25, %c0_26] : memref<8x128xf32, #tpu.memory_space<vmem>>, vector<8x128xf32>
    tpu.vector_store %arg10[%c0_25, %c0_26], %74 {strides = array<i32>} : memref<8x128xf32, #tpu.memory_space<vmem>>, vector<8x128xf32>,
    return
  }
  func.func @transform_0(%arg0: i32) -> (i32, i32) {
    %c0_i32 = arith.constant 0 : i32
    %c0_i32_0 = arith.constant 0 : i32
    return %arg0, %c0_i32 : i32, i32
  }
  func.func @transform_1(%arg0: i32) -> (i32, i32) {
    %c0_i32 = arith.constant 0 : i32
    %c0_i32_0 = arith.constant 0 : i32
    %c0_i32_1 = arith.constant 0 : i32
    return %c0_i32, %c0_i32_0 : i32, i32
  }
  func.func @transform_2(%arg0: i32) -> (i32, i32) {
    %c0_i32 = arith.constant 0 : i32
    %c0_i32_0 = arith.constant 0 : i32
    %c0_i32_1 = arith.constant 0 : i32
    return %c0_i32, %c0_i32_0 : i32, i32
  }
  func.func @transform_3(%arg0: i32) -> (i32, i32) {
    %c0_i32 = arith.constant 0 : i32
    %c0_i32_0 = arith.constant 0 : i32
    %c0_i32_1 = arith.constant 0 : i32
    return %c0_i32, %c0_i32_0 : i32, i32
  }
  func.func @transform_4(%arg0: i32) -> (i32, i32) {
    %c0_i32 = arith.constant 0 : i32
    %c0_i32_0 = arith.constant 0 : i32
    %c0_i32_1 = arith.constant 0 : i32
    return %c0_i32, %c0_i32_0 : i32, i32
  }
  func.func @transform_5(%arg0: i32) -> (i32, i32) {
    %c0_i32 = arith.constant 0 : i32
    %c0_i32_0 = arith.constant 0 : i32
    %c0_i32_1 = arith.constant 0 : i32
    return %c0_i32, %c0_i32_0 : i32, i32
  }
  func.func @transform_6(%arg0: i32) -> (i32, i32) {
    %c0_i32 = arith.constant 0 : i32
    %c0_i32_0 = arith.constant 0 : i32
    %c0_i32_1 = arith.constant 0 : i32
    return %c0_i32, %c0_i32_0 : i32, i32
  }
  func.func @transform_7(%arg0: i32) -> (i32, i32) {
    %c0_i32 = arith.constant 0 : i32
    %c0_i32_0 = arith.constant 0 : i32
    %c0_i32_1 = arith.constant 0 : i32
    return %c0_i32, %c0_i32_0 : i32, i32
  }
  func.func @transform_8(%arg0: i32) -> (i32, i32) {
    %c0_i32 = arith.constant 0 : i32
    %c0_i32_0 = arith.constant 0 : i32
    %c0_i32_1 = arith.constant 0 : i32
    return %c0_i32, %c0_i32_0 : i32, i32
  }
  func.func @transform_9(%arg0: i32) -> (i32, i32) {
    %c0_i32 = arith.constant 0 : i32
    %c0_i32_0 = arith.constant 0 : i32
    return %arg0, %c0_i32 : i32, i32
  }
}

</mosaic_0001>

<llo_original>
// kernel: forward.1
$region0: #{forward.1}
  #allocation0 [shape = 'u32[]', space=smem, size = 0x4, offset = 0x4, fixed_abs, tag = 'smem constant byte address 0x4 - core index']
  #allocation1 [shape = 'u32[72,128]{1,0:T(1,128)}', space=vmem, size = 0x9000, scoped, tag = 'internal scratch']
  %s0 = inlined_call_operand.vmem [shape: bf16[224,28], index: 0, kind: input, shape index: {}]
  %s1 = inlined_call_operand.vmem [shape: bf16[140,384], index: 1, kind: input, shape index: {}]
  %s2 = inlined_call_operand.vmem [shape: f32[1,384], index: 2, kind: input, shape index: {}]
  %s3 = inlined_call_operand.hbm [shape: bf16[1920,256], index: 3, kind: input, shape index: {}]
  %s4 = inlined_call_operand.vmem [shape: f32[1,256], index: 4, kind: input, shape index: {}]
  %s5 = inlined_call_operand.hbm [shape: bf16[1024,128], index: 5, kind: input, shape index: {}]
  %s6 = inlined_call_operand.vmem [shape: f32[1,128], index: 6, kind: input, shape index: {}]
  %s7 = inlined_call_operand.vmem [shape: bf16[128,128], index: 7, kind: input, shape index: {}]
  %s8 = inlined_call_operand.vmem [shape: f32[1,128], index: 8, kind: input, shape index: {}]
  %s9 = inlined_call_operand.vmem [shape: f32[8,128], index: 9, kind: output, shape index: {}]
  %s10 = sld [smem:[#allocation0]]
  $region54: #{forward.1} parent=0
    _
  %s12 = ssub.s32 1, %s10
  %s13 = scalar_select 0, %s12, %s10
  $region1: #{forward.1} parent=0
    #allocation2 [shape = 'u8[983040]{0}', space=vmem, size = 0xf0000, scoped, tag = 'input window, operand 3, single buffered']
    #allocation3 [shape = 's32[1]{0}', space=sflag, size = 0x4, scoped, tag = 'scoped memory for forward.1']
    #allocation4 [shape = 'u8[262144]{0}', space=vmem, size = 0x40000, scoped, tag = 'input window, operand 5, single buffered']
    #allocation5 [shape = 's32[1]{0}', space=sflag, size = 0x4, scoped, tag = 'scoped memory for forward.1']
    %14 = vsyncpa [#allocation3], 0
    %15 = vsyncpa [#allocation5], 0
    // Predicated region
    $region2: #{forward.1} parent=1 // pred_check
      _
    $region3: #{forward.1} parent=1 // pred_check_branch
      %17 = sbr.rel (0) target = $region5
    $region4: #{forward.1} parent=1 // pred_region
      _
    $region5: #{forward.1} parent=1 // pred_fallthru
      _
    // Predicated region
    $region6: #{forward.1} parent=1 // pred_check
      _
    $region7: #{forward.1} parent=1 // pred_check_branch
      %19 = sbr.rel (0) target = $region9
    $region8: #{forward.1} parent=1 // pred_region
      _
    $region9: #{forward.1} parent=1 // pred_fallthru
      _
    // Predicated region
    $region10: #{forward.1} parent=1 // pred_check
      _
    $region11: #{forward.1} parent=1 // pred_check_branch
      %21 = sbr.rel (0) target = $region13
    $region12: #{forward.1} parent=1 // pred_region
      _
    $region13: #{forward.1} parent=1 // pred_fallthru
      _
    // Predicated region
    $region14: #{forward.1} parent=1 // pred_check
      _
    $region15: #{forward.1} parent=1 // pred_check_branch
      %23 = sbr.rel (0) target = $region17
    $region16: #{forward.1} parent=1 // pred_region
      %25 = vsyncadd [#allocation3], 0
      %s26 = sshll.u32 %s3, 4
      %s27 = int_to_ptr.hbm [resolvable:$true] %s26
      %s28 = sshll.u32 [#allocation2], 4
      %s29 = int_to_ptr.vmem [resolvable:$true] %s28
      %34 = dma.hbm_to_vmem [thread:$0]  %s27, 30720, %s29, [#allocation3], 128, 128, 8
    $region17: #{forward.1} parent=1 // pred_fallthru
      _
    // Predicated region
    $region18: #{forward.1} parent=1 // pred_check
      _
    $region19: #{forward.1} parent=1 // pred_check_branch
      %36 = sbr.rel (0) target = $region21
    $region20: #{forward.1} parent=1 // pred_region
      _
    $region21: #{forward.1} parent=1 // pred_fallthru
      _
    // Predicated region
    $region22: #{forward.1} parent=1 // pred_check
      _
    $region23: #{forward.1} parent=1 // pred_check_branch
      %38 = sbr.rel (0) target = $region25
    $region24: #{forward.1} parent=1 // pred_region
      %40 = vsyncadd [#allocation5], 0
      %s41 = sshll.u32 %s5, 4
      %s42 = int_to_ptr.hbm [resolvable:$true] %s41
      %s43 = sshll.u32 [#allocation4], 4
      %s44 = int_to_ptr.vmem [resolvable:$true] %s43
      %49 = dma.hbm_to_vmem [thread:$0]  %s42, 8192, %s44, [#allocation5], 64, 64, 4
    $region25: #{forward.1} parent=1 // pred_fallthru
      _
    // Predicated region
    $region26: #{forward.1} parent=1 // pred_check
      _
    $region27: #{forward.1} parent=1 // pred_check_branch
      %51 = sbr.rel (0) target = $region29
    $region28: #{forward.1} parent=1 // pred_region
      _
    $region29: #{forward.1} parent=1 // pred_fallthru
      _
    // Predicated region
    $region30: #{forward.1} parent=1 // pred_check
      _
    $region31: #{forward.1} parent=1 // pred_check_branch
      %53 = sbr.rel (0) target = $region33
    $region32: #{forward.1} parent=1 // pred_region
      _
    $region33: #{forward.1} parent=1 // pred_fallthru
      _
    // Predicated region
    $region34: #{forward.1} parent=1 // pred_check
      _
    $region35: #{forward.1} parent=1 // pred_check_branch
      %55 = sbr.rel (0) target = $region37
    $region36: #{forward.1} parent=1 // pred_region
      _
    $region37: #{forward.1} parent=1 // pred_fallthru
      _
    // Predicated region
    $region38: #{forward.1} parent=1 // pred_check
      _
    $region39: #{forward.1} parent=1 // pred_check_branch
      %57 = sbr.rel (0) target = $region41
    $region40: #{forward.1} parent=1 // pred_region
      %59 = dma.done [#allocation3], 30720
    $region41: #{forward.1} parent=1 // pred_fallthru
      _
    // Predicated region
    $region42: #{forward.1} parent=1 // pred_check
      _
    $region43: #{forward.1} parent=1 // pred_check_branch
      %61 = sbr.rel (0) target = $region45
    $region44: #{forward.1} parent=1 // pred_region
      %63 = dma.done [#allocation5], 8192
    $region45: #{forward.1} parent=1 // pred_fallthru
      _
    %v65 = vld [vmem:[%s0] sm:$0xf]
    %v66 = vld [vmem:[%s0 + $0x4] sm:$0xf]
    %v67 = vld [vmem:[%s0 + $0x8] sm:$0xf]
    %v68 = vld [vmem:[%s0 + $0xc] sm:$0xf]
    %v69 = vld [vmem:[%s0 + $0x10] sm:$0xf]
    %v70 = vld [vmem:[%s0 + $0x14] sm:$0xf]
    %v71 = vld [vmem:[%s0 + $0x18] sm:$0xf]
    %v72 = vld [vmem:[%s0 + $0x1c] sm:$0xf]
    %v73 = vld [vmem:[%s0 + $0x20] sm:$0xf]
    %v74 = vld [vmem:[%s0 + $0x24] sm:$0xf]
    %v75 = vld [vmem:[%s0 + $0x28] sm:$0xf]
    %v76 = vld [vmem:[%s0 + $0x2c] sm:$0xf]
    %v77 = vld [vmem:[%s0 + $0x30] sm:$0xf]
    %v78 = vld [vmem:[%s0 + $0x34] sm:$0xf]
    %v79 = vld [vmem:[%s0 + $0x38] sm:$0xf]
    %v80 = vld [vmem:[%s0 + $0x3c] sm:$0xf]
    %v81 = vld [vmem:[%s0 + $0x40] sm:$0xf]
    %v82 = vld [vmem:[%s0 + $0x44] sm:$0xf]
    %v83 = vld [vmem:[%s0 + $0x48] sm:$0xf]
    %v84 = vld [vmem:[%s0 + $0x4c] sm:$0xf]
    %v85 = vld [vmem:[%s0 + $0x50] sm:$0xf]
    %v86 = vld [vmem:[%s0 + $0x54] sm:$0xf]
    %v87 = vld [vmem:[%s0 + $0x58] sm:$0xf]
    %v88 = vld [vmem:[%s0 + $0x5c] sm:$0xf]
    %v89 = vld [vmem:[%s0 + $0x60] sm:$0xf]
    %v90 = vld [vmem:[%s0 + $0x64] sm:$0xf]
    %v91 = vld [vmem:[%s0 + $0x68] sm:$0xf]
    %v92 = vld [vmem:[%s0 + $0x6c] sm:$0xf]
    %v117 = vunpack.c.l.b16 %v65
    %v118 = vunpack.c.l.b16 %v66
    %v119 = vunpack.c.l.b16 %v67
    %v120 = vunpack.c.l.b16 %v68
    %v121 = vunpack.c.l.b16 %v69
    %v122 = vunpack.c.l.b16 %v70
    %v123 = vunpack.c.l.b16 %v71
    %v124 = vunpack.c.l.b16 %v72
    %v125 = vunpack.c.l.b16 %v73
    %v126 = vunpack.c.l.b16 %v74
    %v127 = vunpack.c.l.b16 %v75
    %v128 = vunpack.c.l.b16 %v76
    %v129 = vunpack.c.l.b16 %v77
    %v130 = vunpack.c.l.b16 %v78
    %v131 = vunpack.c.l.b16 %v79
    %v132 = vunpack.c.l.b16 %v80
    %v133 = vunpack.c.l.b16 %v81
    %v134 = vunpack.c.l.b16 %v82
    %v135 = vunpack.c.l.b16 %v83
    %v136 = vunpack.c.l.b16 %v84
    %v137 = vunpack.c.l.b16 %v85
    %v138 = vunpack.c.l.b16 %v86
    %v139 = vunpack.c.l.b16 %v87
    %v140 = vunpack.c.l.b16 %v88
    %v141 = vpack.c.b16 %v118, %v117
    %v142 = vpack.c.b16 %v120, %v119
    %v143 = vpack.c.b16 %v122, %v121
    %v144 = vpack.c.b16 %v124, %v123
    %v145 = vpack.c.b16 %v126, %v125
    %v146 = vpack.c.b16 %v128, %v127
    %v147 = vpack.c.b16 %v130, %v129
    %v148 = vpack.c.b16 %v132, %v131
    %v149 = vpack.c.b16 %v134, %v133
    %v150 = vpack.c.b16 %v136, %v135
    %v151 = vpack.c.b16 %v138, %v137
    %v152 = vpack.c.b16 %v140, %v139
    %v154 = vunpack.c.l.b16 %v89
    %v155 = vpack.c.b16 %v119, %v118
    %v156 = vpack.c.b16 %v121, %v120
    %v157 = vpack.c.b16 %v123, %v122
    %v158 = vpack.c.b16 %v125, %v124
    %v159 = vpack.c.b16 %v127, %v126
    %v160 = vpack.c.b16 %v129, %v128
    %v161 = vpack.c.b16 %v131, %v130
    %v162 = vpack.c.b16 %v133, %v132
    %v163 = vpack.c.b16 %v135, %v134
    %v164 = vpack.c.b16 %v137, %v136
    %v165 = vpack.c.b16 %v139, %v138
    %v166 = vpack.c.b16 %v154, %v140
    %167 = vrot.lane.b32.xlu0 %v155, 28
    %v168 = vpop.permute.xlu0 %167
    %169 = vrot.lane.b32.xlu0 %v156, 28
    %v170 = vpop.permute.xlu0 %169
    %171 = vrot.lane.b32.xlu0 %v157, 28
    %v172 = vpop.permute.xlu0 %171
    %173 = vrot.lane.b32.xlu0 %v158, 28
    %v174 = vpop.permute.xlu0 %173
    %175 = vrot.lane.b32.xlu0 %v159, 28
    %v176 = vpop.permute.xlu0 %175
    %177 = vrot.lane.b32.xlu0 %v160, 28
    %v178 = vpop.permute.xlu0 %177
    %179 = vrot.lane.b32.xlu0 %v161, 28
    %v180 = vpop.permute.xlu0 %179
    %181 = vrot.lane.b32.xlu0 %v162, 28
    %v182 = vpop.permute.xlu0 %181
    %183 = vrot.lane.b32.xlu0 %v163, 28
    %v184 = vpop.permute.xlu0 %183
    %185 = vrot.lane.b32.xlu0 %v164, 28
    %v186 = vpop.permute.xlu0 %185
    %187 = vrot.lane.b32.xlu0 %v165, 28
    %v188 = vpop.permute.xlu0 %187
    %189 = vrot.lane.b32.xlu0 %v166, 28
    %v190 = vpop.permute.xlu0 %189
    %v192 = vunpack.c.l.b16 %v90
    %v193 = vpack.c.b16 %v192, %v154
    %194 = vrot.lane.b32.xlu0 %v142, 56
    %v195 = vpop.permute.xlu0 %194
    %196 = vrot.lane.b32.xlu0 %v143, 56
    %v197 = vpop.permute.xlu0 %196
    %198 = vrot.lane.b32.xlu0 %v144, 56
    %v199 = vpop.permute.xlu0 %198
    %200 = vrot.lane.b32.xlu0 %v145, 56
    %v201 = vpop.permute.xlu0 %200
    %202 = vrot.lane.b32.xlu0 %v146, 56
    %v203 = vpop.permute.xlu0 %202
    %204 = vrot.lane.b32.xlu0 %v147, 56
    %v205 = vpop.permute.xlu0 %204
    %206 = vrot.lane.b32.xlu0 %v148, 56
    %v207 = vpop.permute.xlu0 %206
    %208 = vrot.lane.b32.xlu0 %v149, 56
    %v209 = vpop.permute.xlu0 %208
    %210 = vrot.lane.b32.xlu0 %v150, 56
    %v211 = vpop.permute.xlu0 %210
    %212 = vrot.lane.b32.xlu0 %v151, 56
    %v213 = vpop.permute.xlu0 %212
    %214 = vrot.lane.b32.xlu0 %v152, 56
    %v215 = vpop.permute.xlu0 %214
    %216 = vrot.lane.b32.xlu0 %v193, 56
    %v217 = vpop.permute.xlu0 %216
    %v219 = vunpack.c.l.b16 %v91
    %v220 = vpack.c.b16 %v219, %v192
    %221 = vrot.lane.b32.xlu0 %v156, 84
    %v222 = vpop.permute.xlu0 %221
    %223 = vrot.lane.b32.xlu0 %v157, 84
    %v224 = vpop.permute.xlu0 %223
    %225 = vrot.lane.b32.xlu0 %v158, 84
    %v226 = vpop.permute.xlu0 %225
    %227 = vrot.lane.b32.xlu0 %v159, 84
    %v228 = vpop.permute.xlu0 %227
    %229 = vrot.lane.b32.xlu0 %v160, 84
    %v230 = vpop.permute.xlu0 %229
    %231 = vrot.lane.b32.xlu0 %v161, 84
    %v232 = vpop.permute.xlu0 %231
    %233 = vrot.lane.b32.xlu0 %v162, 84
    %v234 = vpop.permute.xlu0 %233
    %235 = vrot.lane.b32.xlu0 %v163, 84
    %v236 = vpop.permute.xlu0 %235
    %237 = vrot.lane.b32.xlu0 %v164, 84
    %v238 = vpop.permute.xlu0 %237
    %239 = vrot.lane.b32.xlu0 %v165, 84
    %v240 = vpop.permute.xlu0 %239
    %241 = vrot.lane.b32.xlu0 %v166, 84
    %v242 = vpop.permute.xlu0 %241
    %243 = vrot.lane.b32.xlu0 %v220, 84
    %v244 = vpop.permute.xlu0 %243
    %v246 = vunpack.c.l.b16 %v92
    %v247 = vpack.c.b16 %v246, %v219
    %248 = vrot.lane.b32.xlu0 %v143, 112
    %v249 = vpop.permute.xlu0 %248
    %250 = vrot.lane.b32.xlu0 %v144, 112
    %v251 = vpop.permute.xlu0 %250
    %252 = vrot.lane.b32.xlu0 %v145, 112
    %v253 = vpop.permute.xlu0 %252
    %254 = vrot.lane.b32.xlu0 %v146, 112
    %v255 = vpop.permute.xlu0 %254
    %256 = vrot.lane.b32.xlu0 %v147, 112
    %v257 = vpop.permute.xlu0 %256
    %258 = vrot.lane.b32.xlu0 %v148, 112
    %v259 = vpop.permute.xlu0 %258
    %260 = vrot.lane.b32.xlu0 %v149, 112
    %v261 = vpop.permute.xlu0 %260
    %262 = vrot.lane.b32.xlu0 %v150, 112
    %v263 = vpop.permute.xlu0 %262
    %264 = vrot.lane.b32.xlu0 %v151, 112
    %v265 = vpop.permute.xlu0 %264
    %266 = vrot.lane.b32.xlu0 %v152, 112
    %v267 = vpop.permute.xlu0 %266
    %268 = vrot.lane.b32.xlu0 %v193, 112
    %v269 = vpop.permute.xlu0 %268
    %270 = vrot.lane.b32.xlu0 %v247, 112
    %v271 = vpop.permute.xlu0 %270
    %vm272 = vcmask 228352
    %v275 = vsel %vm272, %v141, %v168
    %v278 = vsel %vm272, %v142, %v170
    %v281 = vsel %vm272, %v143, %v172
    %v284 = vsel %vm272, %v144, %v174
    %v287 = vsel %vm272, %v145, %v176
    %v290 = vsel %vm272, %v146, %v178
    %v293 = vsel %vm272, %v147, %v180
    %v296 = vsel %vm272, %v148, %v182
    %v299 = vsel %vm272, %v149, %v184
    %v302 = vsel %vm272, %v150, %v186
    %v305 = vsel %vm272, %v151, %v188
    %v308 = vsel %vm272, %v152, %v190
    %vm309 = vcmask 457728
    %v311 = vsel %vm309, %v275, %v195
    %v313 = vsel %vm309, %v278, %v197
    %v315 = vsel %vm309, %v281, %v199
    %v317 = vsel %vm309, %v284, %v201
    %v319 = vsel %vm309, %v287, %v203
    %v321 = vsel %vm309, %v290, %v205
    %v323 = vsel %vm309, %v293, %v207
    %v325 = vsel %vm309, %v296, %v209
    %v327 = vsel %vm309, %v299, %v211
    %v329 = vsel %vm309, %v302, %v213
    %v331 = vsel %vm309, %v305, %v215
    %v333 = vsel %vm309, %v308, %v217
    %vm334 = vcmask 687104
    %v336 = vsel %vm334, %v311, %v222
    %v338 = vsel %vm334, %v313, %v224
    %v340 = vsel %vm334, %v315, %v226
    %v342 = vsel %vm334, %v317, %v228
    %v344 = vsel %vm334, %v319, %v230
    %v346 = vsel %vm334, %v321, %v232
    %v348 = vsel %vm334, %v323, %v234
    %v350 = vsel %vm334, %v325, %v236
    %v352 = vsel %vm334, %v327, %v238
    %v354 = vsel %vm334, %v329, %v240
    %v356 = vsel %vm334, %v331, %v242
    %v358 = vsel %vm334, %v333, %v244
    %vm359 = vcmask 916480
    %v361 = vsel %vm359, %v336, %v249
    %v364 = vsel %vm359, %v338, %v251
    %v367 = vsel %vm359, %v340, %v253
    %v370 = vsel %vm359, %v342, %v255
    %v373 = vsel %vm359, %v344, %v257
    %v376 = vsel %vm359, %v346, %v259
    %v379 = vsel %vm359, %v348, %v261
    %v382 = vsel %vm359, %v350, %v263
    %v385 = vsel %vm359, %v352, %v265
    %v388 = vsel %vm359, %v354, %v267
    %v391 = vsel %vm359, %v356, %v269
    %v394 = vsel %vm359, %v358, %v271
    %v396 = vld [vmem:[%s1] sm:$0xff]
    %v397 = vld [vmem:[%s1 + $0x8] sm:$0xf]
    %v398 = vld [vmem:[%s1 + $0xc] sm:$0xff]
    %v399 = vld [vmem:[%s1 + $0x14] sm:$0xf]
    %v400 = vld [vmem:[%s1 + $0x18] sm:$0xff]
    %v401 = vld [vmem:[%s1 + $0x20] sm:$0xf]
    %v402 = vld [vmem:[%s1 + $0x24] sm:$0xff]
    %v403 = vld [vmem:[%s1 + $0x2c] sm:$0xf]
    %v404 = vld [vmem:[%s1 + $0x30] sm:$0xff]
    %v405 = vld [vmem:[%s1 + $0x38] sm:$0xf]
    %v406 = vld [vmem:[%s1 + $0x3c] sm:$0xff]
    %v407 = vld [vmem:[%s1 + $0x44] sm:$0xf]
    %v408 = vld [vmem:[%s1 + $0x48] sm:$0xff]
    %v409 = vld [vmem:[%s1 + $0x50] sm:$0xf]
    %v410 = vld [vmem:[%s1 + $0x54] sm:$0xff]
    %v411 = vld [vmem:[%s1 + $0x5c] sm:$0xf]
    %v412 = vld [vmem:[%s1 + $0x60] sm:$0xff]
    %v413 = vld [vmem:[%s1 + $0x68] sm:$0xf]
    %v414 = vld [vmem:[%s1 + $0x6c] sm:$0xff]
    %v415 = vld [vmem:[%s1 + $0x74] sm:$0xf]
    %v416 = vld [vmem:[%s1 + $0x78] sm:$0xff]
    %v417 = vld [vmem:[%s1 + $0x80] sm:$0xf]
    %v418 = vld [vmem:[%s1 + $0x84] sm:$0xff]
    %v419 = vld [vmem:[%s1 + $0x8c] sm:$0xf]
    %v420 = vld [vmem:[%s1 + $0x90] sm:$0xff]
    %v421 = vld [vmem:[%s1 + $0x98] sm:$0xf]
    %v422 = vld [vmem:[%s1 + $0x9c] sm:$0xff]
    %v423 = vld [vmem:[%s1 + $0xa4] sm:$0xf]
    %v424 = vld [vmem:[%s1 + $0xa8] sm:$0xff]
    %v425 = vld [vmem:[%s1 + $0xb0] sm:$0xf]
    %v426 = vld [vmem:[%s1 + $0xb4] sm:$0xff]
    %v427 = vld [vmem:[%s1 + $0xbc] sm:$0xf]
    %v428 = vld [vmem:[%s1 + $0xc0] sm:$0xff]
    %v429 = vld [vmem:[%s1 + $0xc8] sm:$0xf]
    %v430 = vld [vmem:[%s1 + $0xcc] sm:$0x33]
    %v431 = vld [vmem:[%s1 + $0xd4] sm:$0x3]
    %v432 = vld [vmem:[%s2] sm:$0x7]
    %v434 = vperm.slane %v432, 0
    %v435 = vperm.slane %v432, 1
    %v436 = vperm.slane %v432, 2
    %v476 = vunpack.c.l.b16 %v396
    %v477 = vunpack.c.h.b16 %v396
    %v478 = vunpack.c.l.b16 %v397
    %v479 = vunpack.c.l.b16 %v398
    %v480 = vunpack.c.h.b16 %v398
    %v481 = vunpack.c.l.b16 %v399
    %v482 = vunpack.c.l.b16 %v400
    %v483 = vunpack.c.h.b16 %v400
    %v484 = vunpack.c.l.b16 %v401
    %v485 = vunpack.c.l.b16 %v402
    %v486 = vunpack.c.h.b16 %v402
    %v487 = vunpack.c.l.b16 %v403
    %v488 = vunpack.c.l.b16 %v404
    %v489 = vunpack.c.h.b16 %v404
    %v490 = vunpack.c.l.b16 %v405
    %v491 = vunpack.c.l.b16 %v406
    %v492 = vunpack.c.h.b16 %v406
    %v493 = vunpack.c.l.b16 %v407
    %v494 = vunpack.c.l.b16 %v408
    %v495 = vunpack.c.h.b16 %v408
    %v496 = vunpack.c.l.b16 %v409
    %v497 = vunpack.c.l.b16 %v410
    %v498 = vunpack.c.h.b16 %v410
    %v499 = vunpack.c.l.b16 %v411
    %v500 = vunpack.c.l.b16 %v412
    %v501 = vunpack.c.h.b16 %v412
    %v502 = vunpack.c.l.b16 %v413
    %v503 = vunpack.c.l.b16 %v414
    %v504 = vunpack.c.h.b16 %v414
    %v505 = vunpack.c.l.b16 %v415
    %v506 = vunpack.c.l.b16 %v416
    %v507 = vunpack.c.h.b16 %v416
    %v508 = vunpack.c.l.b16 %v417
    %v509 = vunpack.c.l.b16 %v418
    %v510 = vunpack.c.h.b16 %v418
    %v511 = vunpack.c.l.b16 %v419
    %v512 = vunpack.c.l.b16 %v420
    %v513 = vunpack.c.h.b16 %v420
    %v514 = vunpack.c.l.b16 %v421
    %v515 = vunpack.c.l.b16 %v422
    %v516 = vunpack.c.h.b16 %v422
    %v517 = vunpack.c.l.b16 %v423
    %v518 = vunpack.c.l.b16 %v424
    %v519 = vunpack.c.h.b16 %v424
    %v520 = vunpack.c.l.b16 %v425
    %v521 = vunpack.c.l.b16 %v426
    %v522 = vunpack.c.h.b16 %v426
    %v523 = vunpack.c.l.b16 %v427
    %v524 = vunpack.c.l.b16 %v428
    %v525 = vunpack.c.h.b16 %v428
    %v526 = vunpack.c.l.b16 %v429
    %v527 = vunpack.c.l.b16 %v430
    %v528 = vunpack.c.h.b16 %v430
    %v529 = vunpack.c.l.b16 %v431
    %v530 = vpack.c.b16 %v479, %v476
    %v531 = vpack.c.b16 %v480, %v477
    %v532 = vpack.c.b16 %v481, %v478
    %v533 = vpack.c.b16 %v485, %v482
    %v534 = vpack.c.b16 %v486, %v483
    %v535 = vpack.c.b16 %v487, %v484
    %v536 = vpack.c.b16 %v491, %v488
    %v537 = vpack.c.b16 %v492, %v489
    %v538 = vpack.c.b16 %v493, %v490
    %v539 = vpack.c.b16 %v497, %v494
    %v540 = vpack.c.b16 %v498, %v495
    %v541 = vpack.c.b16 %v499, %v496
    %v542 = vpack.c.b16 %v503, %v500
    %v543 = vpack.c.b16 %v504, %v501
    %v544 = vpack.c.b16 %v505, %v502
    %v545 = vpack.c.b16 %v509, %v506
    %v546 = vpack.c.b16 %v510, %v507
    %v547 = vpack.c.b16 %v511, %v508
    %v548 = vpack.c.b16 %v515, %v512
    %v549 = vpack.c.b16 %v516, %v513
    %v550 = vpack.c.b16 %v517, %v514
    %v551 = vpack.c.b16 %v521, %v518
    %v552 = vpack.c.b16 %v522, %v519
    %v553 = vpack.c.b16 %v523, %v520
    %v554 = vpack.c.b16 %v527, %v524
    %v555 = vpack.c.b16 %v528, %v525
    %v556 = vpack.c.b16 %v529, %v526
    %vm581 = vcmask 97280
    %v582 = vsel %vm581, %v249, 0
    %v584 = vsel %vm581, %v251, 0
    %v586 = vsel %vm581, %v253, 0
    %v588 = vsel %vm581, %v255, 0
    %v590 = vsel %vm581, %v257, 0
    %v592 = vsel %vm581, %v259, 0
    %v594 = vsel %vm581, %v261, 0
    %v596 = vsel %vm581, %v263, 0
    %v598 = vsel %vm581, %v265, 0
    %v600 = vsel %vm581, %v267, 0
    %v602 = vsel %vm581, %v269, 0
    %v604 = vsel %vm581, %v271, 0
    %vm606 = vcmask 1045504
    %v608 = vsel %vm606, %v554, 0
    %v611 = vsel %vm606, %v555, 0
    %v614 = vsel %vm606, %v556, 0
    %616 = vmatpush.bf16.msra.mxu0 %v551
    %617 = vmatpush.bf16.msra.mxu0 %v548
    %618 = vmatpush.bf16.msra.mxu0 %v545
    %619 = vmatpush.bf16.msra.mxu0 %v542
    %620 = vmatpush.bf16.msra.mxu0 %v539
    %621 = vmatpush.bf16.msra.mxu0 %v536
    %622 = vmatpush.bf16.msra.mxu0 %v533
    %623 = vmatpush.bf16.msra.mxu0 %v530
    %624 = vmatmul.bf16.gmra.mxu0 %v361
    %v625 = vpop.f32.mrf.mxu0
    %v626 = vadd.f32 %v434, %v625
    %v627 = vpop.f32.mrf.mxu0
    %v628 = vadd.f32 %v434, %v627
    %629 = vmatmul.bf16.gmra.mxu0 %v364
    %v630 = vpop.f32.mrf.mxu0
    %v631 = vadd.f32 %v434, %v630
    %v632 = vpop.f32.mrf.mxu0
    %v633 = vadd.f32 %v434, %v632
    %634 = vmatmul.bf16.gmra.mxu0 %v367
    %v635 = vpop.f32.mrf.mxu0
    %v636 = vadd.f32 %v434, %v635
    %v637 = vpop.f32.mrf.mxu0
    %v638 = vadd.f32 %v434, %v637
    %639 = vmatmul.bf16.gmra.mxu0 %v370
    %v640 = vpop.f32.mrf.mxu0
    %v641 = vadd.f32 %v434, %v640
    %v642 = vpop.f32.mrf.mxu0
    %v643 = vadd.f32 %v434, %v642
    %644 = vmatmul.bf16.gmra.mxu0 %v373
    %v645 = vpop.f32.mrf.mxu0
    %v646 = vadd.f32 %v434, %v645
    %v647 = vpop.f32.mrf.mxu0
    %v648 = vadd.f32 %v434, %v647
    %649 = vmatmul.bf16.gmra.mxu0 %v376
    %v650 = vpop.f32.mrf.mxu0
    %v651 = vadd.f32 %v434, %v650
    %v652 = vpop.f32.mrf.mxu0
    %v653 = vadd.f32 %v434, %v652
    %654 = vmatmul.bf16.gmra.mxu0 %v379
    %v655 = vpop.f32.mrf.mxu0
    %v656 = vadd.f32 %v434, %v655
    %v657 = vpop.f32.mrf.mxu0
    %v658 = vadd.f32 %v434, %v657
    %659 = vmatmul.bf16.gmra.mxu0 %v382
    %v660 = vpop.f32.mrf.mxu0
    %v661 = vadd.f32 %v434, %v660
    %v662 = vpop.f32.mrf.mxu0
    %v663 = vadd.f32 %v434, %v662
    %664 = vmatmul.bf16.gmra.mxu0 %v385
    %v665 = vpop.f32.mrf.mxu0
    %v666 = vadd.f32 %v434, %v665
    %v667 = vpop.f32.mrf.mxu0
    %v668 = vadd.f32 %v434, %v667
    %669 = vmatmul.bf16.gmra.mxu0 %v388
    %v670 = vpop.f32.mrf.mxu0
    %v671 = vadd.f32 %v434, %v670
    %v672 = vpop.f32.mrf.mxu0
    %v673 = vadd.f32 %v434, %v672
    %674 = vmatmul.bf16.gmra.mxu0 %v391
    %v675 = vpop.f32.mrf.mxu0
    %v676 = vadd.f32 %v434, %v675
    %v677 = vpop.f32.mrf.mxu0
    %v678 = vadd.f32 %v434, %v677
    %679 = vmatmul.bf16.gmra.mxu0 %v394
    %v680 = vpop.f32.mrf.mxu0
    %v681 = vadd.f32 %v434, %v680
    %v682 = vpop.f32.mrf.mxu0
    %v683 = vadd.f32 %v434, %v682
    %684 = vdwg.mxu0
    %685 = vmatpush.bf16.msra.mxu0 0
    %686 = vmatpush.bf16.msra.mxu0 0
    %687 = vmatpush.bf16.msra.mxu0 0
    %688 = vmatpush.bf16.msra.mxu0 0
    %689 = vmatpush.bf16.msra.mxu0 0
    %690 = vmatpush.bf16.msra.mxu0 0
    %691 = vmatpush.bf16.msra.mxu0 0
    %692 = vmatpush.bf16.msra.mxu0 %v608
    %693 = vmatmul.bf16.gmra.mxu0 %v582
    %v694 = vpop.f32.mrf.mxu0
    %v695 = vadd.f32 %v626, %v694
    %v696 = vpop.f32.mrf.mxu0
    %v697 = vadd.f32 %v628, %v696
    %698 = vmatmul.bf16.gmra.mxu0 %v584
    %v699 = vpop.f32.mrf.mxu0
    %v700 = vadd.f32 %v631, %v699
    %v701 = vpop.f32.mrf.mxu0
    %v702 = vadd.f32 %v633, %v701
    %703 = vmatmul.bf16.gmra.mxu0 %v586
    %v704 = vpop.f32.mrf.mxu0
    %v705 = vadd.f32 %v636, %v704
    %v706 = vpop.f32.mrf.mxu0
    %v707 = vadd.f32 %v638, %v706
    %708 = vmatmul.bf16.gmra.mxu0 %v588
    %v709 = vpop.f32.mrf.mxu0
    %v710 = vadd.f32 %v641, %v709
    %v711 = vpop.f32.mrf.mxu0
    %v712 = vadd.f32 %v643, %v711
    %713 = vmatmul.bf16.gmra.mxu0 %v590
    %v714 = vpop.f32.mrf.mxu0
    %v715 = vadd.f32 %v646, %v714
    %v716 = vpop.f32.mrf.mxu0
    %v717 = vadd.f32 %v648, %v716
    %718 = vmatmul.bf16.gmra.mxu0 %v592
    %v719 = vpop.f32.mrf.mxu0
    %v720 = vadd.f32 %v651, %v719
    %v721 = vpop.f32.mrf.mxu0
    %v722 = vadd.f32 %v653, %v721
    %723 = vmatmul.bf16.gmra.mxu0 %v594
    %v724 = vpop.f32.mrf.mxu0
    %v725 = vadd.f32 %v656, %v724
    %v726 = vpop.f32.mrf.mxu0
    %v727 = vadd.f32 %v658, %v726
    %728 = vmatmul.bf16.gmra.mxu0 %v596
    %v729 = vpop.f32.mrf.mxu0
    %v730 = vadd.f32 %v661, %v729
    %v731 = vpop.f32.mrf.mxu0
    %v732 = vadd.f32 %v663, %v731
    %733 = vmatmul.bf16.gmra.mxu0 %v598
    %v734 = vpop.f32.mrf.mxu0
    %v735 = vadd.f32 %v666, %v734
    %v736 = vpop.f32.mrf.mxu0
    %v737 = vadd.f32 %v668, %v736
    %738 = vmatmul.bf16.gmra.mxu0 %v600
    %v739 = vpop.f32.mrf.mxu0
    %v740 = vadd.f32 %v671, %v739
    %v741 = vpop.f32.mrf.mxu0
    %v742 = vadd.f32 %v673, %v741
    %743 = vmatmul.bf16.gmra.mxu0 %v602
    %v744 = vpop.f32.mrf.mxu0
    %v745 = vadd.f32 %v676, %v744
    %v746 = vpop.f32.mrf.mxu0
    %v747 = vadd.f32 %v678, %v746
    %748 = vmatmul.bf16.gmra.mxu0 %v604
    %v749 = vpop.f32.mrf.mxu0
    %v750 = vadd.f32 %v681, %v749
    %v751 = vpop.f32.mrf.mxu0
    %v752 = vadd.f32 %v683, %v751
    %753 = vdwg.mxu0
    %754 = vmatpush.bf16.msra.mxu0 %v552
    %755 = vmatpush.bf16.msra.mxu0 %v549
    %756 = vmatpush.bf16.msra.mxu0 %v546
    %757 = vmatpush.bf16.msra.mxu0 %v543
    %758 = vmatpush.bf16.msra.mxu0 %v540
    %759 = vmatpush.bf16.msra.mxu0 %v537
    %760 = vmatpush.bf16.msra.mxu0 %v534
    %761 = vmatpush.bf16.msra.mxu0 %v531
    %762 = vmatmul.bf16.gmra.mxu0 %v361
    %v763 = vpop.f32.mrf.mxu0
    %v764 = vadd.f32 %v435, %v763
    %v765 = vpop.f32.mrf.mxu0
    %v766 = vadd.f32 %v435, %v765
    %767 = vmatmul.bf16.gmra.mxu0 %v364
    %v768 = vpop.f32.mrf.mxu0
    %v769 = vadd.f32 %v435, %v768
    %v770 = vpop.f32.mrf.mxu0
    %v771 = vadd.f32 %v435, %v770
    %772 = vmatmul.bf16.gmra.mxu0 %v367
    %v773 = vpop.f32.mrf.mxu0
    %v774 = vadd.f32 %v435, %v773
    %v775 = vpop.f32.mrf.mxu0
    %v776 = vadd.f32 %v435, %v775
    %777 = vmatmul.bf16.gmra.mxu0 %v370
    %v778 = vpop.f32.mrf.mxu0
    %v779 = vadd.f32 %v435, %v778
    %v780 = vpop.f32.mrf.mxu0
    %v781 = vadd.f32 %v435, %v780
    %782 = vmatmul.bf16.gmra.mxu0 %v373
    %v783 = vpop.f32.mrf.mxu0
    %v784 = vadd.f32 %v435, %v783
    %v785 = vpop.f32.mrf.mxu0
    %v786 = vadd.f32 %v435, %v785
    %787 = vmatmul.bf16.gmra.mxu0 %v376
    %v788 = vpop.f32.mrf.mxu0
    %v789 = vadd.f32 %v435, %v788
    %v790 = vpop.f32.mrf.mxu0
    %v791 = vadd.f32 %v435, %v790
    %792 = vmatmul.bf16.gmra.mxu0 %v379
    %v793 = vpop.f32.mrf.mxu0
    %v794 = vadd.f32 %v435, %v793
    %v795 = vpop.f32.mrf.mxu0
    %v796 = vadd.f32 %v435, %v795
    %797 = vmatmul.bf16.gmra.mxu0 %v382
    %v798 = vpop.f32.mrf.mxu0
    %v799 = vadd.f32 %v435, %v798
    %v800 = vpop.f32.mrf.mxu0
    %v801 = vadd.f32 %v435, %v800
    %802 = vmatmul.bf16.gmra.mxu0 %v385
    %v803 = vpop.f32.mrf.mxu0
    %v804 = vadd.f32 %v435, %v803
    %v805 = vpop.f32.mrf.mxu0
    %v806 = vadd.f32 %v435, %v805
    %807 = vmatmul.bf16.gmra.mxu0 %v388
    %v808 = vpop.f32.mrf.mxu0
    %v809 = vadd.f32 %v435, %v808
    %v810 = vpop.f32.mrf.mxu0
    %v811 = vadd.f32 %v435, %v810
    %812 = vmatmul.bf16.gmra.mxu0 %v391
    %v813 = vpop.f32.mrf.mxu0
    %v814 = vadd.f32 %v435, %v813
    %v815 = vpop.f32.mrf.mxu0
    %v816 = vadd.f32 %v435, %v815
    %817 = vmatmul.bf16.gmra.mxu0 %v394
    %v818 = vpop.f32.mrf.mxu0
    %v819 = vadd.f32 %v435, %v818
    %v820 = vpop.f32.mrf.mxu0
    %v821 = vadd.f32 %v435, %v820
    %822 = vdwg.mxu0
    %823 = vmatpush.bf16.msra.mxu0 0
    %824 = vmatpush.bf16.msra.mxu0 0
    %825 = vmatpush.bf16.msra.mxu0 0
    %826 = vmatpush.bf16.msra.mxu0 0
    %827 = vmatpush.bf16.msra.mxu0 0
    %828 = vmatpush.bf16.msra.mxu0 0
    %829 = vmatpush.bf16.msra.mxu0 0
    %830 = vmatpush.bf16.msra.mxu0 %v611
    %831 = vmatmul.bf16.gmra.mxu0 %v582
    %v832 = vpop.f32.mrf.mxu0
    %v833 = vadd.f32 %v764, %v832
    %v834 = vpop.f32.mrf.mxu0
    %v835 = vadd.f32 %v766, %v834
    %836 = vmatmul.bf16.gmra.mxu0 %v584
    %v837 = vpop.f32.mrf.mxu0
    %v838 = vadd.f32 %v769, %v837
    %v839 = vpop.f32.mrf.mxu0
    %v840 = vadd.f32 %v771, %v839
    %841 = vmatmul.bf16.gmra.mxu0 %v586
    %v842 = vpop.f32.mrf.mxu0
    %v843 = vadd.f32 %v774, %v842
    %v844 = vpop.f32.mrf.mxu0
    %v845 = vadd.f32 %v776, %v844
    %846 = vmatmul.bf16.gmra.mxu0 %v588
    %v847 = vpop.f32.mrf.mxu0
    %v848 = vadd.f32 %v779, %v847
    %v849 = vpop.f32.mrf.mxu0
    %v850 = vadd.f32 %v781, %v849
    %851 = vmatmul.bf16.gmra.mxu0 %v590
    %v852 = vpop.f32.mrf.mxu0
    %v853 = vadd.f32 %v784, %v852
    %v854 = vpop.f32.mrf.mxu0
    %v855 = vadd.f32 %v786, %v854
    %856 = vmatmul.bf16.gmra.mxu0 %v592
    %v857 = vpop.f32.mrf.mxu0
    %v858 = vadd.f32 %v789, %v857
    %v859 = vpop.f32.mrf.mxu0
    %v860 = vadd.f32 %v791, %v859
    %861 = vmatmul.bf16.gmra.mxu0 %v594
    %v862 = vpop.f32.mrf.mxu0
    %v863 = vadd.f32 %v794, %v862
    %v864 = vpop.f32.mrf.mxu0
    %v865 = vadd.f32 %v796, %v864
    %866 = vmatmul.bf16.gmra.mxu0 %v596
    %v867 = vpop.f32.mrf.mxu0
    %v868 = vadd.f32 %v799, %v867
    %v869 = vpop.f32.mrf.mxu0
    %v870 = vadd.f32 %v801, %v869
    %871 = vmatmul.bf16.gmra.mxu0 %v598
    %v872 = vpop.f32.mrf.mxu0
    %v873 = vadd.f32 %v804, %v872
    %v874 = vpop.f32.mrf.mxu0
    %v875 = vadd.f32 %v806, %v874
    %876 = vmatmul.bf16.gmra.mxu0 %v600
    %v877 = vpop.f32.mrf.mxu0
    %v878 = vadd.f32 %v809, %v877
    %v879 = vpop.f32.mrf.mxu0
    %v880 = vadd.f32 %v811, %v879
    %881 = vmatmul.bf16.gmra.mxu0 %v602
    %v882 = vpop.f32.mrf.mxu0
    %v883 = vadd.f32 %v814, %v882
    %v884 = vpop.f32.mrf.mxu0
    %v885 = vadd.f32 %v816, %v884
    %886 = vmatmul.bf16.gmra.mxu0 %v604
    %v887 = vpop.f32.mrf.mxu0
    %v888 = vadd.f32 %v819, %v887
    %v889 = vpop.f32.mrf.mxu0
    %v890 = vadd.f32 %v821, %v889
    %891 = vdwg.mxu0
    %892 = vmatpush.bf16.msra.mxu0 %v553
    %893 = vmatpush.bf16.msra.mxu0 %v550
    %894 = vmatpush.bf16.msra.mxu0 %v547
    %895 = vmatpush.bf16.msra.mxu0 %v544
    %896 = vmatpush.bf16.msra.mxu0 %v541
    %897 = vmatpush.bf16.msra.mxu0 %v538
    %898 = vmatpush.bf16.msra.mxu0 %v535
    %899 = vmatpush.bf16.msra.mxu0 %v532
    %900 = vmatmul.bf16.gmra.mxu0 %v361
    %v901 = vpop.f32.mrf.mxu0
    %v902 = vadd.f32 %v436, %v901
    %v903 = vpop.f32.mrf.mxu0
    %v904 = vadd.f32 %v436, %v903
    %905 = vmatmul.bf16.gmra.mxu0 %v364
    %v906 = vpop.f32.mrf.mxu0
    %v907 = vadd.f32 %v436, %v906
    %v908 = vpop.f32.mrf.mxu0
    %v909 = vadd.f32 %v436, %v908
    %910 = vmatmul.bf16.gmra.mxu0 %v367
    %v911 = vpop.f32.mrf.mxu0
    %v912 = vadd.f32 %v436, %v911
    %v913 = vpop.f32.mrf.mxu0
    %v914 = vadd.f32 %v436, %v913
    %915 = vmatmul.bf16.gmra.mxu0 %v370
    %v916 = vpop.f32.mrf.mxu0
    %v917 = vadd.f32 %v436, %v916
    %v918 = vpop.f32.mrf.mxu0
    %v919 = vadd.f32 %v436, %v918
    %920 = vmatmul.bf16.gmra.mxu0 %v373
    %v921 = vpop.f32.mrf.mxu0
    %v922 = vadd.f32 %v436, %v921
    %v923 = vpop.f32.mrf.mxu0
    %v924 = vadd.f32 %v436, %v923
    %925 = vmatmul.bf16.gmra.mxu0 %v376
    %v926 = vpop.f32.mrf.mxu0
    %v927 = vadd.f32 %v436, %v926
    %v928 = vpop.f32.mrf.mxu0
    %v929 = vadd.f32 %v436, %v928
    %930 = vmatmul.bf16.gmra.mxu0 %v379
    %v931 = vpop.f32.mrf.mxu0
    %v932 = vadd.f32 %v436, %v931
    %v933 = vpop.f32.mrf.mxu0
    %v934 = vadd.f32 %v436, %v933
    %935 = vmatmul.bf16.gmra.mxu0 %v382
    %v936 = vpop.f32.mrf.mxu0
    %v937 = vadd.f32 %v436, %v936
    %v938 = vpop.f32.mrf.mxu0
    %v939 = vadd.f32 %v436, %v938
    %940 = vmatmul.bf16.gmra.mxu0 %v385
    %v941 = vpop.f32.mrf.mxu0
    %v942 = vadd.f32 %v436, %v941
    %v943 = vpop.f32.mrf.mxu0
    %v944 = vadd.f32 %v436, %v943
    %945 = vmatmul.bf16.gmra.mxu0 %v388
    %v946 = vpop.f32.mrf.mxu0
    %v947 = vadd.f32 %v436, %v946
    %v948 = vpop.f32.mrf.mxu0
    %v949 = vadd.f32 %v436, %v948
    %950 = vmatmul.bf16.gmra.mxu0 %v391
    %v951 = vpop.f32.mrf.mxu0
    %v952 = vadd.f32 %v436, %v951
    %v953 = vpop.f32.mrf.mxu0
    %v954 = vadd.f32 %v436, %v953
    %955 = vmatmul.bf16.gmra.mxu0 %v394
    %v956 = vpop.f32.mrf.mxu0
    %v957 = vadd.f32 %v436, %v956
    %v958 = vpop.f32.mrf.mxu0
    %v959 = vadd.f32 %v436, %v958
    %960 = vdwg.mxu0
    %961 = vmatpush.bf16.msra.mxu0 0
    %962 = vmatpush.bf16.msra.mxu0 0
    %963 = vmatpush.bf16.msra.mxu0 0
    %964 = vmatpush.bf16.msra.mxu0 0
    %965 = vmatpush.bf16.msra.mxu0 0
    %966 = vmatpush.bf16.msra.mxu0 0
    %967 = vmatpush.bf16.msra.mxu0 0
    %968 = vmatpush.bf16.msra.mxu0 %v614
    %969 = vmatmul.bf16.gmra.mxu0 %v582
    %v970 = vpop.f32.mrf.mxu0
    %v971 = vadd.f32 %v902, %v970
    %v972 = vpop.f32.mrf.mxu0
    %v973 = vadd.f32 %v904, %v972
    %974 = vmatmul.bf16.gmra.mxu0 %v584
    %v975 = vpop.f32.mrf.mxu0
    %v976 = vadd.f32 %v907, %v975
    %v977 = vpop.f32.mrf.mxu0
    %v978 = vadd.f32 %v909, %v977
    %979 = vmatmul.bf16.gmra.mxu0 %v586
    %v980 = vpop.f32.mrf.mxu0
    %v981 = vadd.f32 %v912, %v980
    %v982 = vpop.f32.mrf.mxu0
    %v983 = vadd.f32 %v914, %v982
    %984 = vmatmul.bf16.gmra.mxu0 %v588
    %v985 = vpop.f32.mrf.mxu0
    %v986 = vadd.f32 %v917, %v985
    %v987 = vpop.f32.mrf.mxu0
    %v988 = vadd.f32 %v919, %v987
    %989 = vmatmul.bf16.gmra.mxu0 %v590
    %v990 = vpop.f32.mrf.mxu0
    %v991 = vadd.f32 %v922, %v990
    %v992 = vpop.f32.mrf.mxu0
    %v993 = vadd.f32 %v924, %v992
    %994 = vmatmul.bf16.gmra.mxu0 %v592
    %v995 = vpop.f32.mrf.mxu0
    %v996 = vadd.f32 %v927, %v995
    %v997 = vpop.f32.mrf.mxu0
    %v998 = vadd.f32 %v929, %v997
    %999 = vmatmul.bf16.gmra.mxu0 %v594
    %v1000 = vpop.f32.mrf.mxu0
    %v1001 = vadd.f32 %v932, %v1000
    %v1002 = vpop.f32.mrf.mxu0
    %v1003 = vadd.f32 %v934, %v1002
    %1004 = vmatmul.bf16.gmra.mxu0 %v596
    %v1005 = vpop.f32.mrf.mxu0
    %v1006 = vadd.f32 %v937, %v1005
    %v1007 = vpop.f32.mrf.mxu0
    %v1008 = vadd.f32 %v939, %v1007
    %1009 = vmatmul.bf16.gmra.mxu0 %v598
    %v1010 = vpop.f32.mrf.mxu0
    %v1011 = vadd.f32 %v942, %v1010
    %v1012 = vpop.f32.mrf.mxu0
    %v1013 = vadd.f32 %v944, %v1012
    %1014 = vmatmul.bf16.gmra.mxu0 %v600
    %v1015 = vpop.f32.mrf.mxu0
    %v1016 = vadd.f32 %v947, %v1015
    %v1017 = vpop.f32.mrf.mxu0
    %v1018 = vadd.f32 %v949, %v1017
    %1019 = vmatmul.bf16.gmra.mxu0 %v602
    %v1020 = vpop.f32.mrf.mxu0
    %v1021 = vadd.f32 %v952, %v1020
    %v1022 = vpop.f32.mrf.mxu0
    %v1023 = vadd.f32 %v954, %v1022
    %1024 = vmatmul.bf16.gmra.mxu0 %v604
    %v1025 = vpop.f32.mrf.mxu0
    %v1026 = vadd.f32 %v957, %v1025
    %v1027 = vpop.f32.mrf.mxu0
    %v1028 = vadd.f32 %v959, %v1027
    %1029 = vdwg.mxu0
    %1102 = vrot.lane.b32.xlu0 %v695, 112
    %v1103 = vpop.permute.xlu0 %1102
    %1104 = vrot.lane.b32.xlu0 %v833, 112
    %v1105 = vpop.permute.xlu0 %1104
    %1106 = vrot.lane.b32.xlu0 %v971, 112
    %v1107 = vpop.permute.xlu0 %1106
    %1108 = vrot.lane.b32.xlu0 %v697, 112
    %v1109 = vpop.permute.xlu0 %1108
    %1110 = vrot.lane.b32.xlu0 %v835, 112
    %v1111 = vpop.permute.xlu0 %1110
    %1112 = vrot.lane.b32.xlu0 %v973, 112
    %v1113 = vpop.permute.xlu0 %1112
    %1114 = vrot.lane.b32.xlu0 %v700, 112
    %v1115 = vpop.permute.xlu0 %1114
    %1116 = vrot.lane.b32.xlu0 %v838, 112
    %v1117 = vpop.permute.xlu0 %1116
    %1118 = vrot.lane.b32.xlu0 %v976, 112
    %v1119 = vpop.permute.xlu0 %1118
    %1120 = vrot.lane.b32.xlu0 %v702, 112
    %v1121 = vpop.permute.xlu0 %1120
    %1122 = vrot.lane.b32.xlu0 %v840, 112
    %v1123 = vpop.permute.xlu0 %1122
    %1124 = vrot.lane.b32.xlu0 %v978, 112
    %v1125 = vpop.permute.xlu0 %1124
    %1126 = vrot.lane.b32.xlu0 %v705, 112
    %v1127 = vpop.permute.xlu0 %1126
    %1128 = vrot.lane.b32.xlu0 %v843, 112
    %v1129 = vpop.permute.xlu0 %1128
    %1130 = vrot.lane.b32.xlu0 %v981, 112
    %v1131 = vpop.permute.xlu0 %1130
    %1132 = vrot.lane.b32.xlu0 %v707, 112
    %v1133 = vpop.permute.xlu0 %1132
    %1134 = vrot.lane.b32.xlu0 %v845, 112
    %v1135 = vpop.permute.xlu0 %1134
    %1136 = vrot.lane.b32.xlu0 %v983, 112
    %v1137 = vpop.permute.xlu0 %1136
    %1138 = vrot.lane.b32.xlu0 %v710, 112
    %v1139 = vpop.permute.xlu0 %1138
    %1140 = vrot.lane.b32.xlu0 %v848, 112
    %v1141 = vpop.permute.xlu0 %1140
    %1142 = vrot.lane.b32.xlu0 %v986, 112
    %v1143 = vpop.permute.xlu0 %1142
    %1144 = vrot.lane.b32.xlu0 %v712, 112
    %v1145 = vpop.permute.xlu0 %1144
    %1146 = vrot.lane.b32.xlu0 %v850, 112
    %v1147 = vpop.permute.xlu0 %1146
    %1148 = vrot.lane.b32.xlu0 %v988, 112
    %v1149 = vpop.permute.xlu0 %1148
    %1150 = vrot.lane.b32.xlu0 %v715, 112
    %v1151 = vpop.permute.xlu0 %1150
    %1152 = vrot.lane.b32.xlu0 %v853, 112
    %v1153 = vpop.permute.xlu0 %1152
    %1154 = vrot.lane.b32.xlu0 %v991, 112
    %v1155 = vpop.permute.xlu0 %1154
    %1156 = vrot.lane.b32.xlu0 %v717, 112
    %v1157 = vpop.permute.xlu0 %1156
    %1158 = vrot.lane.b32.xlu0 %v855, 112
    %v1159 = vpop.permute.xlu0 %1158
    %1160 = vrot.lane.b32.xlu0 %v993, 112
    %v1161 = vpop.permute.xlu0 %1160
    %1162 = vrot.lane.b32.xlu0 %v720, 112
    %v1163 = vpop.permute.xlu0 %1162
    %1164 = vrot.lane.b32.xlu0 %v858, 112
    %v1165 = vpop.permute.xlu0 %1164
    %1166 = vrot.lane.b32.xlu0 %v996, 112
    %v1167 = vpop.permute.xlu0 %1166
    %1168 = vrot.lane.b32.xlu0 %v722, 112
    %v1169 = vpop.permute.xlu0 %1168
    %1170 = vrot.lane.b32.xlu0 %v860, 112
    %v1171 = vpop.permute.xlu0 %1170
    %1172 = vrot.lane.b32.xlu0 %v998, 112
    %v1173 = vpop.permute.xlu0 %1172
    %1174 = vrot.lane.b32.xlu0 %v725, 112
    %v1175 = vpop.permute.xlu0 %1174
    %1176 = vrot.lane.b32.xlu0 %v863, 112
    %v1177 = vpop.permute.xlu0 %1176
    %1178 = vrot.lane.b32.xlu0 %v1001, 112
    %v1179 = vpop.permute.xlu0 %1178
    %1180 = vrot.lane.b32.xlu0 %v727, 112
    %v1181 = vpop.permute.xlu0 %1180
    %1182 = vrot.lane.b32.xlu0 %v865, 112
    %v1183 = vpop.permute.xlu0 %1182
    %1184 = vrot.lane.b32.xlu0 %v1003, 112
    %v1185 = vpop.permute.xlu0 %1184
    %1186 = vrot.lane.b32.xlu0 %v730, 112
    %v1187 = vpop.permute.xlu0 %1186
    %1188 = vrot.lane.b32.xlu0 %v868, 112
    %v1189 = vpop.permute.xlu0 %1188
    %1190 = vrot.lane.b32.xlu0 %v1006, 112
    %v1191 = vpop.permute.xlu0 %1190
    %1192 = vrot.lane.b32.xlu0 %v732, 112
    %v1193 = vpop.permute.xlu0 %1192
    %1194 = vrot.lane.b32.xlu0 %v870, 112
    %v1195 = vpop.permute.xlu0 %1194
    %1196 = vrot.lane.b32.xlu0 %v1008, 112
    %v1197 = vpop.permute.xlu0 %1196
    %1198 = vrot.lane.b32.xlu0 %v735, 112
    %v1199 = vpop.permute.xlu0 %1198
    %1200 = vrot.lane.b32.xlu0 %v873, 112
    %v1201 = vpop.permute.xlu0 %1200
    %1202 = vrot.lane.b32.xlu0 %v1011, 112
    %v1203 = vpop.permute.xlu0 %1202
    %1204 = vrot.lane.b32.xlu0 %v737, 112
    %v1205 = vpop.permute.xlu0 %1204
    %1206 = vrot.lane.b32.xlu0 %v875, 112
    %v1207 = vpop.permute.xlu0 %1206
    %1208 = vrot.lane.b32.xlu0 %v1013, 112
    %v1209 = vpop.permute.xlu0 %1208
    %1210 = vrot.lane.b32.xlu0 %v740, 112
    %v1211 = vpop.permute.xlu0 %1210
    %1212 = vrot.lane.b32.xlu0 %v878, 112
    %v1213 = vpop.permute.xlu0 %1212
    %1214 = vrot.lane.b32.xlu0 %v1016, 112
    %v1215 = vpop.permute.xlu0 %1214
    %1216 = vrot.lane.b32.xlu0 %v742, 112
    %v1217 = vpop.permute.xlu0 %1216
    %1218 = vrot.lane.b32.xlu0 %v880, 112
    %v1219 = vpop.permute.xlu0 %1218
    %1220 = vrot.lane.b32.xlu0 %v1018, 112
    %v1221 = vpop.permute.xlu0 %1220
    %1222 = vrot.lane.b32.xlu0 %v745, 112
    %v1223 = vpop.permute.xlu0 %1222
    %1224 = vrot.lane.b32.xlu0 %v883, 112
    %v1225 = vpop.permute.xlu0 %1224
    %1226 = vrot.lane.b32.xlu0 %v1021, 112
    %v1227 = vpop.permute.xlu0 %1226
    %1228 = vrot.lane.b32.xlu0 %v747, 112
    %v1229 = vpop.permute.xlu0 %1228
    %1230 = vrot.lane.b32.xlu0 %v885, 112
    %v1231 = vpop.permute.xlu0 %1230
    %1232 = vrot.lane.b32.xlu0 %v1023, 112
    %v1233 = vpop.permute.xlu0 %1232
    %1234 = vrot.lane.b32.xlu0 %v750, 112
    %v1235 = vpop.permute.xlu0 %1234
    %1236 = vrot.lane.b32.xlu0 %v888, 112
    %v1237 = vpop.permute.xlu0 %1236
    %1238 = vrot.lane.b32.xlu0 %v1026, 112
    %v1239 = vpop.permute.xlu0 %1238
    %1240 = vrot.lane.b32.xlu0 %v752, 112
    %v1241 = vpop.permute.xlu0 %1240
    %1242 = vrot.lane.b32.xlu0 %v890, 112
    %v1243 = vpop.permute.xlu0 %1242
    %1244 = vrot.lane.b32.xlu0 %v1028, 112
    %v1245 = vpop.permute.xlu0 %1244
    %v1246 = vsel %vm359, %v1103, %v1105
    %v1247 = vsel %vm359, %v1105, %v1107
    %v1248 = vsel %vm359, %v1109, %v1111
    %v1249 = vsel %vm359, %v1111, %v1113
    %v1250 = vsel %vm359, %v1115, %v1117
    %v1251 = vsel %vm359, %v1117, %v1119
    %v1252 = vsel %vm359, %v1121, %v1123
    %v1253 = vsel %vm359, %v1123, %v1125
    %v1254 = vsel %vm359, %v1127, %v1129
    %v1255 = vsel %vm359, %v1129, %v1131
    %v1256 = vsel %vm359, %v1133, %v1135
    %v1257 = vsel %vm359, %v1135, %v1137
    %v1258 = vsel %vm359, %v1139, %v1141
    %v1259 = vsel %vm359, %v1141, %v1143
    %v1260 = vsel %vm359, %v1145, %v1147
    %v1261 = vsel %vm359, %v1147, %v1149
    %v1262 = vsel %vm359, %v1151, %v1153
    %v1263 = vsel %vm359, %v1153, %v1155
    %v1264 = vsel %vm359, %v1157, %v1159
    %v1265 = vsel %vm359, %v1159, %v1161
    %v1266 = vsel %vm359, %v1163, %v1165
    %v1267 = vsel %vm359, %v1165, %v1167
    %v1268 = vsel %vm359, %v1169, %v1171
    %v1269 = vsel %vm359, %v1171, %v1173
    %v1270 = vsel %vm359, %v1175, %v1177
    %v1271 = vsel %vm359, %v1177, %v1179
    %v1272 = vsel %vm359, %v1181, %v1183
    %v1273 = vsel %vm359, %v1183, %v1185
    %v1274 = vsel %vm359, %v1187, %v1189
    %v1275 = vsel %vm359, %v1189, %v1191
    %v1276 = vsel %vm359, %v1193, %v1195
    %v1277 = vsel %vm359, %v1195, %v1197
    %v1278 = vsel %vm359, %v1199, %v1201
    %v1279 = vsel %vm359, %v1201, %v1203
    %v1280 = vsel %vm359, %v1205, %v1207
    %v1281 = vsel %vm359, %v1207, %v1209
    %v1282 = vsel %vm359, %v1211, %v1213
    %v1283 = vsel %vm359, %v1213, %v1215
    %v1284 = vsel %vm359, %v1217, %v1219
    %v1285 = vsel %vm359, %v1219, %v1221
    %v1286 = vsel %vm359, %v1223, %v1225
    %v1287 = vsel %vm359, %v1225, %v1227
    %v1288 = vsel %vm359, %v1229, %v1231
    %v1289 = vsel %vm359, %v1231, %v1233
    %v1290 = vsel %vm359, %v1235, %v1237
    %v1291 = vsel %vm359, %v1237, %v1239
    %v1292 = vsel %vm359, %v1241, %v1243
    %v1293 = vsel %vm359, %v1243, %v1245
    %v1390 = vsel %vm359, %v1107, %v1103
    %v1391 = vsel %vm359, %v1113, %v1109
    %v1392 = vsel %vm359, %v1119, %v1115
    %v1393 = vsel %vm359, %v1125, %v1121
    %v1394 = vsel %vm359, %v1131, %v1127
    %v1395 = vsel %vm359, %v1137, %v1133
    %v1396 = vsel %vm359, %v1143, %v1139
    %v1397 = vsel %vm359, %v1149, %v1145
    %v1398 = vsel %vm359, %v1155, %v1151
    %v1399 = vsel %vm359, %v1161, %v1157
    %v1400 = vsel %vm359, %v1167, %v1163
    %v1401 = vsel %vm359, %v1173, %v1169
    %v1402 = vsel %vm359, %v1179, %v1175
    %v1403 = vsel %vm359, %v1185, %v1181
    %v1404 = vsel %vm359, %v1191, %v1187
    %v1405 = vsel %vm359, %v1197, %v1193
    %v1406 = vsel %vm359, %v1203, %v1199
    %v1407 = vsel %vm359, %v1209, %v1205
    %v1408 = vsel %vm359, %v1215, %v1211
    %v1409 = vsel %vm359, %v1221, %v1217
    %v1410 = vsel %vm359, %v1227, %v1223
    %v1411 = vsel %vm359, %v1233, %v1229
    %v1412 = vsel %vm359, %v1239, %v1235
    %v1413 = vsel %vm359, %v1245, %v1241
    %v1414 = vmax.f32 %v695, %v1246
    %v1415 = vmax.f32 %v833, %v1247
    %v1416 = vmax.f32 %v971, %v1390
    %v1417 = vmax.f32 %v697, %v1248
    %v1418 = vmax.f32 %v835, %v1249
    %v1419 = vmax.f32 %v973, %v1391
    %v1420 = vmax.f32 %v700, %v1250
    %v1421 = vmax.f32 %v838, %v1251
    %v1422 = vmax.f32 %v976, %v1392
    %v1423 = vmax.f32 %v702, %v1252
    %v1424 = vmax.f32 %v840, %v1253
    %v1425 = vmax.f32 %v978, %v1393
    %v1426 = vmax.f32 %v705, %v1254
    %v1427 = vmax.f32 %v843, %v1255
    %v1428 = vmax.f32 %v981, %v1394
    %v1429 = vmax.f32 %v707, %v1256
    %v1430 = vmax.f32 %v845, %v1257
    %v1431 = vmax.f32 %v983, %v1395
    %v1432 = vmax.f32 %v710, %v1258
    %v1433 = vmax.f32 %v848, %v1259
    %v1434 = vmax.f32 %v986, %v1396
    %v1435 = vmax.f32 %v712, %v1260
    %v1436 = vmax.f32 %v850, %v1261
    %v1437 = vmax.f32 %v988, %v1397
    %v1438 = vmax.f32 %v715, %v1262
    %v1439 = vmax.f32 %v853, %v1263
    %v1440 = vmax.f32 %v991, %v1398
    %v1441 = vmax.f32 %v717, %v1264
    %v1442 = vmax.f32 %v855, %v1265
    %v1443 = vmax.f32 %v993, %v1399
    %v1444 = vmax.f32 %v720, %v1266
    %v1445 = vmax.f32 %v858, %v1267
    %v1446 = vmax.f32 %v996, %v1400
    %v1447 = vmax.f32 %v722, %v1268
    %v1448 = vmax.f32 %v860, %v1269
    %v1449 = vmax.f32 %v998, %v1401
    %v1450 = vmax.f32 %v725, %v1270
    %v1451 = vmax.f32 %v863, %v1271
    %v1452 = vmax.f32 %v1001, %v1402
    %v1453 = vmax.f32 %v727, %v1272
    %v1454 = vmax.f32 %v865, %v1273
    %v1455 = vmax.f32 %v1003, %v1403
    %v1456 = vmax.f32 %v730, %v1274
    %v1457 = vmax.f32 %v868, %v1275
    %v1458 = vmax.f32 %v1006, %v1404
    %v1459 = vmax.f32 %v732, %v1276
    %v1460 = vmax.f32 %v870, %v1277
    %v1461 = vmax.f32 %v1008, %v1405
    %v1462 = vmax.f32 %v735, %v1278
    %v1463 = vmax.f32 %v873, %v1279
    %v1464 = vmax.f32 %v1011, %v1406
    %v1465 = vmax.f32 %v737, %v1280
    %v1466 = vmax.f32 %v875, %v1281
    %v1467 = vmax.f32 %v1013, %v1407
    %v1468 = vmax.f32 %v740, %v1282
    %v1469 = vmax.f32 %v878, %v1283
    %v1470 = vmax.f32 %v1016, %v1408
    %v1471 = vmax.f32 %v742, %v1284
    %v1472 = vmax.f32 %v880, %v1285
    %v1473 = vmax.f32 %v1018, %v1409
    %v1474 = vmax.f32 %v745, %v1286
    %v1475 = vmax.f32 %v883, %v1287
    %v1476 = vmax.f32 %v1021, %v1410
    %v1477 = vmax.f32 %v747, %v1288
    %v1478 = vmax.f32 %v885, %v1289
    %v1479 = vmax.f32 %v1023, %v1411
    %v1480 = vmax.f32 %v750, %v1290
    %v1481 = vmax.f32 %v888, %v1291
    %v1482 = vmax.f32 %v1026, %v1412
    %v1483 = vmax.f32 %v752, %v1292
    %v1484 = vmax.f32 %v890, %v1293
    %v1485 = vmax.f32 %v1028, %v1413
    %v1486 = vmax.f32 %v1414, %v1417
    %v1487 = vmax.f32 %v1415, %v1418
    %v1488 = vmax.f32 %v1416, %v1419
    %v1489 = vmax.f32 %v1420, %v1423
    %v1490 = vmax.f32 %v1421, %v1424
    %v1491 = vmax.f32 %v1422, %v1425
    %v1492 = vmax.f32 %v1426, %v1429
    %v1493 = vmax.f32 %v1427, %v1430
    %v1494 = vmax.f32 %v1428, %v1431
    %v1495 = vmax.f32 %v1432, %v1435
    %v1496 = vmax.f32 %v1433, %v1436
    %v1497 = vmax.f32 %v1434, %v1437
    %v1498 = vmax.f32 %v1438, %v1441
    %v1499 = vmax.f32 %v1439, %v1442
    %v1500 = vmax.f32 %v1440, %v1443
    %v1501 = vmax.f32 %v1444, %v1447
    %v1502 = vmax.f32 %v1445, %v1448
    %v1503 = vmax.f32 %v1446, %v1449
    %v1504 = vmax.f32 %v1450, %v1453
    %v1505 = vmax.f32 %v1451, %v1454
    %v1506 = vmax.f32 %v1452, %v1455
    %v1507 = vmax.f32 %v1456, %v1459
    %v1508 = vmax.f32 %v1457, %v1460
    %v1509 = vmax.f32 %v1458, %v1461
    %v1510 = vmax.f32 %v1462, %v1465
    %v1511 = vmax.f32 %v1463, %v1466
    %v1512 = vmax.f32 %v1464, %v1467
    %v1513 = vmax.f32 %v1468, %v1471
    %v1514 = vmax.f32 %v1469, %v1472
    %v1515 = vmax.f32 %v1470, %v1473
    %v1516 = vmax.f32 %v1474, %v1477
    %v1517 = vmax.f32 %v1475, %v1478
    %v1518 = vmax.f32 %v1476, %v1479
    %v1519 = vmax.f32 %v1480, %v1483
    %v1520 = vmax.f32 %v1481, %v1484
    %v1521 = vmax.f32 %v1482, %v1485
    %v1522 = vmax.f32 %v1486, 0.0
    %v1523 = vmax.f32 %v1487, 0.0
    %v1524 = vmax.f32 %v1488, 0.0
    %v1525 = vmax.f32 %v1489, 0.0
    %v1526 = vmax.f32 %v1490, 0.0
    %v1527 = vmax.f32 %v1491, 0.0
    %v1528 = vmax.f32 %v1492, 0.0
    %v1529 = vmax.f32 %v1493, 0.0
    %v1530 = vmax.f32 %v1494, 0.0
    %v1531 = vmax.f32 %v1495, 0.0
    %v1532 = vmax.f32 %v1496, 0.0
    %v1533 = vmax.f32 %v1497, 0.0
    %v1534 = vmax.f32 %v1498, 0.0
    %v1535 = vmax.f32 %v1499, 0.0
    %v1536 = vmax.f32 %v1500, 0.0
    %v1537 = vmax.f32 %v1501, 0.0
    %v1538 = vmax.f32 %v1502, 0.0
    %v1539 = vmax.f32 %v1503, 0.0
    %v1540 = vmax.f32 %v1504, 0.0
    %v1541 = vmax.f32 %v1505, 0.0
    %v1542 = vmax.f32 %v1506, 0.0
    %v1543 = vmax.f32 %v1507, 0.0
    %v1544 = vmax.f32 %v1508, 0.0
    %v1545 = vmax.f32 %v1509, 0.0
    %v1546 = vmax.f32 %v1510, 0.0
    %v1547 = vmax.f32 %v1511, 0.0
    %v1548 = vmax.f32 %v1512, 0.0
    %v1549 = vmax.f32 %v1513, 0.0
    %v1550 = vmax.f32 %v1514, 0.0
    %v1551 = vmax.f32 %v1515, 0.0
    %v1552 = vmax.f32 %v1516, 0.0
    %v1553 = vmax.f32 %v1517, 0.0
    %v1554 = vmax.f32 %v1518, 0.0
    %v1555 = vmax.f32 %v1519, 0.0
    %v1556 = vmax.f32 %v1520, 0.0
    %v1557 = vmax.f32 %v1521, 0.0
    %v1558 = vpack.c.bf16 %v1523, %v1522
    %v1559 = vpack.c.bf16 %v1524, %v1524
    %v1560 = vpack.c.bf16 %v1526, %v1525
    %v1561 = vpack.c.bf16 %v1527, %v1527
    %v1562 = vpack.c.bf16 %v1529, %v1528
    %v1563 = vpack.c.bf16 %v1530, %v1530
    %v1564 = vpack.c.bf16 %v1532, %v1531
    %v1565 = vpack.c.bf16 %v1533, %v1533
    %v1566 = vpack.c.bf16 %v1535, %v1534
    %v1567 = vpack.c.bf16 %v1536, %v1536
    %v1568 = vpack.c.bf16 %v1538, %v1537
    %v1569 = vpack.c.bf16 %v1539, %v1539
    %v1570 = vpack.c.bf16 %v1541, %v1540
    %v1571 = vpack.c.bf16 %v1542, %v1542
    %v1572 = vpack.c.bf16 %v1544, %v1543
    %v1573 = vpack.c.bf16 %v1545, %v1545
    %v1574 = vpack.c.bf16 %v1547, %v1546
    %v1575 = vpack.c.bf16 %v1548, %v1548
    %v1576 = vpack.c.bf16 %v1550, %v1549
    %v1577 = vpack.c.bf16 %v1551, %v1551
    %v1578 = vpack.c.bf16 %v1553, %v1552
    %v1579 = vpack.c.bf16 %v1554, %v1554
    %v1580 = vpack.c.bf16 %v1556, %v1555
    %v1581 = vpack.c.bf16 %v1557, %v1557
    %v1598 = vunpack.c.l.b16 %v1558
    %v1599 = vunpack.c.h.b16 %v1558
    %v1600 = vunpack.c.l.b16 %v1559
    %v1601 = vunpack.c.l.b16 %v1560
    %v1602 = vunpack.c.h.b16 %v1560
    %v1603 = vunpack.c.l.b16 %v1561
    %v1604 = vunpack.c.l.b16 %v1562
    %v1605 = vunpack.c.h.b16 %v1562
    %v1606 = vunpack.c.l.b16 %v1563
    %v1607 = vunpack.c.l.b16 %v1564
    %v1608 = vunpack.c.h.b16 %v1564
    %v1609 = vunpack.c.l.b16 %v1565
    %v1610 = vunpack.c.l.b16 %v1566
    %v1611 = vunpack.c.h.b16 %v1566
    %v1612 = vunpack.c.l.b16 %v1567
    %v1613 = vunpack.c.l.b16 %v1568
    %v1614 = vunpack.c.h.b16 %v1568
    %v1615 = vunpack.c.l.b16 %v1569
    %v1616 = vunpack.c.l.b16 %v1570
    %v1617 = vunpack.c.h.b16 %v1570
    %v1618 = vunpack.c.l.b16 %v1571
    %v1619 = vunpack.c.l.b16 %v1572
    %v1620 = vunpack.c.h.b16 %v1572
    %v1621 = vunpack.c.l.b16 %v1573
    %v1622 = vpack.c.b16 %v1601, %v1598
    %v1623 = vpack.c.b16 %v1602, %v1599
    %v1624 = vpack.c.b16 %v1603, %v1600
    %v1625 = vpack.c.b16 %v1607, %v1604
    %v1626 = vpack.c.b16 %v1608, %v1605
    %v1627 = vpack.c.b16 %v1609, %v1606
    %v1628 = vpack.c.b16 %v1613, %v1610
    %v1629 = vpack.c.b16 %v1614, %v1611
    %v1630 = vpack.c.b16 %v1615, %v1612
    %v1631 = vpack.c.b16 %v1619, %v1616
    %v1632 = vpack.c.b16 %v1620, %v1617
    %v1633 = vpack.c.b16 %v1621, %v1618
    %v1648 = vunpack.c.l.b16 %v1574
    %v1649 = vunpack.c.h.b16 %v1574
    %v1650 = vunpack.c.l.b16 %v1575
    %v1651 = vpack.c.b16 %v1604, %v1601
    %v1652 = vpack.c.b16 %v1605, %v1602
    %v1653 = vpack.c.b16 %v1606, %v1603
    %v1654 = vpack.c.b16 %v1610, %v1607
    %v1655 = vpack.c.b16 %v1611, %v1608
    %v1656 = vpack.c.b16 %v1612, %v1609
    %v1657 = vpack.c.b16 %v1616, %v1613
    %v1658 = vpack.c.b16 %v1617, %v1614
    %v1659 = vpack.c.b16 %v1618, %v1615
    %v1660 = vpack.c.b16 %v1648, %v1619
    %v1661 = vpack.c.b16 %v1649, %v1620
    %v1662 = vpack.c.b16 %v1650, %v1621
    %v1677 = vunpack.c.l.b16 %v1576
    %v1678 = vunpack.c.h.b16 %v1576
    %v1679 = vunpack.c.l.b16 %v1577
    %v1680 = vpack.c.b16 %v1677, %v1648
    %v1681 = vpack.c.b16 %v1678, %v1649
    %v1682 = vpack.c.b16 %v1679, %v1650
    %v1688 = vunpack.c.l.b16 %v1578
    %v1689 = vunpack.c.h.b16 %v1578
    %v1690 = vunpack.c.l.b16 %v1579
    %v1691 = vpack.c.b16 %v1688, %v1677
    %v1692 = vpack.c.b16 %v1689, %v1678
    %v1693 = vpack.c.b16 %v1690, %v1679
    %v1699 = vunpack.c.l.b16 %v1580
    %v1700 = vunpack.c.h.b16 %v1580
    %v1701 = vunpack.c.l.b16 %v1581
    %v1702 = vpack.c.b16 %v1699, %v1688
    %v1703 = vpack.c.b16 %v1700, %v1689
    %v1704 = vpack.c.b16 %v1701, %v1690
    %v1708 = vld [vmem:[#allocation2] sm:$0xff]
    %v1709 = vld [vmem:[#allocation2 + $0x8] sm:$0xff]
    %v1710 = vld [vmem:[#allocation2 + $0x10] sm:$0xff]
    %v1711 = vld [vmem:[#allocation2 + $0x18] sm:$0xff]
    %v1712 = vld [vmem:[#allocation2 + $0x20] sm:$0xff]
    %v1713 = vld [vmem:[#allocation2 + $0x28] sm:$0xff]
    %v1714 = vld [vmem:[#allocation2 + $0x30] sm:$0xff]
    %v1715 = vld [vmem:[#allocation2 + $0x38] sm:$0xff]
    %v1716 = vld [vmem:[#allocation2 + $0x40] sm:$0xff]
    %v1717 = vld [vmem:[#allocation2 + $0x48] sm:$0xff]
    %v1718 = vld [vmem:[#allocation2 + $0x50] sm:$0xff]
    %v1719 = vld [vmem:[#allocation2 + $0x58] sm:$0xff]
    %v1720 = vld [vmem:[#allocation2 + $0x60] sm:$0xff]
    %v1721 = vld [vmem:[#allocation2 + $0x68] sm:$0xff]
    %v1722 = vld [vmem:[#allocation2 + $0x70] sm:$0xff]
    %v1723 = vld [vmem:[#allocation2 + $0x78] sm:$0xff]
    %v1724 = vld [vmem:[#allocation2 + $0x80] sm:$0xff]
    %v1725 = vld [vmem:[#allocation2 + $0x88] sm:$0xff]
    %v1726 = vld [vmem:[#allocation2 + $0x90] sm:$0xff]
    %v1727 = vld [vmem:[#allocation2 + $0x98] sm:$0xff]
    %v1728 = vld [vmem:[#allocation2 + $0xa0] sm:$0xff]
    %v1729 = vld [vmem:[#allocation2 + $0xa8] sm:$0xff]
    %v1730 = vld [vmem:[#allocation2 + $0xb0] sm:$0xff]
    %v1731 = vld [vmem:[#allocation2 + $0xb8] sm:$0xff]
    %v1732 = vld [vmem:[#allocation2 + $0xc0] sm:$0xff]
    %v1733 = vld [vmem:[#allocation2 + $0xc8] sm:$0xff]
    %v1734 = vld [vmem:[#allocation2 + $0xd0] sm:$0xff]
    %v1735 = vld [vmem:[#allocation2 + $0xd8] sm:$0xff]
    %v1736 = vld [vmem:[#allocation2 + $0xe0] sm:$0xff]
    %v1737 = vld [vmem:[#allocation2 + $0xe8] sm:$0xff]
    %v1738 = vld [vmem:[#allocation2 + $0xf0] sm:$0xff]
    %v1739 = vld [vmem:[#allocation2 + $0xf8] sm:$0xff]
    %v1740 = vld [vmem:[#allocation2 + $0x100] sm:$0xff]
    %v1741 = vld [vmem:[#allocation2 + $0x108] sm:$0xff]
    %v1742 = vld [vmem:[#allocation2 + $0x110] sm:$0xff]
    %v1743 = vld [vmem:[#allocation2 + $0x118] sm:$0xff]
    %v1744 = vld [vmem:[#allocation2 + $0x120] sm:$0xff]
    %v1745 = vld [vmem:[#allocation2 + $0x128] sm:$0xff]
    %v1746 = vld [vmem:[#allocation2 + $0x130] sm:$0xff]
    %v1747 = vld [vmem:[#allocation2 + $0x138] sm:$0xff]
    %v1748 = vld [vmem:[#allocation2 + $0x140] sm:$0xff]
    %v1749 = vld [vmem:[#allocation2 + $0x148] sm:$0xff]
    %v1750 = vld [vmem:[#allocation2 + $0x150] sm:$0xff]
    %v1751 = vld [vmem:[#allocation2 + $0x158] sm:$0xff]
    %v1752 = vld [vmem:[#allocation2 + $0x160] sm:$0xff]
    %v1753 = vld [vmem:[#allocation2 + $0x168] sm:$0xff]
    %v1754 = vld [vmem:[#allocation2 + $0x170] sm:$0xff]
    %v1755 = vld [vmem:[#allocation2 + $0x178] sm:$0xff]
    %v1756 = vld [vmem:[#allocation2 + $0x180] sm:$0xff]
    %v1757 = vld [vmem:[#allocation2 + $0x188] sm:$0xff]
    %v1758 = vld [vmem:[#allocation2 + $0x190] sm:$0xff]
    %v1759 = vld [vmem:[#allocation2 + $0x198] sm:$0xff]
    %v1760 = vld [vmem:[#allocation2 + $0x1a0] sm:$0xff]
    %v1761 = vld [vmem:[#allocation2 + $0x1a8] sm:$0xff]
    %v1762 = vld [vmem:[#allocation2 + $0x1b0] sm:$0xff]
    %v1763 = vld [vmem:[#allocation2 + $0x1b8] sm:$0xff]
    %v1764 = vld [vmem:[#allocation2 + $0x1c0] sm:$0xff]
    %v1765 = vld [vmem:[#allocation2 + $0x1c8] sm:$0xff]
    %v1766 = vld [vmem:[#allocation2 + $0x1d0] sm:$0xff]
    %v1767 = vld [vmem:[#allocation2 + $0x1d8] sm:$0xff]
    %v1768 = vld [vmem:[#allocation2 + $0x1e0] sm:$0xff]
    %v1769 = vld [vmem:[#allocation2 + $0x1e8] sm:$0xff]
    %v1770 = vld [vmem:[#allocation2 + $0x1f0] sm:$0xff]
    %v1771 = vld [vmem:[#allocation2 + $0x1f8] sm:$0xff]
    %v1772 = vld [vmem:[#allocation2 + $0x200] sm:$0xff]
    %v1773 = vld [vmem:[#allocation2 + $0x208] sm:$0xff]
    %v1774 = vld [vmem:[#allocation2 + $0x210] sm:$0xff]
    %v1775 = vld [vmem:[#allocation2 + $0x218] sm:$0xff]
    %v1776 = vld [vmem:[#allocation2 + $0x220] sm:$0xff]
    %v1777 = vld [vmem:[#allocation2 + $0x228] sm:$0xff]
    %v1778 = vld [vmem:[#allocation2 + $0x230] sm:$0xff]
    %v1779 = vld [vmem:[#allocation2 + $0x238] sm:$0xff]
    %v1780 = vld [vmem:[#allocation2 + $0x240] sm:$0xff]
    %v1781 = vld [vmem:[#allocation2 + $0x248] sm:$0xff]
    %v1782 = vld [vmem:[#allocation2 + $0x250] sm:$0xff]
    %v1783 = vld [vmem:[#allocation2 + $0x258] sm:$0xff]
    %v1784 = vld [vmem:[#allocation2 + $0x260] sm:$0xff]
    %v1785 = vld [vmem:[#allocation2 + $0x268] sm:$0xff]
    %v1786 = vld [vmem:[#allocation2 + $0x270] sm:$0xff]
    %v1787 = vld [vmem:[#allocation2 + $0x278] sm:$0xff]
    %v1788 = vld [vmem:[#allocation2 + $0x280] sm:$0xff]
    %v1789 = vld [vmem:[#allocation2 + $0x288] sm:$0xff]
    %v1790 = vld [vmem:[#allocation2 + $0x290] sm:$0xff]
    %v1791 = vld [vmem:[#allocation2 + $0x298] sm:$0xff]
    %v1792 = vld [vmem:[#allocation2 + $0x2a0] sm:$0xff]
    %v1793 = vld [vmem:[#allocation2 + $0x2a8] sm:$0xff]
    %v1794 = vld [vmem:[#allocation2 + $0x2b0] sm:$0xff]
    %v1795 = vld [vmem:[#allocation2 + $0x2b8] sm:$0xff]
    %v1796 = vld [vmem:[#allocation2 + $0x2c0] sm:$0xff]
    %v1797 = vld [vmem:[#allocation2 + $0x2c8] sm:$0xff]
    %v1798 = vld [vmem:[#allocation2 + $0x2d0] sm:$0xff]
    %v1799 = vld [vmem:[#allocation2 + $0x2d8] sm:$0xff]
    %v1800 = vld [vmem:[#allocation2 + $0x2e0] sm:$0xff]
    %v1801 = vld [vmem:[#allocation2 + $0x2e8] sm:$0xff]
    %v1802 = vld [vmem:[#allocation2 + $0x2f0] sm:$0xff]
    %v1803 = vld [vmem:[#allocation2 + $0x2f8] sm:$0xff]
    %v1804 = vld [vmem:[#allocation2 + $0x300] sm:$0xff]
    %v1805 = vld [vmem:[#allocation2 + $0x308] sm:$0xff]
    %v1806 = vld [vmem:[#allocation2 + $0x310] sm:$0xff]
    %v1807 = vld [vmem:[#allocation2 + $0x318] sm:$0xff]
    %v1808 = vld [vmem:[#allocation2 + $0x320] sm:$0xff]
    %v1809 = vld [vmem:[#allocation2 + $0x328] sm:$0xff]
    %v1810 = vld [vmem:[#allocation2 + $0x330] sm:$0xff]
    %v1811 = vld [vmem:[#allocation2 + $0x338] sm:$0xff]
    %v1812 = vld [vmem:[#allocation2 + $0x340] sm:$0xff]
    %v1813 = vld [vmem:[#allocation2 + $0x348] sm:$0xff]
    %v1814 = vld [vmem:[#allocation2 + $0x350] sm:$0xff]
    %v1815 = vld [vmem:[#allocation2 + $0x358] sm:$0xff]
    %v1816 = vld [vmem:[#allocation2 + $0x360] sm:$0xff]
    %v1817 = vld [vmem:[#allocation2 + $0x368] sm:$0xff]
    %v1818 = vld [vmem:[#allocation2 + $0x370] sm:$0xff]
    %v1819 = vld [vmem:[#allocation2 + $0x378] sm:$0xff]
    %v1820 = vld [vmem:[#allocation2 + $0x380] sm:$0xff]
    %v1821 = vld [vmem:[#allocation2 + $0x388] sm:$0xff]
    %v1822 = vld [vmem:[#allocation2 + $0x390] sm:$0xff]
    %v1823 = vld [vmem:[#allocation2 + $0x398] sm:$0xff]
    %v1824 = vld [vmem:[#allocation2 + $0x3a0] sm:$0xff]
    %v1825 = vld [vmem:[#allocation2 + $0x3a8] sm:$0xff]
    %v1826 = vld [vmem:[#allocation2 + $0x3b0] sm:$0xff]
    %v1827 = vld [vmem:[#allocation2 + $0x3b8] sm:$0xff]
    %v1828 = vld [vmem:[#allocation2 + $0x3c0] sm:$0xff]
    %v1829 = vld [vmem:[#allocation2 + $0x3c8] sm:$0xff]
    %v1830 = vld [vmem:[#allocation2 + $0x3d0] sm:$0xff]
    %v1831 = vld [vmem:[#allocation2 + $0x3d8] sm:$0xff]
    %v1832 = vld [vmem:[#allocation2 + $0x3e0] sm:$0xff]
    %v1833 = vld [vmem:[#allocation2 + $0x3e8] sm:$0xff]
    %v1834 = vld [vmem:[#allocation2 + $0x3f0] sm:$0xff]
    %v1835 = vld [vmem:[#allocation2 + $0x3f8] sm:$0xff]
    %v1836 = vld [vmem:[#allocation2 + $0x400] sm:$0xff]
    %v1837 = vld [vmem:[#allocation2 + $0x408] sm:$0xff]
    %v1838 = vld [vmem:[#allocation2 + $0x410] sm:$0xff]
    %v1839 = vld [vmem:[#allocation2 + $0x418] sm:$0xff]
    %v1840 = vld [vmem:[#allocation2 + $0x420] sm:$0xff]
    %v1841 = vld [vmem:[#allocation2 + $0x428] sm:$0xff]
    %v1842 = vld [vmem:[#allocation2 + $0x430] sm:$0xff]
    %v1843 = vld [vmem:[#allocation2 + $0x438] sm:$0xff]
    %v1844 = vld [vmem:[#allocation2 + $0x440] sm:$0xff]
    %v1845 = vld [vmem:[#allocation2 + $0x448] sm:$0xff]
    %v1846 = vld [vmem:[#allocation2 + $0x450] sm:$0xff]
    %v1847 = vld [vmem:[#allocation2 + $0x458] sm:$0xff]
    %v1848 = vld [vmem:[#allocation2 + $0x460] sm:$0xff]
    %v1849 = vld [vmem:[#allocation2 + $0x468] sm:$0xff]
    %v1850 = vld [vmem:[#allocation2 + $0x470] sm:$0xff]
    %v1851 = vld [vmem:[#allocation2 + $0x478] sm:$0xff]
    %v1852 = vld [vmem:[#allocation2 + $0x480] sm:$0xff]
    %v1853 = vld [vmem:[#allocation2 + $0x488] sm:$0xff]
    %v1854 = vld [vmem:[#allocation2 + $0x490] sm:$0xff]
    %v1855 = vld [vmem:[#allocation2 + $0x498] sm:$0xff]
    %v1856 = vld [vmem:[#allocation2 + $0x4a0] sm:$0xff]
    %v1857 = vld [vmem:[#allocation2 + $0x4a8] sm:$0xff]
    %v1858 = vld [vmem:[#allocation2 + $0x4b0] sm:$0xff]
    %v1859 = vld [vmem:[#allocation2 + $0x4b8] sm:$0xff]
    %v1860 = vld [vmem:[#allocation2 + $0x4c0] sm:$0xff]
    %v1861 = vld [vmem:[#allocation2 + $0x4c8] sm:$0xff]
    %v1862 = vld [vmem:[#allocation2 + $0x4d0] sm:$0xff]
    %v1863 = vld [vmem:[#allocation2 + $0x4d8] sm:$0xff]
    %v1864 = vld [vmem:[#allocation2 + $0x4e0] sm:$0xff]
    %v1865 = vld [vmem:[#allocation2 + $0x4e8] sm:$0xff]
    %v1866 = vld [vmem:[#allocation2 + $0x4f0] sm:$0xff]
    %v1867 = vld [vmem:[#allocation2 + $0x4f8] sm:$0xff]
    %v1868 = vld [vmem:[#allocation2 + $0x500] sm:$0xff]
    %v1869 = vld [vmem:[#allocation2 + $0x508] sm:$0xff]
    %v1870 = vld [vmem:[#allocation2 + $0x510] sm:$0xff]
    %v1871 = vld [vmem:[#allocation2 + $0x518] sm:$0xff]
    %v1872 = vld [vmem:[#allocation2 + $0x520] sm:$0xff]
    %v1873 = vld [vmem:[#allocation2 + $0x528] sm:$0xff]
    %v1874 = vld [vmem:[#allocation2 + $0x530] sm:$0xff]
    %v1875 = vld [vmem:[#allocation2 + $0x538] sm:$0xff]
    %v1876 = vld [vmem:[#allocation2 + $0x540] sm:$0xff]
    %v1877 = vld [vmem:[#allocation2 + $0x548] sm:$0xff]
    %v1878 = vld [vmem:[#allocation2 + $0x550] sm:$0xff]
    %v1879 = vld [vmem:[#allocation2 + $0x558] sm:$0xff]
    %v1880 = vld [vmem:[#allocation2 + $0x560] sm:$0xff]
    %v1881 = vld [vmem:[#allocation2 + $0x568] sm:$0xff]
    %v1882 = vld [vmem:[#allocation2 + $0x570] sm:$0xff]
    %v1883 = vld [vmem:[#allocation2 + $0x578] sm:$0xff]
    %v1884 = vld [vmem:[#allocation2 + $0x580] sm:$0xff]
    %v1885 = vld [vmem:[#allocation2 + $0x588] sm:$0xff]
    %v1886 = vld [vmem:[#allocation2 + $0x590] sm:$0xff]
    %v1887 = vld [vmem:[#allocation2 + $0x598] sm:$0xff]
    %v1888 = vld [vmem:[#allocation2 + $0x5a0] sm:$0xff]
    %v1889 = vld [vmem:[#allocation2 + $0x5a8] sm:$0xff]
    %v1890 = vld [vmem:[#allocation2 + $0x5b0] sm:$0xff]
    %v1891 = vld [vmem:[#allocation2 + $0x5b8] sm:$0xff]
    %v1892 = vld [vmem:[#allocation2 + $0x5c0] sm:$0xff]
    %v1893 = vld [vmem:[#allocation2 + $0x5c8] sm:$0xff]
    %v1894 = vld [vmem:[#allocation2 + $0x5d0] sm:$0xff]
    %v1895 = vld [vmem:[#allocation2 + $0x5d8] sm:$0xff]
    %v1896 = vld [vmem:[#allocation2 + $0x5e0] sm:$0xff]
    %v1897 = vld [vmem:[#allocation2 + $0x5e8] sm:$0xff]
    %v1898 = vld [vmem:[#allocation2 + $0x5f0] sm:$0xff]
    %v1899 = vld [vmem:[#allocation2 + $0x5f8] sm:$0xff]
    %v1900 = vld [vmem:[#allocation2 + $0x600] sm:$0xff]
    %v1901 = vld [vmem:[#allocation2 + $0x608] sm:$0xff]
    %v1902 = vld [vmem:[#allocation2 + $0x610] sm:$0xff]
    %v1903 = vld [vmem:[#allocation2 + $0x618] sm:$0xff]
    %v1904 = vld [vmem:[#allocation2 + $0x620] sm:$0xff]
    %v1905 = vld [vmem:[#allocation2 + $0x628] sm:$0xff]
    %v1906 = vld [vmem:[#allocation2 + $0x630] sm:$0xff]
    %v1907 = vld [vmem:[#allocation2 + $0x638] sm:$0xff]
    %v1908 = vld [vmem:[#allocation2 + $0x640] sm:$0xff]
    %v1909 = vld [vmem:[#allocation2 + $0x648] sm:$0xff]
    %v1910 = vld [vmem:[#allocation2 + $0x650] sm:$0xff]
    %v1911 = vld [vmem:[#allocation2 + $0x658] sm:$0xff]
    %v1912 = vld [vmem:[#allocation2 + $0x660] sm:$0xff]
    %v1913 = vld [vmem:[#allocation2 + $0x668] sm:$0xff]
    %v1914 = vld [vmem:[#allocation2 + $0x670] sm:$0xff]
    %v1915 = vld [vmem:[#allocation2 + $0x678] sm:$0xff]
    %v1916 = vld [vmem:[#allocation2 + $0x680] sm:$0xff]
    %v1917 = vld [vmem:[#allocation2 + $0x688] sm:$0xff]
    %v1918 = vld [vmem:[#allocation2 + $0x690] sm:$0xff]
    %v1919 = vld [vmem:[#allocation2 + $0x698] sm:$0xff]
    %v1920 = vld [vmem:[#allocation2 + $0x6a0] sm:$0xff]
    %v1921 = vld [vmem:[#allocation2 + $0x6a8] sm:$0xff]
    %v1922 = vld [vmem:[#allocation2 + $0x6b0] sm:$0xff]
    %v1923 = vld [vmem:[#allocation2 + $0x6b8] sm:$0xff]
    %v1924 = vld [vmem:[#allocation2 + $0x6c0] sm:$0xff]
    %v1925 = vld [vmem:[#allocation2 + $0x6c8] sm:$0xff]
    %v1926 = vld [vmem:[#allocation2 + $0x6d0] sm:$0xff]
    %v1927 = vld [vmem:[#allocation2 + $0x6d8] sm:$0xff]
    %v1928 = vld [vmem:[#allocation2 + $0x6e0] sm:$0xff]
    %v1929 = vld [vmem:[#allocation2 + $0x6e8] sm:$0xff]
    %v1930 = vld [vmem:[#allocation2 + $0x6f0] sm:$0xff]
    %v1931 = vld [vmem:[#allocation2 + $0x6f8] sm:$0xff]
    %v1932 = vld [vmem:[#allocation2 + $0x700] sm:$0xff]
    %v1933 = vld [vmem:[#allocation2 + $0x708] sm:$0xff]
    %v1934 = vld [vmem:[#allocation2 + $0x710] sm:$0xff]
    %v1935 = vld [vmem:[#allocation2 + $0x718] sm:$0xff]
    %v1936 = vld [vmem:[#allocation2 + $0x720] sm:$0xff]
    %v1937 = vld [vmem:[#allocation2 + $0x728] sm:$0xff]
    %v1938 = vld [vmem:[#allocation2 + $0x730] sm:$0xff]
    %v1939 = vld [vmem:[#allocation2 + $0x738] sm:$0xff]
    %v1940 = vld [vmem:[#allocation2 + $0x740] sm:$0xff]
    %v1941 = vld [vmem:[#allocation2 + $0x748] sm:$0xff]
    %v1942 = vld [vmem:[#allocation2 + $0x750] sm:$0xff]
    %v1943 = vld [vmem:[#allocation2 + $0x758] sm:$0xff]
    %v1944 = vld [vmem:[#allocation2 + $0x760] sm:$0xff]
    %v1945 = vld [vmem:[#allocation2 + $0x768] sm:$0xff]
    %v1946 = vld [vmem:[#allocation2 + $0x770] sm:$0xff]
    %v1947 = vld [vmem:[#allocation2 + $0x778] sm:$0xff]
    %v1948 = vld [vmem:[%s4] sm:$0x3]
    %v1950 = vperm.slane %v1948, 0
    %v1951 = vperm.slane %v1948, 1
    %v2194 = vunpack.c.l.b16 %v1708
    %v2195 = vunpack.c.h.b16 %v1708
    %v2196 = vunpack.c.l.b16 %v1709
    %v2197 = vunpack.c.h.b16 %v1709
    %v2198 = vunpack.c.l.b16 %v1710
    %v2199 = vunpack.c.h.b16 %v1710
    %v2200 = vunpack.c.l.b16 %v1711
    %v2201 = vunpack.c.h.b16 %v1711
    %v2202 = vunpack.c.l.b16 %v1712
    %v2203 = vunpack.c.h.b16 %v1712
    %v2204 = vunpack.c.l.b16 %v1713
    %v2205 = vunpack.c.h.b16 %v1713
    %v2206 = vunpack.c.l.b16 %v1714
    %v2207 = vunpack.c.h.b16 %v1714
    %v2208 = vunpack.c.l.b16 %v1715
    %v2209 = vunpack.c.h.b16 %v1715
    %v2210 = vunpack.c.l.b16 %v1716
    %v2211 = vunpack.c.h.b16 %v1716
    %v2212 = vunpack.c.l.b16 %v1717
    %v2213 = vunpack.c.h.b16 %v1717
    %v2214 = vunpack.c.l.b16 %v1718
    %v2215 = vunpack.c.h.b16 %v1718
    %v2216 = vunpack.c.l.b16 %v1719
    %v2217 = vunpack.c.h.b16 %v1719
    %v2218 = vunpack.c.l.b16 %v1720
    %v2219 = vunpack.c.h.b16 %v1720
    %v2220 = vunpack.c.l.b16 %v1721
    %v2221 = vunpack.c.h.b16 %v1721
    %v2222 = vunpack.c.l.b16 %v1722
    %v2223 = vunpack.c.h.b16 %v1722
    %v2224 = vunpack.c.l.b16 %v1723
    %v2225 = vunpack.c.h.b16 %v1723
    %v2226 = vunpack.c.l.b16 %v1724
    %v2227 = vunpack.c.h.b16 %v1724
    %v2228 = vunpack.c.l.b16 %v1725
    %v2229 = vunpack.c.h.b16 %v1725
    %v2230 = vunpack.c.l.b16 %v1726
    %v2231 = vunpack.c.h.b16 %v1726
    %v2232 = vunpack.c.l.b16 %v1727
    %v2233 = vunpack.c.h.b16 %v1727
    %v2234 = vunpack.c.l.b16 %v1728
    %v2235 = vunpack.c.h.b16 %v1728
    %v2236 = vunpack.c.l.b16 %v1729
    %v2237 = vunpack.c.h.b16 %v1729
    %v2238 = vunpack.c.l.b16 %v1730
    %v2239 = vunpack.c.h.b16 %v1730
    %v2240 = vunpack.c.l.b16 %v1731
    %v2241 = vunpack.c.h.b16 %v1731
    %v2242 = vunpack.c.l.b16 %v1732
    %v2243 = vunpack.c.h.b16 %v1732
    %v2244 = vunpack.c.l.b16 %v1733
    %v2245 = vunpack.c.h.b16 %v1733
    %v2246 = vunpack.c.l.b16 %v1734
    %v2247 = vunpack.c.h.b16 %v1734
    %v2248 = vunpack.c.l.b16 %v1735
    %v2249 = vunpack.c.h.b16 %v1735
    %v2250 = vunpack.c.l.b16 %v1736
    %v2251 = vunpack.c.h.b16 %v1736
    %v2252 = vunpack.c.l.b16 %v1737
    %v2253 = vunpack.c.h.b16 %v1737
    %v2254 = vunpack.c.l.b16 %v1738
    %v2255 = vunpack.c.h.b16 %v1738
    %v2256 = vunpack.c.l.b16 %v1739
    %v2257 = vunpack.c.h.b16 %v1739
    %v2258 = vunpack.c.l.b16 %v1740
    %v2259 = vunpack.c.h.b16 %v1740
    %v2260 = vunpack.c.l.b16 %v1741
    %v2261 = vunpack.c.h.b16 %v1741
    %v2262 = vunpack.c.l.b16 %v1742
    %v2263 = vunpack.c.h.b16 %v1742
    %v2264 = vunpack.c.l.b16 %v1743
    %v2265 = vunpack.c.h.b16 %v1743
    %v2266 = vunpack.c.l.b16 %v1744
    %v2267 = vunpack.c.h.b16 %v1744
    %v2268 = vunpack.c.l.b16 %v1745
    %v2269 = vunpack.c.h.b16 %v1745
    %v2270 = vunpack.c.l.b16 %v1746
    %v2271 = vunpack.c.h.b16 %v1746
    %v2272 = vunpack.c.l.b16 %v1747
    %v2273 = vunpack.c.h.b16 %v1747
    %v2274 = vunpack.c.l.b16 %v1748
    %v2275 = vunpack.c.h.b16 %v1748
    %v2276 = vunpack.c.l.b16 %v1749
    %v2277 = vunpack.c.h.b16 %v1749
    %v2278 = vunpack.c.l.b16 %v1750
    %v2279 = vunpack.c.h.b16 %v1750
    %v2280 = vunpack.c.l.b16 %v1751
    %v2281 = vunpack.c.h.b16 %v1751
    %v2282 = vunpack.c.l.b16 %v1752
    %v2283 = vunpack.c.h.b16 %v1752
    %v2284 = vunpack.c.l.b16 %v1753
    %v2285 = vunpack.c.h.b16 %v1753
    %v2286 = vunpack.c.l.b16 %v1754
    %v2287 = vunpack.c.h.b16 %v1754
    %v2288 = vunpack.c.l.b16 %v1755
    %v2289 = vunpack.c.h.b16 %v1755
    %v2290 = vunpack.c.l.b16 %v1756
    %v2291 = vunpack.c.h.b16 %v1756
    %v2292 = vunpack.c.l.b16 %v1757
    %v2293 = vunpack.c.h.b16 %v1757
    %v2294 = vunpack.c.l.b16 %v1758
    %v2295 = vunpack.c.h.b16 %v1758
    %v2296 = vunpack.c.l.b16 %v1759
    %v2297 = vunpack.c.h.b16 %v1759
    %v2298 = vunpack.c.l.b16 %v1760
    %v2299 = vunpack.c.h.b16 %v1760
    %v2300 = vunpack.c.l.b16 %v1761
    %v2301 = vunpack.c.h.b16 %v1761
    %v2302 = vunpack.c.l.b16 %v1762
    %v2303 = vunpack.c.h.b16 %v1762
    %v2304 = vunpack.c.l.b16 %v1763
    %v2305 = vunpack.c.h.b16 %v1763
    %v2306 = vunpack.c.l.b16 %v1764
    %v2307 = vunpack.c.h.b16 %v1764
    %v2308 = vunpack.c.l.b16 %v1765
    %v2309 = vunpack.c.h.b16 %v1765
    %v2310 = vunpack.c.l.b16 %v1766
    %v2311 = vunpack.c.h.b16 %v1766
    %v2312 = vunpack.c.l.b16 %v1767
    %v2313 = vunpack.c.h.b16 %v1767
    %v2314 = vunpack.c.l.b16 %v1768
    %v2315 = vunpack.c.h.b16 %v1768
    %v2316 = vunpack.c.l.b16 %v1769
    %v2317 = vunpack.c.h.b16 %v1769
    %v2318 = vunpack.c.l.b16 %v1770
    %v2319 = vunpack.c.h.b16 %v1770
    %v2320 = vunpack.c.l.b16 %v1771
    %v2321 = vunpack.c.h.b16 %v1771
    %v2322 = vunpack.c.l.b16 %v1772
    %v2323 = vunpack.c.h.b16 %v1772
    %v2324 = vunpack.c.l.b16 %v1773
    %v2325 = vunpack.c.h.b16 %v1773
    %v2326 = vunpack.c.l.b16 %v1774
    %v2327 = vunpack.c.h.b16 %v1774
    %v2328 = vunpack.c.l.b16 %v1775
    %v2329 = vunpack.c.h.b16 %v1775
    %v2330 = vunpack.c.l.b16 %v1776
    %v2331 = vunpack.c.h.b16 %v1776
    %v2332 = vunpack.c.l.b16 %v1777
    %v2333 = vunpack.c.h.b16 %v1777
    %v2334 = vunpack.c.l.b16 %v1778
    %v2335 = vunpack.c.h.b16 %v1778
    %v2336 = vunpack.c.l.b16 %v1779
    %v2337 = vunpack.c.h.b16 %v1779
    %v2338 = vunpack.c.l.b16 %v1780
    %v2339 = vunpack.c.h.b16 %v1780
    %v2340 = vunpack.c.l.b16 %v1781
    %v2341 = vunpack.c.h.b16 %v1781
    %v2342 = vunpack.c.l.b16 %v1782
    %v2343 = vunpack.c.h.b16 %v1782
    %v2344 = vunpack.c.l.b16 %v1783
    %v2345 = vunpack.c.h.b16 %v1783
    %v2346 = vunpack.c.l.b16 %v1784
    %v2347 = vunpack.c.h.b16 %v1784
    %v2348 = vunpack.c.l.b16 %v1785
    %v2349 = vunpack.c.h.b16 %v1785
    %v2350 = vunpack.c.l.b16 %v1786
    %v2351 = vunpack.c.h.b16 %v1786
    %v2352 = vunpack.c.l.b16 %v1787
    %v2353 = vunpack.c.h.b16 %v1787
    %v2354 = vunpack.c.l.b16 %v1788
    %v2355 = vunpack.c.h.b16 %v1788
    %v2356 = vunpack.c.l.b16 %v1789
    %v2357 = vunpack.c.h.b16 %v1789
    %v2358 = vunpack.c.l.b16 %v1790
    %v2359 = vunpack.c.h.b16 %v1790
    %v2360 = vunpack.c.l.b16 %v1791
    %v2361 = vunpack.c.h.b16 %v1791
    %v2362 = vunpack.c.l.b16 %v1792
    %v2363 = vunpack.c.h.b16 %v1792
    %v2364 = vunpack.c.l.b16 %v1793
    %v2365 = vunpack.c.h.b16 %v1793
    %v2366 = vunpack.c.l.b16 %v1794
    %v2367 = vunpack.c.h.b16 %v1794
    %v2368 = vunpack.c.l.b16 %v1795
    %v2369 = vunpack.c.h.b16 %v1795
    %v2370 = vunpack.c.l.b16 %v1796
    %v2371 = vunpack.c.h.b16 %v1796
    %v2372 = vunpack.c.l.b16 %v1797
    %v2373 = vunpack.c.h.b16 %v1797
    %v2374 = vunpack.c.l.b16 %v1798
    %v2375 = vunpack.c.h.b16 %v1798
    %v2376 = vunpack.c.l.b16 %v1799
    %v2377 = vunpack.c.h.b16 %v1799
    %v2378 = vunpack.c.l.b16 %v1800
    %v2379 = vunpack.c.h.b16 %v1800
    %v2380 = vunpack.c.l.b16 %v1801
    %v2381 = vunpack.c.h.b16 %v1801
    %v2382 = vunpack.c.l.b16 %v1802
    %v2383 = vunpack.c.h.b16 %v1802
    %v2384 = vunpack.c.l.b16 %v1803
    %v2385 = vunpack.c.h.b16 %v1803
    %v2386 = vunpack.c.l.b16 %v1804
    %v2387 = vunpack.c.h.b16 %v1804
    %v2388 = vunpack.c.l.b16 %v1805
    %v2389 = vunpack.c.h.b16 %v1805
    %v2390 = vunpack.c.l.b16 %v1806
    %v2391 = vunpack.c.h.b16 %v1806
    %v2392 = vunpack.c.l.b16 %v1807
    %v2393 = vunpack.c.h.b16 %v1807
    %v2394 = vunpack.c.l.b16 %v1808
    %v2395 = vunpack.c.h.b16 %v1808
    %v2396 = vunpack.c.l.b16 %v1809
    %v2397 = vunpack.c.h.b16 %v1809
    %v2398 = vunpack.c.l.b16 %v1810
    %v2399 = vunpack.c.h.b16 %v1810
    %v2400 = vunpack.c.l.b16 %v1811
    %v2401 = vunpack.c.h.b16 %v1811
    %v2402 = vunpack.c.l.b16 %v1812
    %v2403 = vunpack.c.h.b16 %v1812
    %v2404 = vunpack.c.l.b16 %v1813
    %v2405 = vunpack.c.h.b16 %v1813
    %v2406 = vunpack.c.l.b16 %v1814
    %v2407 = vunpack.c.h.b16 %v1814
    %v2408 = vunpack.c.l.b16 %v1815
    %v2409 = vunpack.c.h.b16 %v1815
    %v2410 = vunpack.c.l.b16 %v1816
    %v2411 = vunpack.c.h.b16 %v1816
    %v2412 = vunpack.c.l.b16 %v1817
    %v2413 = vunpack.c.h.b16 %v1817
    %v2414 = vunpack.c.l.b16 %v1818
    %v2415 = vunpack.c.h.b16 %v1818
    %v2416 = vunpack.c.l.b16 %v1819
    %v2417 = vunpack.c.h.b16 %v1819
    %v2418 = vunpack.c.l.b16 %v1820
    %v2419 = vunpack.c.h.b16 %v1820
    %v2420 = vunpack.c.l.b16 %v1821
    %v2421 = vunpack.c.h.b16 %v1821
    %v2422 = vunpack.c.l.b16 %v1822
    %v2423 = vunpack.c.h.b16 %v1822
    %v2424 = vunpack.c.l.b16 %v1823
    %v2425 = vunpack.c.h.b16 %v1823
    %v2426 = vunpack.c.l.b16 %v1824
    %v2427 = vunpack.c.h.b16 %v1824
    %v2428 = vunpack.c.l.b16 %v1825
    %v2429 = vunpack.c.h.b16 %v1825
    %v2430 = vunpack.c.l.b16 %v1826
    %v2431 = vunpack.c.h.b16 %v1826
    %v2432 = vunpack.c.l.b16 %v1827
    %v2433 = vunpack.c.h.b16 %v1827
    %v2434 = vunpack.c.l.b16 %v1828
    %v2435 = vunpack.c.h.b16 %v1828
    %v2436 = vunpack.c.l.b16 %v1829
    %v2437 = vunpack.c.h.b16 %v1829
    %v2438 = vunpack.c.l.b16 %v1830
    %v2439 = vunpack.c.h.b16 %v1830
    %v2440 = vunpack.c.l.b16 %v1831
    %v2441 = vunpack.c.h.b16 %v1831
    %v2442 = vunpack.c.l.b16 %v1832
    %v2443 = vunpack.c.h.b16 %v1832
    %v2444 = vunpack.c.l.b16 %v1833
    %v2445 = vunpack.c.h.b16 %v1833
    %v2446 = vunpack.c.l.b16 %v1834
    %v2447 = vunpack.c.h.b16 %v1834
    %v2448 = vunpack.c.l.b16 %v1835
    %v2449 = vunpack.c.h.b16 %v1835
    %v2450 = vunpack.c.l.b16 %v1836
    %v2451 = vunpack.c.h.b16 %v1836
    %v2452 = vunpack.c.l.b16 %v1837
    %v2453 = vunpack.c.h.b16 %v1837
    %v2454 = vunpack.c.l.b16 %v1838
    %v2455 = vunpack.c.h.b16 %v1838
    %v2456 = vunpack.c.l.b16 %v1839
    %v2457 = vunpack.c.h.b16 %v1839
    %v2458 = vunpack.c.l.b16 %v1840
    %v2459 = vunpack.c.h.b16 %v1840
    %v2460 = vunpack.c.l.b16 %v1841
    %v2461 = vunpack.c.h.b16 %v1841
    %v2462 = vunpack.c.l.b16 %v1842
    %v2463 = vunpack.c.h.b16 %v1842
    %v2464 = vunpack.c.l.b16 %v1843
    %v2465 = vunpack.c.h.b16 %v1843
    %v2466 = vunpack.c.l.b16 %v1844
    %v2467 = vunpack.c.h.b16 %v1844
    %v2468 = vunpack.c.l.b16 %v1845
    %v2469 = vunpack.c.h.b16 %v1845
    %v2470 = vunpack.c.l.b16 %v1846
    %v2471 = vunpack.c.h.b16 %v1846
    %v2472 = vunpack.c.l.b16 %v1847
    %v2473 = vunpack.c.h.b16 %v1847
    %v2474 = vunpack.c.l.b16 %v1848
    %v2475 = vunpack.c.h.b16 %v1848
    %v2476 = vunpack.c.l.b16 %v1849
    %v2477 = vunpack.c.h.b16 %v1849
    %v2478 = vunpack.c.l.b16 %v1850
    %v2479 = vunpack.c.h.b16 %v1850
    %v2480 = vunpack.c.l.b16 %v1851
    %v2481 = vunpack.c.h.b16 %v1851
    %v2482 = vunpack.c.l.b16 %v1852
    %v2483 = vunpack.c.h.b16 %v1852
    %v2484 = vunpack.c.l.b16 %v1853
    %v2485 = vunpack.c.h.b16 %v1853
    %v2486 = vunpack.c.l.b16 %v1854
    %v2487 = vunpack.c.h.b16 %v1854
    %v2488 = vunpack.c.l.b16 %v1855
    %v2489 = vunpack.c.h.b16 %v1855
    %v2490 = vunpack.c.l.b16 %v1856
    %v2491 = vunpack.c.h.b16 %v1856
    %v2492 = vunpack.c.l.b16 %v1857
    %v2493 = vunpack.c.h.b16 %v1857
    %v2494 = vunpack.c.l.b16 %v1858
    %v2495 = vunpack.c.h.b16 %v1858
    %v2496 = vunpack.c.l.b16 %v1859
    %v2497 = vunpack.c.h.b16 %v1859
    %v2498 = vunpack.c.l.b16 %v1860
    %v2499 = vunpack.c.h.b16 %v1860
    %v2500 = vunpack.c.l.b16 %v1861
    %v2501 = vunpack.c.h.b16 %v1861
    %v2502 = vunpack.c.l.b16 %v1862
    %v2503 = vunpack.c.h.b16 %v1862
    %v2504 = vunpack.c.l.b16 %v1863
    %v2505 = vunpack.c.h.b16 %v1863
    %v2506 = vunpack.c.l.b16 %v1864
    %v2507 = vunpack.c.h.b16 %v1864
    %v2508 = vunpack.c.l.b16 %v1865
    %v2509 = vunpack.c.h.b16 %v1865
    %v2510 = vunpack.c.l.b16 %v1866
    %v2511 = vunpack.c.h.b16 %v1866
    %v2512 = vunpack.c.l.b16 %v1867
    %v2513 = vunpack.c.h.b16 %v1867
    %v2514 = vunpack.c.l.b16 %v1868
    %v2515 = vunpack.c.h.b16 %v1868
    %v2516 = vunpack.c.l.b16 %v1869
    %v2517 = vunpack.c.h.b16 %v1869
    %v2518 = vunpack.c.l.b16 %v1870
    %v2519 = vunpack.c.h.b16 %v1870
    %v2520 = vunpack.c.l.b16 %v1871
    %v2521 = vunpack.c.h.b16 %v1871
    %v2522 = vunpack.c.l.b16 %v1872
    %v2523 = vunpack.c.h.b16 %v1872
    %v2524 = vunpack.c.l.b16 %v1873
    %v2525 = vunpack.c.h.b16 %v1873
    %v2526 = vunpack.c.l.b16 %v1874
    %v2527 = vunpack.c.h.b16 %v1874
    %v2528 = vunpack.c.l.b16 %v1875
    %v2529 = vunpack.c.h.b16 %v1875
    %v2530 = vunpack.c.l.b16 %v1876
    %v2531 = vunpack.c.h.b16 %v1876
    %v2532 = vunpack.c.l.b16 %v1877
    %v2533 = vunpack.c.h.b16 %v1877
    %v2534 = vunpack.c.l.b16 %v1878
    %v2535 = vunpack.c.h.b16 %v1878
    %v2536 = vunpack.c.l.b16 %v1879
    %v2537 = vunpack.c.h.b16 %v1879
    %v2538 = vunpack.c.l.b16 %v1880
    %v2539 = vunpack.c.h.b16 %v1880
    %v2540 = vunpack.c.l.b16 %v1881
    %v2541 = vunpack.c.h.b16 %v1881
    %v2542 = vunpack.c.l.b16 %v1882
    %v2543 = vunpack.c.h.b16 %v1882
    %v2544 = vunpack.c.l.b16 %v1883
    %v2545 = vunpack.c.h.b16 %v1883
    %v2546 = vunpack.c.l.b16 %v1884
    %v2547 = vunpack.c.h.b16 %v1884
    %v2548 = vunpack.c.l.b16 %v1885
    %v2549 = vunpack.c.h.b16 %v1885
    %v2550 = vunpack.c.l.b16 %v1886
    %v2551 = vunpack.c.h.b16 %v1886
    %v2552 = vunpack.c.l.b16 %v1887
    %v2553 = vunpack.c.h.b16 %v1887
    %v2554 = vunpack.c.l.b16 %v1888
    %v2555 = vunpack.c.h.b16 %v1888
    %v2556 = vunpack.c.l.b16 %v1889
    %v2557 = vunpack.c.h.b16 %v1889
    %v2558 = vunpack.c.l.b16 %v1890
    %v2559 = vunpack.c.h.b16 %v1890
    %v2560 = vunpack.c.l.b16 %v1891
    %v2561 = vunpack.c.h.b16 %v1891
    %v2562 = vunpack.c.l.b16 %v1892
    %v2563 = vunpack.c.h.b16 %v1892
    %v2564 = vunpack.c.l.b16 %v1893
    %v2565 = vunpack.c.h.b16 %v1893
    %v2566 = vunpack.c.l.b16 %v1894
    %v2567 = vunpack.c.h.b16 %v1894
    %v2568 = vunpack.c.l.b16 %v1895
    %v2569 = vunpack.c.h.b16 %v1895
    %v2570 = vunpack.c.l.b16 %v1896
    %v2571 = vunpack.c.h.b16 %v1896
    %v2572 = vunpack.c.l.b16 %v1897
    %v2573 = vunpack.c.h.b16 %v1897
    %v2574 = vunpack.c.l.b16 %v1898
    %v2575 = vunpack.c.h.b16 %v1898
    %v2576 = vunpack.c.l.b16 %v1899
    %v2577 = vunpack.c.h.b16 %v1899
    %v2578 = vunpack.c.l.b16 %v1900
    %v2579 = vunpack.c.h.b16 %v1900
    %v2580 = vunpack.c.l.b16 %v1901
    %v2581 = vunpack.c.h.b16 %v1901
    %v2582 = vunpack.c.l.b16 %v1902
    %v2583 = vunpack.c.h.b16 %v1902
    %v2584 = vunpack.c.l.b16 %v1903
    %v2585 = vunpack.c.h.b16 %v1903
    %v2586 = vunpack.c.l.b16 %v1904
    %v2587 = vunpack.c.h.b16 %v1904
    %v2588 = vunpack.c.l.b16 %v1905
    %v2589 = vunpack.c.h.b16 %v1905
    %v2590 = vunpack.c.l.b16 %v1906
    %v2591 = vunpack.c.h.b16 %v1906
    %v2592 = vunpack.c.l.b16 %v1907
    %v2593 = vunpack.c.h.b16 %v1907
    %v2594 = vunpack.c.l.b16 %v1908
    %v2595 = vunpack.c.h.b16 %v1908
    %v2596 = vunpack.c.l.b16 %v1909
    %v2597 = vunpack.c.h.b16 %v1909
    %v2598 = vunpack.c.l.b16 %v1910
    %v2599 = vunpack.c.h.b16 %v1910
    %v2600 = vunpack.c.l.b16 %v1911
    %v2601 = vunpack.c.h.b16 %v1911
    %v2602 = vunpack.c.l.b16 %v1912
    %v2603 = vunpack.c.h.b16 %v1912
    %v2604 = vunpack.c.l.b16 %v1913
    %v2605 = vunpack.c.h.b16 %v1913
    %v2606 = vunpack.c.l.b16 %v1914
    %v2607 = vunpack.c.h.b16 %v1914
    %v2608 = vunpack.c.l.b16 %v1915
    %v2609 = vunpack.c.h.b16 %v1915
    %v2610 = vunpack.c.l.b16 %v1916
    %v2611 = vunpack.c.h.b16 %v1916
    %v2612 = vunpack.c.l.b16 %v1917
    %v2613 = vunpack.c.h.b16 %v1917
    %v2614 = vunpack.c.l.b16 %v1918
    %v2615 = vunpack.c.h.b16 %v1918
    %v2616 = vunpack.c.l.b16 %v1919
    %v2617 = vunpack.c.h.b16 %v1919
    %v2618 = vunpack.c.l.b16 %v1920
    %v2619 = vunpack.c.h.b16 %v1920
    %v2620 = vunpack.c.l.b16 %v1921
    %v2621 = vunpack.c.h.b16 %v1921
    %v2622 = vunpack.c.l.b16 %v1922
    %v2623 = vunpack.c.h.b16 %v1922
    %v2624 = vunpack.c.l.b16 %v1923
    %v2625 = vunpack.c.h.b16 %v1923
    %v2626 = vunpack.c.l.b16 %v1924
    %v2627 = vunpack.c.h.b16 %v1924
    %v2628 = vunpack.c.l.b16 %v1925
    %v2629 = vunpack.c.h.b16 %v1925
    %v2630 = vunpack.c.l.b16 %v1926
    %v2631 = vunpack.c.h.b16 %v1926
    %v2632 = vunpack.c.l.b16 %v1927
    %v2633 = vunpack.c.h.b16 %v1927
    %v2634 = vunpack.c.l.b16 %v1928
    %v2635 = vunpack.c.h.b16 %v1928
    %v2636 = vunpack.c.l.b16 %v1929
    %v2637 = vunpack.c.h.b16 %v1929
    %v2638 = vunpack.c.l.b16 %v1930
    %v2639 = vunpack.c.h.b16 %v1930
    %v2640 = vunpack.c.l.b16 %v1931
    %v2641 = vunpack.c.h.b16 %v1931
    %v2642 = vunpack.c.l.b16 %v1932
    %v2643 = vunpack.c.h.b16 %v1932
    %v2644 = vunpack.c.l.b16 %v1933
    %v2645 = vunpack.c.h.b16 %v1933
    %v2646 = vunpack.c.l.b16 %v1934
    %v2647 = vunpack.c.h.b16 %v1934
    %v2648 = vunpack.c.l.b16 %v1935
    %v2649 = vunpack.c.h.b16 %v1935
    %v2650 = vunpack.c.l.b16 %v1936
    %v2651 = vunpack.c.h.b16 %v1936
    %v2652 = vunpack.c.l.b16 %v1937
    %v2653 = vunpack.c.h.b16 %v1937
    %v2654 = vunpack.c.l.b16 %v1938
    %v2655 = vunpack.c.h.b16 %v1938
    %v2656 = vunpack.c.l.b16 %v1939
    %v2657 = vunpack.c.h.b16 %v1939
    %v2658 = vunpack.c.l.b16 %v1940
    %v2659 = vunpack.c.h.b16 %v1940
    %v2660 = vunpack.c.l.b16 %v1941
    %v2661 = vunpack.c.h.b16 %v1941
    %v2662 = vunpack.c.l.b16 %v1942
    %v2663 = vunpack.c.h.b16 %v1942
    %v2664 = vunpack.c.l.b16 %v1943
    %v2665 = vunpack.c.h.b16 %v1943
    %v2666 = vunpack.c.l.b16 %v1944
    %v2667 = vunpack.c.h.b16 %v1944
    %v2668 = vunpack.c.l.b16 %v1945
    %v2669 = vunpack.c.h.b16 %v1945
    %v2670 = vunpack.c.l.b16 %v1946
    %v2671 = vunpack.c.h.b16 %v1946
    %v2672 = vunpack.c.l.b16 %v1947
    %v2673 = vunpack.c.h.b16 %v1947
    %v2674 = vpack.c.b16 %v2196, %v2194
    %v2675 = vpack.c.b16 %v2197, %v2195
    %v2676 = vpack.c.b16 %v2200, %v2198
    %v2677 = vpack.c.b16 %v2201, %v2199
    %v2678 = vpack.c.b16 %v2204, %v2202
    %v2679 = vpack.c.b16 %v2205, %v2203
    %v2680 = vpack.c.b16 %v2208, %v2206
    %v2681 = vpack.c.b16 %v2209, %v2207
    %v2682 = vpack.c.b16 %v2212, %v2210
    %v2683 = vpack.c.b16 %v2213, %v2211
    %v2684 = vpack.c.b16 %v2216, %v2214
    %v2685 = vpack.c.b16 %v2217, %v2215
    %v2686 = vpack.c.b16 %v2220, %v2218
    %v2687 = vpack.c.b16 %v2221, %v2219
    %v2688 = vpack.c.b16 %v2224, %v2222
    %v2689 = vpack.c.b16 %v2225, %v2223
    %v2690 = vpack.c.b16 %v2228, %v2226
    %v2691 = vpack.c.b16 %v2229, %v2227
    %v2692 = vpack.c.b16 %v2232, %v2230
    %v2693 = vpack.c.b16 %v2233, %v2231
    %v2694 = vpack.c.b16 %v2236, %v2234
    %v2695 = vpack.c.b16 %v2237, %v2235
    %v2696 = vpack.c.b16 %v2240, %v2238
    %v2697 = vpack.c.b16 %v2241, %v2239
    %v2698 = vpack.c.b16 %v2244, %v2242
    %v2699 = vpack.c.b16 %v2245, %v2243
    %v2700 = vpack.c.b16 %v2248, %v2246
    %v2701 = vpack.c.b16 %v2249, %v2247
    %v2702 = vpack.c.b16 %v2252, %v2250
    %v2703 = vpack.c.b16 %v2253, %v2251
    %v2704 = vpack.c.b16 %v2256, %v2254
    %v2705 = vpack.c.b16 %v2257, %v2255
    %v2706 = vpack.c.b16 %v2260, %v2258
    %v2707 = vpack.c.b16 %v2261, %v2259
    %v2708 = vpack.c.b16 %v2264, %v2262
    %v2709 = vpack.c.b16 %v2265, %v2263
    %v2710 = vpack.c.b16 %v2268, %v2266
    %v2711 = vpack.c.b16 %v2269, %v2267
    %v2712 = vpack.c.b16 %v2272, %v2270
    %v2713 = vpack.c.b16 %v2273, %v2271
    %v2714 = vpack.c.b16 %v2276, %v2274
    %v2715 = vpack.c.b16 %v2277, %v2275
    %v2716 = vpack.c.b16 %v2280, %v2278
    %v2717 = vpack.c.b16 %v2281, %v2279
    %v2718 = vpack.c.b16 %v2284, %v2282
    %v2719 = vpack.c.b16 %v2285, %v2283
    %v2720 = vpack.c.b16 %v2288, %v2286
    %v2721 = vpack.c.b16 %v2289, %v2287
    %v2722 = vpack.c.b16 %v2292, %v2290
    %v2723 = vpack.c.b16 %v2293, %v2291
    %v2724 = vpack.c.b16 %v2296, %v2294
    %v2725 = vpack.c.b16 %v2297, %v2295
    %v2726 = vpack.c.b16 %v2300, %v2298
    %v2727 = vpack.c.b16 %v2301, %v2299
    %v2728 = vpack.c.b16 %v2304, %v2302
    %v2729 = vpack.c.b16 %v2305, %v2303
    %v2730 = vpack.c.b16 %v2308, %v2306
    %v2731 = vpack.c.b16 %v2309, %v2307
    %v2732 = vpack.c.b16 %v2312, %v2310
    %v2733 = vpack.c.b16 %v2313, %v2311
    %v2734 = vpack.c.b16 %v2316, %v2314
    %v2735 = vpack.c.b16 %v2317, %v2315
    %v2736 = vpack.c.b16 %v2320, %v2318
    %v2737 = vpack.c.b16 %v2321, %v2319
    %v2738 = vpack.c.b16 %v2324, %v2322
    %v2739 = vpack.c.b16 %v2325, %v2323
    %v2740 = vpack.c.b16 %v2328, %v2326
    %v2741 = vpack.c.b16 %v2329, %v2327
    %v2742 = vpack.c.b16 %v2332, %v2330
    %v2743 = vpack.c.b16 %v2333, %v2331
    %v2744 = vpack.c.b16 %v2336, %v2334
    %v2745 = vpack.c.b16 %v2337, %v2335
    %v2746 = vpack.c.b16 %v2340, %v2338
    %v2747 = vpack.c.b16 %v2341, %v2339
    %v2748 = vpack.c.b16 %v2344, %v2342
    %v2749 = vpack.c.b16 %v2345, %v2343
    %v2750 = vpack.c.b16 %v2348, %v2346
    %v2751 = vpack.c.b16 %v2349, %v2347
    %v2752 = vpack.c.b16 %v2352, %v2350
    %v2753 = vpack.c.b16 %v2353, %v2351
    %v2754 = vpack.c.b16 %v2356, %v2354
    %v2755 = vpack.c.b16 %v2357, %v2355
    %v2756 = vpack.c.b16 %v2360, %v2358
    %v2757 = vpack.c.b16 %v2361, %v2359
    %v2758 = vpack.c.b16 %v2364, %v2362
    %v2759 = vpack.c.b16 %v2365, %v2363
    %v2760 = vpack.c.b16 %v2368, %v2366
    %v2761 = vpack.c.b16 %v2369, %v2367
    %v2762 = vpack.c.b16 %v2372, %v2370
    %v2763 = vpack.c.b16 %v2373, %v2371
    %v2764 = vpack.c.b16 %v2376, %v2374
    %v2765 = vpack.c.b16 %v2377, %v2375
    %v2766 = vpack.c.b16 %v2380, %v2378
    %v2767 = vpack.c.b16 %v2381, %v2379
    %v2768 = vpack.c.b16 %v2384, %v2382
    %v2769 = vpack.c.b16 %v2385, %v2383
    %v2770 = vpack.c.b16 %v2388, %v2386
    %v2771 = vpack.c.b16 %v2389, %v2387
    %v2772 = vpack.c.b16 %v2392, %v2390
    %v2773 = vpack.c.b16 %v2393, %v2391
    %v2774 = vpack.c.b16 %v2396, %v2394
    %v2775 = vpack.c.b16 %v2397, %v2395
    %v2776 = vpack.c.b16 %v2400, %v2398
    %v2777 = vpack.c.b16 %v2401, %v2399
    %v2778 = vpack.c.b16 %v2404, %v2402
    %v2779 = vpack.c.b16 %v2405, %v2403
    %v2780 = vpack.c.b16 %v2408, %v2406
    %v2781 = vpack.c.b16 %v2409, %v2407
    %v2782 = vpack.c.b16 %v2412, %v2410
    %v2783 = vpack.c.b16 %v2413, %v2411
    %v2784 = vpack.c.b16 %v2416, %v2414
    %v2785 = vpack.c.b16 %v2417, %v2415
    %v2786 = vpack.c.b16 %v2420, %v2418
    %v2787 = vpack.c.b16 %v2421, %v2419
    %v2788 = vpack.c.b16 %v2424, %v2422
    %v2789 = vpack.c.b16 %v2425, %v2423
    %v2790 = vpack.c.b16 %v2428, %v2426
    %v2791 = vpack.c.b16 %v2429, %v2427
    %v2792 = vpack.c.b16 %v2432, %v2430
    %v2793 = vpack.c.b16 %v2433, %v2431
    %v2794 = vpack.c.b16 %v2436, %v2434
    %v2795 = vpack.c.b16 %v2437, %v2435
    %v2796 = vpack.c.b16 %v2440, %v2438
    %v2797 = vpack.c.b16 %v2441, %v2439
    %v2798 = vpack.c.b16 %v2444, %v2442
    %v2799 = vpack.c.b16 %v2445, %v2443
    %v2800 = vpack.c.b16 %v2448, %v2446
    %v2801 = vpack.c.b16 %v2449, %v2447
    %v2802 = vpack.c.b16 %v2452, %v2450
    %v2803 = vpack.c.b16 %v2453, %v2451
    %v2804 = vpack.c.b16 %v2456, %v2454
    %v2805 = vpack.c.b16 %v2457, %v2455
    %v2806 = vpack.c.b16 %v2460, %v2458
    %v2807 = vpack.c.b16 %v2461, %v2459
    %v2808 = vpack.c.b16 %v2464, %v2462
    %v2809 = vpack.c.b16 %v2465, %v2463
    %v2810 = vpack.c.b16 %v2468, %v2466
    %v2811 = vpack.c.b16 %v2469, %v2467
    %v2812 = vpack.c.b16 %v2472, %v2470
    %v2813 = vpack.c.b16 %v2473, %v2471
    %v2814 = vpack.c.b16 %v2476, %v2474
    %v2815 = vpack.c.b16 %v2477, %v2475
    %v2816 = vpack.c.b16 %v2480, %v2478
    %v2817 = vpack.c.b16 %v2481, %v2479
    %v2818 = vpack.c.b16 %v2484, %v2482
    %v2819 = vpack.c.b16 %v2485, %v2483
    %v2820 = vpack.c.b16 %v2488, %v2486
    %v2821 = vpack.c.b16 %v2489, %v2487
    %v2822 = vpack.c.b16 %v2492, %v2490
    %v2823 = vpack.c.b16 %v2493, %v2491
    %v2824 = vpack.c.b16 %v2496, %v2494
    %v2825 = vpack.c.b16 %v2497, %v2495
    %v2826 = vpack.c.b16 %v2500, %v2498
    %v2827 = vpack.c.b16 %v2501, %v2499
    %v2828 = vpack.c.b16 %v2504, %v2502
    %v2829 = vpack.c.b16 %v2505, %v2503
    %v2830 = vpack.c.b16 %v2508, %v2506
    %v2831 = vpack.c.b16 %v2509, %v2507
    %v2832 = vpack.c.b16 %v2512, %v2510
    %v2833 = vpack.c.b16 %v2513, %v2511
    %v2834 = vpack.c.b16 %v2516, %v2514
    %v2835 = vpack.c.b16 %v2517, %v2515
    %v2836 = vpack.c.b16 %v2520, %v2518
    %v2837 = vpack.c.b16 %v2521, %v2519
    %v2838 = vpack.c.b16 %v2524, %v2522
    %v2839 = vpack.c.b16 %v2525, %v2523
    %v2840 = vpack.c.b16 %v2528, %v2526
    %v2841 = vpack.c.b16 %v2529, %v2527
    %v2842 = vpack.c.b16 %v2532, %v2530
    %v2843 = vpack.c.b16 %v2533, %v2531
    %v2844 = vpack.c.b16 %v2536, %v2534
    %v2845 = vpack.c.b16 %v2537, %v2535
    %v2846 = vpack.c.b16 %v2540, %v2538
    %v2847 = vpack.c.b16 %v2541, %v2539
    %v2848 = vpack.c.b16 %v2544, %v2542
    %v2849 = vpack.c.b16 %v2545, %v2543
    %v2850 = vpack.c.b16 %v2548, %v2546
    %v2851 = vpack.c.b16 %v2549, %v2547
    %v2852 = vpack.c.b16 %v2552, %v2550
    %v2853 = vpack.c.b16 %v2553, %v2551
    %v2854 = vpack.c.b16 %v2556, %v2554
    %v2855 = vpack.c.b16 %v2557, %v2555
    %v2856 = vpack.c.b16 %v2560, %v2558
    %v2857 = vpack.c.b16 %v2561, %v2559
    %v2858 = vpack.c.b16 %v2564, %v2562
    %v2859 = vpack.c.b16 %v2565, %v2563
    %v2860 = vpack.c.b16 %v2568, %v2566
    %v2861 = vpack.c.b16 %v2569, %v2567
    %v2862 = vpack.c.b16 %v2572, %v2570
    %v2863 = vpack.c.b16 %v2573, %v2571
    %v2864 = vpack.c.b16 %v2576, %v2574
    %v2865 = vpack.c.b16 %v2577, %v2575
    %v2866 = vpack.c.b16 %v2580, %v2578
    %v2867 = vpack.c.b16 %v2581, %v2579
    %v2868 = vpack.c.b16 %v2584, %v2582
    %v2869 = vpack.c.b16 %v2585, %v2583
    %v2870 = vpack.c.b16 %v2588, %v2586
    %v2871 = vpack.c.b16 %v2589, %v2587
    %v2872 = vpack.c.b16 %v2592, %v2590
    %v2873 = vpack.c.b16 %v2593, %v2591
    %v2874 = vpack.c.b16 %v2596, %v2594
    %v2875 = vpack.c.b16 %v2597, %v2595
    %v2876 = vpack.c.b16 %v2600, %v2598
    %v2877 = vpack.c.b16 %v2601, %v2599
    %v2878 = vpack.c.b16 %v2604, %v2602
    %v2879 = vpack.c.b16 %v2605, %v2603
    %v2880 = vpack.c.b16 %v2608, %v2606
    %v2881 = vpack.c.b16 %v2609, %v2607
    %v2882 = vpack.c.b16 %v2612, %v2610
    %v2883 = vpack.c.b16 %v2613, %v2611
    %v2884 = vpack.c.b16 %v2616, %v2614
    %v2885 = vpack.c.b16 %v2617, %v2615
    %v2886 = vpack.c.b16 %v2620, %v2618
    %v2887 = vpack.c.b16 %v2621, %v2619
    %v2888 = vpack.c.b16 %v2624, %v2622
    %v2889 = vpack.c.b16 %v2625, %v2623
    %v2890 = vpack.c.b16 %v2628, %v2626
    %v2891 = vpack.c.b16 %v2629, %v2627
    %v2892 = vpack.c.b16 %v2632, %v2630
    %v2893 = vpack.c.b16 %v2633, %v2631
    %v2894 = vpack.c.b16 %v2636, %v2634
    %v2895 = vpack.c.b16 %v2637, %v2635
    %v2896 = vpack.c.b16 %v2640, %v2638
    %v2897 = vpack.c.b16 %v2641, %v2639
    %v2898 = vpack.c.b16 %v2644, %v2642
    %v2899 = vpack.c.b16 %v2645, %v2643
    %v2900 = vpack.c.b16 %v2648, %v2646
    %v2901 = vpack.c.b16 %v2649, %v2647
    %v2902 = vpack.c.b16 %v2652, %v2650
    %v2903 = vpack.c.b16 %v2653, %v2651
    %v2904 = vpack.c.b16 %v2656, %v2654
    %v2905 = vpack.c.b16 %v2657, %v2655
    %v2906 = vpack.c.b16 %v2660, %v2658
    %v2907 = vpack.c.b16 %v2661, %v2659
    %v2908 = vpack.c.b16 %v2664, %v2662
    %v2909 = vpack.c.b16 %v2665, %v2663
    %v2910 = vpack.c.b16 %v2668, %v2666
    %v2911 = vpack.c.b16 %v2669, %v2667
    %v2912 = vpack.c.b16 %v2672, %v2670
    %v2913 = vpack.c.b16 %v2673, %v2671
    %3154 = vmatpush.bf16.msra.mxu0 %v2688
    %3155 = vmatpush.bf16.msra.mxu0 %v2686
    %3156 = vmatpush.bf16.msra.mxu0 %v2684
    %3157 = vmatpush.bf16.msra.mxu0 %v2682
    %3158 = vmatpush.bf16.msra.mxu0 %v2680
    %3159 = vmatpush.bf16.msra.mxu0 %v2678
    %3160 = vmatpush.bf16.msra.mxu0 %v2676
    %3161 = vmatpush.bf16.msra.mxu0 %v2674
    %3162 = vmatmul.bf16.gmra.mxu0 %v1622
    %v3163 = vpop.f32.mrf.mxu0
    %v3164 = vadd.f32 %v1950, %v3163
    %v3165 = vpop.f32.mrf.mxu0
    %v3166 = vadd.f32 %v1950, %v3165
    %3167 = vmatmul.bf16.gmra.mxu0 %v1625
    %v3168 = vpop.f32.mrf.mxu0
    %v3169 = vadd.f32 %v1950, %v3168
    %v3170 = vpop.f32.mrf.mxu0
    %v3171 = vadd.f32 %v1950, %v3170
    %3172 = vmatmul.bf16.gmra.mxu0 %v1628
    %v3173 = vpop.f32.mrf.mxu0
    %v3174 = vadd.f32 %v1950, %v3173
    %v3175 = vpop.f32.mrf.mxu0
    %v3176 = vadd.f32 %v1950, %v3175
    %3177 = vmatmul.bf16.gmra.mxu0 %v1631
    %v3178 = vpop.f32.mrf.mxu0
    %v3179 = vadd.f32 %v1950, %v3178
    %v3180 = vpop.f32.mrf.mxu0
    %v3181 = vadd.f32 %v1950, %v3180
    %3182 = vdwg.mxu0
    %3183 = vmatpush.bf16.msra.mxu0 %v2704
    %3184 = vmatpush.bf16.msra.mxu0 %v2702
    %3185 = vmatpush.bf16.msra.mxu0 %v2700
    %3186 = vmatpush.bf16.msra.mxu0 %v2698
    %3187 = vmatpush.bf16.msra.mxu0 %v2696
    %3188 = vmatpush.bf16.msra.mxu0 %v2694
    %3189 = vmatpush.bf16.msra.mxu0 %v2692
    %3190 = vmatpush.bf16.msra.mxu0 %v2690
    %3191 = vmatmul.bf16.gmra.mxu0 %v1623
    %v3192 = vpop.f32.mrf.mxu0
    %v3193 = vadd.f32 %v3164, %v3192
    %v3194 = vpop.f32.mrf.mxu0
    %v3195 = vadd.f32 %v3166, %v3194
    %3196 = vmatmul.bf16.gmra.mxu0 %v1626
    %v3197 = vpop.f32.mrf.mxu0
    %v3198 = vadd.f32 %v3169, %v3197
    %v3199 = vpop.f32.mrf.mxu0
    %v3200 = vadd.f32 %v3171, %v3199
    %3201 = vmatmul.bf16.gmra.mxu0 %v1629
    %v3202 = vpop.f32.mrf.mxu0
    %v3203 = vadd.f32 %v3174, %v3202
    %v3204 = vpop.f32.mrf.mxu0
    %v3205 = vadd.f32 %v3176, %v3204
    %3206 = vmatmul.bf16.gmra.mxu0 %v1632
    %v3207 = vpop.f32.mrf.mxu0
    %v3208 = vadd.f32 %v3179, %v3207
    %v3209 = vpop.f32.mrf.mxu0
    %v3210 = vadd.f32 %v3181, %v3209
    %3211 = vdwg.mxu0
    %3212 = vmatpush.bf16.msra.mxu0 %v2720
    %3213 = vmatpush.bf16.msra.mxu0 %v2718
    %3214 = vmatpush.bf16.msra.mxu0 %v2716
    %3215 = vmatpush.bf16.msra.mxu0 %v2714
    %3216 = vmatpush.bf16.msra.mxu0 %v2712
    %3217 = vmatpush.bf16.msra.mxu0 %v2710
    %3218 = vmatpush.bf16.msra.mxu0 %v2708
    %3219 = vmatpush.bf16.msra.mxu0 %v2706
    %3220 = vmatmul.bf16.gmra.mxu0 %v1624
    %v3221 = vpop.f32.mrf.mxu0
    %v3222 = vadd.f32 %v3193, %v3221
    %v3223 = vpop.f32.mrf.mxu0
    %v3224 = vadd.f32 %v3195, %v3223
    %3225 = vmatmul.bf16.gmra.mxu0 %v1627
    %v3226 = vpop.f32.mrf.mxu0
    %v3227 = vadd.f32 %v3198, %v3226
    %v3228 = vpop.f32.mrf.mxu0
    %v3229 = vadd.f32 %v3200, %v3228
    %3230 = vmatmul.bf16.gmra.mxu0 %v1630
    %v3231 = vpop.f32.mrf.mxu0
    %v3232 = vadd.f32 %v3203, %v3231
    %v3233 = vpop.f32.mrf.mxu0
    %v3234 = vadd.f32 %v3205, %v3233
    %3235 = vmatmul.bf16.gmra.mxu0 %v1633
    %v3236 = vpop.f32.mrf.mxu0
    %v3237 = vadd.f32 %v3208, %v3236
    %v3238 = vpop.f32.mrf.mxu0
    %v3239 = vadd.f32 %v3210, %v3238
    %3240 = vdwg.mxu0
    %3241 = vmatpush.bf16.msra.mxu0 %v2736
    %3242 = vmatpush.bf16.msra.mxu0 %v2734
    %3243 = vmatpush.bf16.msra.mxu0 %v2732
    %3244 = vmatpush.bf16.msra.mxu0 %v2730
    %3245 = vmatpush.bf16.msra.mxu0 %v2728
    %3246 = vmatpush.bf16.msra.mxu0 %v2726
    %3247 = vmatpush.bf16.msra.mxu0 %v2724
    %3248 = vmatpush.bf16.msra.mxu0 %v2722
    %3249 = vmatmul.bf16.gmra.mxu0 %v1651
    %v3250 = vpop.f32.mrf.mxu0
    %v3251 = vadd.f32 %v3222, %v3250
    %v3252 = vpop.f32.mrf.mxu0
    %v3253 = vadd.f32 %v3224, %v3252
    %3254 = vmatmul.bf16.gmra.mxu0 %v1654
    %v3255 = vpop.f32.mrf.mxu0
    %v3256 = vadd.f32 %v3227, %v3255
    %v3257 = vpop.f32.mrf.mxu0
    %v3258 = vadd.f32 %v3229, %v3257
    %3259 = vmatmul.bf16.gmra.mxu0 %v1657
    %v3260 = vpop.f32.mrf.mxu0
    %v3261 = vadd.f32 %v3232, %v3260
    %v3262 = vpop.f32.mrf.mxu0
    %v3263 = vadd.f32 %v3234, %v3262
    %3264 = vmatmul.bf16.gmra.mxu0 %v1660
    %v3265 = vpop.f32.mrf.mxu0
    %v3266 = vadd.f32 %v3237, %v3265
    %v3267 = vpop.f32.mrf.mxu0
    %v3268 = vadd.f32 %v3239, %v3267
    %3269 = vdwg.mxu0
    %3270 = vmatpush.bf16.msra.mxu0 %v2752
    %3271 = vmatpush.bf16.msra.mxu0 %v2750
    %3272 = vmatpush.bf16.msra.mxu0 %v2748
    %3273 = vmatpush.bf16.msra.mxu0 %v2746
    %3274 = vmatpush.bf16.msra.mxu0 %v2744
    %3275 = vmatpush.bf16.msra.mxu0 %v2742
    %3276 = vmatpush.bf16.msra.mxu0 %v2740
    %3277 = vmatpush.bf16.msra.mxu0 %v2738
    %3278 = vmatmul.bf16.gmra.mxu0 %v1652
    %v3279 = vpop.f32.mrf.mxu0
    %v3280 = vadd.f32 %v3251, %v3279
    %v3281 = vpop.f32.mrf.mxu0
    %v3282 = vadd.f32 %v3253, %v3281
    %3283 = vmatmul.bf16.gmra.mxu0 %v1655
    %v3284 = vpop.f32.mrf.mxu0
    %v3285 = vadd.f32 %v3256, %v3284
    %v3286 = vpop.f32.mrf.mxu0
    %v3287 = vadd.f32 %v3258, %v3286
    %3288 = vmatmul.bf16.gmra.mxu0 %v1658
    %v3289 = vpop.f32.mrf.mxu0
    %v3290 = vadd.f32 %v3261, %v3289
    %v3291 = vpop.f32.mrf.mxu0
    %v3292 = vadd.f32 %v3263, %v3291
    %3293 = vmatmul.bf16.gmra.mxu0 %v1661
    %v3294 = vpop.f32.mrf.mxu0
    %v3295 = vadd.f32 %v3266, %v3294
    %v3296 = vpop.f32.mrf.mxu0
    %v3297 = vadd.f32 %v3268, %v3296
    %3298 = vdwg.mxu0
    %3299 = vmatpush.bf16.msra.mxu0 %v2768
    %3300 = vmatpush.bf16.msra.mxu0 %v2766
    %3301 = vmatpush.bf16.msra.mxu0 %v2764
    %3302 = vmatpush.bf16.msra.mxu0 %v2762
    %3303 = vmatpush.bf16.msra.mxu0 %v2760
    %3304 = vmatpush.bf16.msra.mxu0 %v2758
    %3305 = vmatpush.bf16.msra.mxu0 %v2756
    %3306 = vmatpush.bf16.msra.mxu0 %v2754
    %3307 = vmatmul.bf16.gmra.mxu0 %v1653
    %v3308 = vpop.f32.mrf.mxu0
    %v3309 = vadd.f32 %v3280, %v3308
    %v3310 = vpop.f32.mrf.mxu0
    %v3311 = vadd.f32 %v3282, %v3310
    %3312 = vmatmul.bf16.gmra.mxu0 %v1656
    %v3313 = vpop.f32.mrf.mxu0
    %v3314 = vadd.f32 %v3285, %v3313
    %v3315 = vpop.f32.mrf.mxu0
    %v3316 = vadd.f32 %v3287, %v3315
    %3317 = vmatmul.bf16.gmra.mxu0 %v1659
    %v3318 = vpop.f32.mrf.mxu0
    %v3319 = vadd.f32 %v3290, %v3318
    %v3320 = vpop.f32.mrf.mxu0
    %v3321 = vadd.f32 %v3292, %v3320
    %3322 = vmatmul.bf16.gmra.mxu0 %v1662
    %v3323 = vpop.f32.mrf.mxu0
    %v3324 = vadd.f32 %v3295, %v3323
    %v3325 = vpop.f32.mrf.mxu0
    %v3326 = vadd.f32 %v3297, %v3325
    %3327 = vdwg.mxu0
    %3328 = vmatpush.bf16.msra.mxu0 %v2784
    %3329 = vmatpush.bf16.msra.mxu0 %v2782
    %3330 = vmatpush.bf16.msra.mxu0 %v2780
    %3331 = vmatpush.bf16.msra.mxu0 %v2778
    %3332 = vmatpush.bf16.msra.mxu0 %v2776
    %3333 = vmatpush.bf16.msra.mxu0 %v2774
    %3334 = vmatpush.bf16.msra.mxu0 %v2772
    %3335 = vmatpush.bf16.msra.mxu0 %v2770
    %3336 = vmatmul.bf16.gmra.mxu0 %v1625
    %v3337 = vpop.f32.mrf.mxu0
    %v3338 = vadd.f32 %v3309, %v3337
    %v3339 = vpop.f32.mrf.mxu0
    %v3340 = vadd.f32 %v3311, %v3339
    %3341 = vmatmul.bf16.gmra.mxu0 %v1628
    %v3342 = vpop.f32.mrf.mxu0
    %v3343 = vadd.f32 %v3314, %v3342
    %v3344 = vpop.f32.mrf.mxu0
    %v3345 = vadd.f32 %v3316, %v3344
    %3346 = vmatmul.bf16.gmra.mxu0 %v1631
    %v3347 = vpop.f32.mrf.mxu0
    %v3348 = vadd.f32 %v3319, %v3347
    %v3349 = vpop.f32.mrf.mxu0
    %v3350 = vadd.f32 %v3321, %v3349
    %3351 = vmatmul.bf16.gmra.mxu0 %v1680
    %v3352 = vpop.f32.mrf.mxu0
    %v3353 = vadd.f32 %v3324, %v3352
    %v3354 = vpop.f32.mrf.mxu0
    %v3355 = vadd.f32 %v3326, %v3354
    %3356 = vdwg.mxu0
    %3357 = vmatpush.bf16.msra.mxu0 %v2800
    %3358 = vmatpush.bf16.msra.mxu0 %v2798
    %3359 = vmatpush.bf16.msra.mxu0 %v2796
    %3360 = vmatpush.bf16.msra.mxu0 %v2794
    %3361 = vmatpush.bf16.msra.mxu0 %v2792
    %3362 = vmatpush.bf16.msra.mxu0 %v2790
    %3363 = vmatpush.bf16.msra.mxu0 %v2788
    %3364 = vmatpush.bf16.msra.mxu0 %v2786
    %3365 = vmatmul.bf16.gmra.mxu0 %v1626
    %v3366 = vpop.f32.mrf.mxu0
    %v3367 = vadd.f32 %v3338, %v3366
    %v3368 = vpop.f32.mrf.mxu0
    %v3369 = vadd.f32 %v3340, %v3368
    %3370 = vmatmul.bf16.gmra.mxu0 %v1629
    %v3371 = vpop.f32.mrf.mxu0
    %v3372 = vadd.f32 %v3343, %v3371
    %v3373 = vpop.f32.mrf.mxu0
    %v3374 = vadd.f32 %v3345, %v3373
    %3375 = vmatmul.bf16.gmra.mxu0 %v1632
    %v3376 = vpop.f32.mrf.mxu0
    %v3377 = vadd.f32 %v3348, %v3376
    %v3378 = vpop.f32.mrf.mxu0
    %v3379 = vadd.f32 %v3350, %v3378
    %3380 = vmatmul.bf16.gmra.mxu0 %v1681
    %v3381 = vpop.f32.mrf.mxu0
    %v3382 = vadd.f32 %v3353, %v3381
    %v3383 = vpop.f32.mrf.mxu0
    %v3384 = vadd.f32 %v3355, %v3383
    %3385 = vdwg.mxu0
    %3386 = vmatpush.bf16.msra.mxu0 %v2816
    %3387 = vmatpush.bf16.msra.mxu0 %v2814
    %3388 = vmatpush.bf16.msra.mxu0 %v2812
    %3389 = vmatpush.bf16.msra.mxu0 %v2810
    %3390 = vmatpush.bf16.msra.mxu0 %v2808
    %3391 = vmatpush.bf16.msra.mxu0 %v2806
    %3392 = vmatpush.bf16.msra.mxu0 %v2804
    %3393 = vmatpush.bf16.msra.mxu0 %v2802
    %3394 = vmatmul.bf16.gmra.mxu0 %v1627
    %v3395 = vpop.f32.mrf.mxu0
    %v3396 = vadd.f32 %v3367, %v3395
    %v3397 = vpop.f32.mrf.mxu0
    %v3398 = vadd.f32 %v3369, %v3397
    %3399 = vmatmul.bf16.gmra.mxu0 %v1630
    %v3400 = vpop.f32.mrf.mxu0
    %v3401 = vadd.f32 %v3372, %v3400
    %v3402 = vpop.f32.mrf.mxu0
    %v3403 = vadd.f32 %v3374, %v3402
    %3404 = vmatmul.bf16.gmra.mxu0 %v1633
    %v3405 = vpop.f32.mrf.mxu0
    %v3406 = vadd.f32 %v3377, %v3405
    %v3407 = vpop.f32.mrf.mxu0
    %v3408 = vadd.f32 %v3379, %v3407
    %3409 = vmatmul.bf16.gmra.mxu0 %v1682
    %v3410 = vpop.f32.mrf.mxu0
    %v3411 = vadd.f32 %v3382, %v3410
    %v3412 = vpop.f32.mrf.mxu0
    %v3413 = vadd.f32 %v3384, %v3412
    %3414 = vdwg.mxu0
    %3415 = vmatpush.bf16.msra.mxu0 %v2832
    %3416 = vmatpush.bf16.msra.mxu0 %v2830
    %3417 = vmatpush.bf16.msra.mxu0 %v2828
    %3418 = vmatpush.bf16.msra.mxu0 %v2826
    %3419 = vmatpush.bf16.msra.mxu0 %v2824
    %3420 = vmatpush.bf16.msra.mxu0 %v2822
    %3421 = vmatpush.bf16.msra.mxu0 %v2820
    %3422 = vmatpush.bf16.msra.mxu0 %v2818
    %3423 = vmatmul.bf16.gmra.mxu0 %v1654
    %v3424 = vpop.f32.mrf.mxu0
    %v3425 = vadd.f32 %v3396, %v3424
    %v3426 = vpop.f32.mrf.mxu0
    %v3427 = vadd.f32 %v3398, %v3426
    %3428 = vmatmul.bf16.gmra.mxu0 %v1657
    %v3429 = vpop.f32.mrf.mxu0
    %v3430 = vadd.f32 %v3401, %v3429
    %v3431 = vpop.f32.mrf.mxu0
    %v3432 = vadd.f32 %v3403, %v3431
    %3433 = vmatmul.bf16.gmra.mxu0 %v1660
    %v3434 = vpop.f32.mrf.mxu0
    %v3435 = vadd.f32 %v3406, %v3434
    %v3436 = vpop.f32.mrf.mxu0
    %v3437 = vadd.f32 %v3408, %v3436
    %3438 = vmatmul.bf16.gmra.mxu0 %v1691
    %v3439 = vpop.f32.mrf.mxu0
    %v3440 = vadd.f32 %v3411, %v3439
    %v3441 = vpop.f32.mrf.mxu0
    %v3442 = vadd.f32 %v3413, %v3441
    %3443 = vdwg.mxu0
    %3444 = vmatpush.bf16.msra.mxu0 %v2848
    %3445 = vmatpush.bf16.msra.mxu0 %v2846
    %3446 = vmatpush.bf16.msra.mxu0 %v2844
    %3447 = vmatpush.bf16.msra.mxu0 %v2842
    %3448 = vmatpush.bf16.msra.mxu0 %v2840
    %3449 = vmatpush.bf16.msra.mxu0 %v2838
    %3450 = vmatpush.bf16.msra.mxu0 %v2836
    %3451 = vmatpush.bf16.msra.mxu0 %v2834
    %3452 = vmatmul.bf16.gmra.mxu0 %v1655
    %v3453 = vpop.f32.mrf.mxu0
    %v3454 = vadd.f32 %v3425, %v3453
    %v3455 = vpop.f32.mrf.mxu0
    %v3456 = vadd.f32 %v3427, %v3455
    %3457 = vmatmul.bf16.gmra.mxu0 %v1658
    %v3458 = vpop.f32.mrf.mxu0
    %v3459 = vadd.f32 %v3430, %v3458
    %v3460 = vpop.f32.mrf.mxu0
    %v3461 = vadd.f32 %v3432, %v3460
    %3462 = vmatmul.bf16.gmra.mxu0 %v1661
    %v3463 = vpop.f32.mrf.mxu0
    %v3464 = vadd.f32 %v3435, %v3463
    %v3465 = vpop.f32.mrf.mxu0
    %v3466 = vadd.f32 %v3437, %v3465
    %3467 = vmatmul.bf16.gmra.mxu0 %v1692
    %v3468 = vpop.f32.mrf.mxu0
    %v3469 = vadd.f32 %v3440, %v3468
    %v3470 = vpop.f32.mrf.mxu0
    %v3471 = vadd.f32 %v3442, %v3470
    %3472 = vdwg.mxu0
    %3473 = vmatpush.bf16.msra.mxu0 %v2864
    %3474 = vmatpush.bf16.msra.mxu0 %v2862
    %3475 = vmatpush.bf16.msra.mxu0 %v2860
    %3476 = vmatpush.bf16.msra.mxu0 %v2858
    %3477 = vmatpush.bf16.msra.mxu0 %v2856
    %3478 = vmatpush.bf16.msra.mxu0 %v2854
    %3479 = vmatpush.bf16.msra.mxu0 %v2852
    %3480 = vmatpush.bf16.msra.mxu0 %v2850
    %3481 = vmatmul.bf16.gmra.mxu0 %v1656
    %v3482 = vpop.f32.mrf.mxu0
    %v3483 = vadd.f32 %v3454, %v3482
    %v3484 = vpop.f32.mrf.mxu0
    %v3485 = vadd.f32 %v3456, %v3484
    %3486 = vmatmul.bf16.gmra.mxu0 %v1659
    %v3487 = vpop.f32.mrf.mxu0
    %v3488 = vadd.f32 %v3459, %v3487
    %v3489 = vpop.f32.mrf.mxu0
    %v3490 = vadd.f32 %v3461, %v3489
    %3491 = vmatmul.bf16.gmra.mxu0 %v1662
    %v3492 = vpop.f32.mrf.mxu0
    %v3493 = vadd.f32 %v3464, %v3492
    %v3494 = vpop.f32.mrf.mxu0
    %v3495 = vadd.f32 %v3466, %v3494
    %3496 = vmatmul.bf16.gmra.mxu0 %v1693
    %v3497 = vpop.f32.mrf.mxu0
    %v3498 = vadd.f32 %v3469, %v3497
    %v3499 = vpop.f32.mrf.mxu0
    %v3500 = vadd.f32 %v3471, %v3499
    %3501 = vdwg.mxu0
    %3502 = vmatpush.bf16.msra.mxu0 %v2880
    %3503 = vmatpush.bf16.msra.mxu0 %v2878
    %3504 = vmatpush.bf16.msra.mxu0 %v2876
    %3505 = vmatpush.bf16.msra.mxu0 %v2874
    %3506 = vmatpush.bf16.msra.mxu0 %v2872
    %3507 = vmatpush.bf16.msra.mxu0 %v2870
    %3508 = vmatpush.bf16.msra.mxu0 %v2868
    %3509 = vmatpush.bf16.msra.mxu0 %v2866
    %3510 = vmatmul.bf16.gmra.mxu0 %v1628
    %v3511 = vpop.f32.mrf.mxu0
    %v3512 = vadd.f32 %v3483, %v3511
    %v3513 = vpop.f32.mrf.mxu0
    %v3514 = vadd.f32 %v3485, %v3513
    %3515 = vmatmul.bf16.gmra.mxu0 %v1631
    %v3516 = vpop.f32.mrf.mxu0
    %v3517 = vadd.f32 %v3488, %v3516
    %v3518 = vpop.f32.mrf.mxu0
    %v3519 = vadd.f32 %v3490, %v3518
    %3520 = vmatmul.bf16.gmra.mxu0 %v1680
    %v3521 = vpop.f32.mrf.mxu0
    %v3522 = vadd.f32 %v3493, %v3521
    %v3523 = vpop.f32.mrf.mxu0
    %v3524 = vadd.f32 %v3495, %v3523
    %3525 = vmatmul.bf16.gmra.mxu0 %v1702
    %v3526 = vpop.f32.mrf.mxu0
    %v3527 = vadd.f32 %v3498, %v3526
    %v3528 = vpop.f32.mrf.mxu0
    %v3529 = vadd.f32 %v3500, %v3528
    %3530 = vdwg.mxu0
    %3531 = vmatpush.bf16.msra.mxu0 %v2896
    %3532 = vmatpush.bf16.msra.mxu0 %v2894
    %3533 = vmatpush.bf16.msra.mxu0 %v2892
    %3534 = vmatpush.bf16.msra.mxu0 %v2890
    %3535 = vmatpush.bf16.msra.mxu0 %v2888
    %3536 = vmatpush.bf16.msra.mxu0 %v2886
    %3537 = vmatpush.bf16.msra.mxu0 %v2884
    %3538 = vmatpush.bf16.msra.mxu0 %v2882
    %3539 = vmatmul.bf16.gmra.mxu0 %v1629
    %v3540 = vpop.f32.mrf.mxu0
    %v3541 = vadd.f32 %v3512, %v3540
    %v3542 = vpop.f32.mrf.mxu0
    %v3543 = vadd.f32 %v3514, %v3542
    %3544 = vmatmul.bf16.gmra.mxu0 %v1632
    %v3545 = vpop.f32.mrf.mxu0
    %v3546 = vadd.f32 %v3517, %v3545
    %v3547 = vpop.f32.mrf.mxu0
    %v3548 = vadd.f32 %v3519, %v3547
    %3549 = vmatmul.bf16.gmra.mxu0 %v1681
    %v3550 = vpop.f32.mrf.mxu0
    %v3551 = vadd.f32 %v3522, %v3550
    %v3552 = vpop.f32.mrf.mxu0
    %v3553 = vadd.f32 %v3524, %v3552
    %3554 = vmatmul.bf16.gmra.mxu0 %v1703
    %v3555 = vpop.f32.mrf.mxu0
    %v3556 = vadd.f32 %v3527, %v3555
    %v3557 = vpop.f32.mrf.mxu0
    %v3558 = vadd.f32 %v3529, %v3557
    %3559 = vdwg.mxu0
    %3560 = vmatpush.bf16.msra.mxu0 %v2912
    %3561 = vmatpush.bf16.msra.mxu0 %v2910
    %3562 = vmatpush.bf16.msra.mxu0 %v2908
    %3563 = vmatpush.bf16.msra.mxu0 %v2906
    %3564 = vmatpush.bf16.msra.mxu0 %v2904
    %3565 = vmatpush.bf16.msra.mxu0 %v2902
    %3566 = vmatpush.bf16.msra.mxu0 %v2900
    %3567 = vmatpush.bf16.msra.mxu0 %v2898
    %3568 = vmatmul.bf16.gmra.mxu0 %v1630
    %v3569 = vpop.f32.mrf.mxu0
    %v3570 = vadd.f32 %v3541, %v3569
    %v3571 = vpop.f32.mrf.mxu0
    %v3572 = vadd.f32 %v3543, %v3571
    %3573 = vmatmul.bf16.gmra.mxu0 %v1633
    %v3574 = vpop.f32.mrf.mxu0
    %v3575 = vadd.f32 %v3546, %v3574
    %v3576 = vpop.f32.mrf.mxu0
    %v3577 = vadd.f32 %v3548, %v3576
    %3578 = vmatmul.bf16.gmra.mxu0 %v1682
    %v3579 = vpop.f32.mrf.mxu0
    %v3580 = vadd.f32 %v3551, %v3579
    %v3581 = vpop.f32.mrf.mxu0
    %v3582 = vadd.f32 %v3553, %v3581
    %3583 = vmatmul.bf16.gmra.mxu0 %v1704
    %v3584 = vpop.f32.mrf.mxu0
    %v3585 = vadd.f32 %v3556, %v3584
    %v3586 = vpop.f32.mrf.mxu0
    %v3587 = vadd.f32 %v3558, %v3586
    %3588 = vdwg.mxu0
    %3589 = vmatpush.bf16.msra.mxu0 %v2689
    %3590 = vmatpush.bf16.msra.mxu0 %v2687
    %3591 = vmatpush.bf16.msra.mxu0 %v2685
    %3592 = vmatpush.bf16.msra.mxu0 %v2683
    %3593 = vmatpush.bf16.msra.mxu0 %v2681
    %3594 = vmatpush.bf16.msra.mxu0 %v2679
    %3595 = vmatpush.bf16.msra.mxu0 %v2677
    %3596 = vmatpush.bf16.msra.mxu0 %v2675
    %3597 = vmatmul.bf16.gmra.mxu0 %v1622
    %v3598 = vpop.f32.mrf.mxu0
    %v3599 = vadd.f32 %v1951, %v3598
    %v3600 = vpop.f32.mrf.mxu0
    %v3601 = vadd.f32 %v1951, %v3600
    %3602 = vmatmul.bf16.gmra.mxu0 %v1625
    %v3603 = vpop.f32.mrf.mxu0
    %v3604 = vadd.f32 %v1951, %v3603
    %v3605 = vpop.f32.mrf.mxu0
    %v3606 = vadd.f32 %v1951, %v3605
    %3607 = vmatmul.bf16.gmra.mxu0 %v1628
    %v3608 = vpop.f32.mrf.mxu0
    %v3609 = vadd.f32 %v1951, %v3608
    %v3610 = vpop.f32.mrf.mxu0
    %v3611 = vadd.f32 %v1951, %v3610
    %3612 = vmatmul.bf16.gmra.mxu0 %v1631
    %v3613 = vpop.f32.mrf.mxu0
    %v3614 = vadd.f32 %v1951, %v3613
    %v3615 = vpop.f32.mrf.mxu0
    %v3616 = vadd.f32 %v1951, %v3615
    %3617 = vdwg.mxu0
    %3618 = vmatpush.bf16.msra.mxu0 %v2705
    %3619 = vmatpush.bf16.msra.mxu0 %v2703
    %3620 = vmatpush.bf16.msra.mxu0 %v2701
    %3621 = vmatpush.bf16.msra.mxu0 %v2699
    %3622 = vmatpush.bf16.msra.mxu0 %v2697
    %3623 = vmatpush.bf16.msra.mxu0 %v2695
    %3624 = vmatpush.bf16.msra.mxu0 %v2693
    %3625 = vmatpush.bf16.msra.mxu0 %v2691
    %3626 = vmatmul.bf16.gmra.mxu0 %v1623
    %v3627 = vpop.f32.mrf.mxu0
    %v3628 = vadd.f32 %v3599, %v3627
    %v3629 = vpop.f32.mrf.mxu0
    %v3630 = vadd.f32 %v3601, %v3629
    %3631 = vmatmul.bf16.gmra.mxu0 %v1626
    %v3632 = vpop.f32.mrf.mxu0
    %v3633 = vadd.f32 %v3604, %v3632
    %v3634 = vpop.f32.mrf.mxu0
    %v3635 = vadd.f32 %v3606, %v3634
    %3636 = vmatmul.bf16.gmra.mxu0 %v1629
    %v3637 = vpop.f32.mrf.mxu0
    %v3638 = vadd.f32 %v3609, %v3637
    %v3639 = vpop.f32.mrf.mxu0
    %v3640 = vadd.f32 %v3611, %v3639
    %3641 = vmatmul.bf16.gmra.mxu0 %v1632
    %v3642 = vpop.f32.mrf.mxu0
    %v3643 = vadd.f32 %v3614, %v3642
    %v3644 = vpop.f32.mrf.mxu0
    %v3645 = vadd.f32 %v3616, %v3644
    %3646 = vdwg.mxu0
    %3647 = vmatpush.bf16.msra.mxu0 %v2721
    %3648 = vmatpush.bf16.msra.mxu0 %v2719
    %3649 = vmatpush.bf16.msra.mxu0 %v2717
    %3650 = vmatpush.bf16.msra.mxu0 %v2715
    %3651 = vmatpush.bf16.msra.mxu0 %v2713
    %3652 = vmatpush.bf16.msra.mxu0 %v2711
    %3653 = vmatpush.bf16.msra.mxu0 %v2709
    %3654 = vmatpush.bf16.msra.mxu0 %v2707
    %3655 = vmatmul.bf16.gmra.mxu0 %v1624
    %v3656 = vpop.f32.mrf.mxu0
    %v3657 = vadd.f32 %v3628, %v3656
    %v3658 = vpop.f32.mrf.mxu0
    %v3659 = vadd.f32 %v3630, %v3658
    %3660 = vmatmul.bf16.gmra.mxu0 %v1627
    %v3661 = vpop.f32.mrf.mxu0
    %v3662 = vadd.f32 %v3633, %v3661
    %v3663 = vpop.f32.mrf.mxu0
    %v3664 = vadd.f32 %v3635, %v3663
    %3665 = vmatmul.bf16.gmra.mxu0 %v1630
    %v3666 = vpop.f32.mrf.mxu0
    %v3667 = vadd.f32 %v3638, %v3666
    %v3668 = vpop.f32.mrf.mxu0
    %v3669 = vadd.f32 %v3640, %v3668
    %3670 = vmatmul.bf16.gmra.mxu0 %v1633
    %v3671 = vpop.f32.mrf.mxu0
    %v3672 = vadd.f32 %v3643, %v3671
    %v3673 = vpop.f32.mrf.mxu0
    %v3674 = vadd.f32 %v3645, %v3673
    %3675 = vdwg.mxu0
    %3676 = vmatpush.bf16.msra.mxu0 %v2737
    %3677 = vmatpush.bf16.msra.mxu0 %v2735
    %3678 = vmatpush.bf16.msra.mxu0 %v2733
    %3679 = vmatpush.bf16.msra.mxu0 %v2731
    %3680 = vmatpush.bf16.msra.mxu0 %v2729
    %3681 = vmatpush.bf16.msra.mxu0 %v2727
    %3682 = vmatpush.bf16.msra.mxu0 %v2725
    %3683 = vmatpush.bf16.msra.mxu0 %v2723
    %3684 = vmatmul.bf16.gmra.mxu0 %v1651
    %v3685 = vpop.f32.mrf.mxu0
    %v3686 = vadd.f32 %v3657, %v3685
    %v3687 = vpop.f32.mrf.mxu0
    %v3688 = vadd.f32 %v3659, %v3687
    %3689 = vmatmul.bf16.gmra.mxu0 %v1654
    %v3690 = vpop.f32.mrf.mxu0
    %v3691 = vadd.f32 %v3662, %v3690
    %v3692 = vpop.f32.mrf.mxu0
    %v3693 = vadd.f32 %v3664, %v3692
    %3694 = vmatmul.bf16.gmra.mxu0 %v1657
    %v3695 = vpop.f32.mrf.mxu0
    %v3696 = vadd.f32 %v3667, %v3695
    %v3697 = vpop.f32.mrf.mxu0
    %v3698 = vadd.f32 %v3669, %v3697
    %3699 = vmatmul.bf16.gmra.mxu0 %v1660
    %v3700 = vpop.f32.mrf.mxu0
    %v3701 = vadd.f32 %v3672, %v3700
    %v3702 = vpop.f32.mrf.mxu0
    %v3703 = vadd.f32 %v3674, %v3702
    %3704 = vdwg.mxu0
    %3705 = vmatpush.bf16.msra.mxu0 %v2753
    %3706 = vmatpush.bf16.msra.mxu0 %v2751
    %3707 = vmatpush.bf16.msra.mxu0 %v2749
    %3708 = vmatpush.bf16.msra.mxu0 %v2747
    %3709 = vmatpush.bf16.msra.mxu0 %v2745
    %3710 = vmatpush.bf16.msra.mxu0 %v2743
    %3711 = vmatpush.bf16.msra.mxu0 %v2741
    %3712 = vmatpush.bf16.msra.mxu0 %v2739
    %3713 = vmatmul.bf16.gmra.mxu0 %v1652
    %v3714 = vpop.f32.mrf.mxu0
    %v3715 = vadd.f32 %v3686, %v3714
    %v3716 = vpop.f32.mrf.mxu0
    %v3717 = vadd.f32 %v3688, %v3716
    %3718 = vmatmul.bf16.gmra.mxu0 %v1655
    %v3719 = vpop.f32.mrf.mxu0
    %v3720 = vadd.f32 %v3691, %v3719
    %v3721 = vpop.f32.mrf.mxu0
    %v3722 = vadd.f32 %v3693, %v3721
    %3723 = vmatmul.bf16.gmra.mxu0 %v1658
    %v3724 = vpop.f32.mrf.mxu0
    %v3725 = vadd.f32 %v3696, %v3724
    %v3726 = vpop.f32.mrf.mxu0
    %v3727 = vadd.f32 %v3698, %v3726
    %3728 = vmatmul.bf16.gmra.mxu0 %v1661
    %v3729 = vpop.f32.mrf.mxu0
    %v3730 = vadd.f32 %v3701, %v3729
    %v3731 = vpop.f32.mrf.mxu0
    %v3732 = vadd.f32 %v3703, %v3731
    %3733 = vdwg.mxu0
    %3734 = vmatpush.bf16.msra.mxu0 %v2769
    %3735 = vmatpush.bf16.msra.mxu0 %v2767
    %3736 = vmatpush.bf16.msra.mxu0 %v2765
    %3737 = vmatpush.bf16.msra.mxu0 %v2763
    %3738 = vmatpush.bf16.msra.mxu0 %v2761
    %3739 = vmatpush.bf16.msra.mxu0 %v2759
    %3740 = vmatpush.bf16.msra.mxu0 %v2757
    %3741 = vmatpush.bf16.msra.mxu0 %v2755
    %3742 = vmatmul.bf16.gmra.mxu0 %v1653
    %v3743 = vpop.f32.mrf.mxu0
    %v3744 = vadd.f32 %v3715, %v3743
    %v3745 = vpop.f32.mrf.mxu0
    %v3746 = vadd.f32 %v3717, %v3745
    %3747 = vmatmul.bf16.gmra.mxu0 %v1656
    %v3748 = vpop.f32.mrf.mxu0
    %v3749 = vadd.f32 %v3720, %v3748
    %v3750 = vpop.f32.mrf.mxu0
    %v3751 = vadd.f32 %v3722, %v3750
    %3752 = vmatmul.bf16.gmra.mxu0 %v1659
    %v3753 = vpop.f32.mrf.mxu0
    %v3754 = vadd.f32 %v3725, %v3753
    %v3755 = vpop.f32.mrf.mxu0
    %v3756 = vadd.f32 %v3727, %v3755
    %3757 = vmatmul.bf16.gmra.mxu0 %v1662
    %v3758 = vpop.f32.mrf.mxu0
    %v3759 = vadd.f32 %v3730, %v3758
    %v3760 = vpop.f32.mrf.mxu0
    %v3761 = vadd.f32 %v3732, %v3760
    %3762 = vdwg.mxu0
    %3763 = vmatpush.bf16.msra.mxu0 %v2785
    %3764 = vmatpush.bf16.msra.mxu0 %v2783
    %3765 = vmatpush.bf16.msra.mxu0 %v2781
    %3766 = vmatpush.bf16.msra.mxu0 %v2779
    %3767 = vmatpush.bf16.msra.mxu0 %v2777
    %3768 = vmatpush.bf16.msra.mxu0 %v2775
    %3769 = vmatpush.bf16.msra.mxu0 %v2773
    %3770 = vmatpush.bf16.msra.mxu0 %v2771
    %3771 = vmatmul.bf16.gmra.mxu0 %v1625
    %v3772 = vpop.f32.mrf.mxu0
    %v3773 = vadd.f32 %v3744, %v3772
    %v3774 = vpop.f32.mrf.mxu0
    %v3775 = vadd.f32 %v3746, %v3774
    %3776 = vmatmul.bf16.gmra.mxu0 %v1628
    %v3777 = vpop.f32.mrf.mxu0
    %v3778 = vadd.f32 %v3749, %v3777
    %v3779 = vpop.f32.mrf.mxu0
    %v3780 = vadd.f32 %v3751, %v3779
    %3781 = vmatmul.bf16.gmra.mxu0 %v1631
    %v3782 = vpop.f32.mrf.mxu0
    %v3783 = vadd.f32 %v3754, %v3782
    %v3784 = vpop.f32.mrf.mxu0
    %v3785 = vadd.f32 %v3756, %v3784
    %3786 = vmatmul.bf16.gmra.mxu0 %v1680
    %v3787 = vpop.f32.mrf.mxu0
    %v3788 = vadd.f32 %v3759, %v3787
    %v3789 = vpop.f32.mrf.mxu0
    %v3790 = vadd.f32 %v3761, %v3789
    %3791 = vdwg.mxu0
    %3792 = vmatpush.bf16.msra.mxu0 %v2801
    %3793 = vmatpush.bf16.msra.mxu0 %v2799
    %3794 = vmatpush.bf16.msra.mxu0 %v2797
    %3795 = vmatpush.bf16.msra.mxu0 %v2795
    %3796 = vmatpush.bf16.msra.mxu0 %v2793
    %3797 = vmatpush.bf16.msra.mxu0 %v2791
    %3798 = vmatpush.bf16.msra.mxu0 %v2789
    %3799 = vmatpush.bf16.msra.mxu0 %v2787
    %3800 = vmatmul.bf16.gmra.mxu0 %v1626
    %v3801 = vpop.f32.mrf.mxu0
    %v3802 = vadd.f32 %v3773, %v3801
    %v3803 = vpop.f32.mrf.mxu0
    %v3804 = vadd.f32 %v3775, %v3803
    %3805 = vmatmul.bf16.gmra.mxu0 %v1629
    %v3806 = vpop.f32.mrf.mxu0
    %v3807 = vadd.f32 %v3778, %v3806
    %v3808 = vpop.f32.mrf.mxu0
    %v3809 = vadd.f32 %v3780, %v3808
    %3810 = vmatmul.bf16.gmra.mxu0 %v1632
    %v3811 = vpop.f32.mrf.mxu0
    %v3812 = vadd.f32 %v3783, %v3811
    %v3813 = vpop.f32.mrf.mxu0
    %v3814 = vadd.f32 %v3785, %v3813
    %3815 = vmatmul.bf16.gmra.mxu0 %v1681
    %v3816 = vpop.f32.mrf.mxu0
    %v3817 = vadd.f32 %v3788, %v3816
    %v3818 = vpop.f32.mrf.mxu0
    %v3819 = vadd.f32 %v3790, %v3818
    %3820 = vdwg.mxu0
    %3821 = vmatpush.bf16.msra.mxu0 %v2817
    %3822 = vmatpush.bf16.msra.mxu0 %v2815
    %3823 = vmatpush.bf16.msra.mxu0 %v2813
    %3824 = vmatpush.bf16.msra.mxu0 %v2811
    %3825 = vmatpush.bf16.msra.mxu0 %v2809
    %3826 = vmatpush.bf16.msra.mxu0 %v2807
    %3827 = vmatpush.bf16.msra.mxu0 %v2805
    %3828 = vmatpush.bf16.msra.mxu0 %v2803
    %3829 = vmatmul.bf16.gmra.mxu0 %v1627
    %v3830 = vpop.f32.mrf.mxu0
    %v3831 = vadd.f32 %v3802, %v3830
    %v3832 = vpop.f32.mrf.mxu0
    %v3833 = vadd.f32 %v3804, %v3832
    %3834 = vmatmul.bf16.gmra.mxu0 %v1630
    %v3835 = vpop.f32.mrf.mxu0
    %v3836 = vadd.f32 %v3807, %v3835
    %v3837 = vpop.f32.mrf.mxu0
    %v3838 = vadd.f32 %v3809, %v3837
    %3839 = vmatmul.bf16.gmra.mxu0 %v1633
    %v3840 = vpop.f32.mrf.mxu0
    %v3841 = vadd.f32 %v3812, %v3840
    %v3842 = vpop.f32.mrf.mxu0
    %v3843 = vadd.f32 %v3814, %v3842
    %3844 = vmatmul.bf16.gmra.mxu0 %v1682
    %v3845 = vpop.f32.mrf.mxu0
    %v3846 = vadd.f32 %v3817, %v3845
    %v3847 = vpop.f32.mrf.mxu0
    %v3848 = vadd.f32 %v3819, %v3847
    %3849 = vdwg.mxu0
    %3850 = vmatpush.bf16.msra.mxu0 %v2833
    %3851 = vmatpush.bf16.msra.mxu0 %v2831
    %3852 = vmatpush.bf16.msra.mxu0 %v2829
    %3853 = vmatpush.bf16.msra.mxu0 %v2827
    %3854 = vmatpush.bf16.msra.mxu0 %v2825
    %3855 = vmatpush.bf16.msra.mxu0 %v2823
    %3856 = vmatpush.bf16.msra.mxu0 %v2821
    %3857 = vmatpush.bf16.msra.mxu0 %v2819
    %3858 = vmatmul.bf16.gmra.mxu0 %v1654
    %v3859 = vpop.f32.mrf.mxu0
    %v3860 = vadd.f32 %v3831, %v3859
    %v3861 = vpop.f32.mrf.mxu0
    %v3862 = vadd.f32 %v3833, %v3861
    %3863 = vmatmul.bf16.gmra.mxu0 %v1657
    %v3864 = vpop.f32.mrf.mxu0
    %v3865 = vadd.f32 %v3836, %v3864
    %v3866 = vpop.f32.mrf.mxu0
    %v3867 = vadd.f32 %v3838, %v3866
    %3868 = vmatmul.bf16.gmra.mxu0 %v1660
    %v3869 = vpop.f32.mrf.mxu0
    %v3870 = vadd.f32 %v3841, %v3869
    %v3871 = vpop.f32.mrf.mxu0
    %v3872 = vadd.f32 %v3843, %v3871
    %3873 = vmatmul.bf16.gmra.mxu0 %v1691
    %v3874 = vpop.f32.mrf.mxu0
    %v3875 = vadd.f32 %v3846, %v3874
    %v3876 = vpop.f32.mrf.mxu0
    %v3877 = vadd.f32 %v3848, %v3876
    %3878 = vdwg.mxu0
    %3879 = vmatpush.bf16.msra.mxu0 %v2849
    %3880 = vmatpush.bf16.msra.mxu0 %v2847
    %3881 = vmatpush.bf16.msra.mxu0 %v2845
    %3882 = vmatpush.bf16.msra.mxu0 %v2843
    %3883 = vmatpush.bf16.msra.mxu0 %v2841
    %3884 = vmatpush.bf16.msra.mxu0 %v2839
    %3885 = vmatpush.bf16.msra.mxu0 %v2837
    %3886 = vmatpush.bf16.msra.mxu0 %v2835
    %3887 = vmatmul.bf16.gmra.mxu0 %v1655
    %v3888 = vpop.f32.mrf.mxu0
    %v3889 = vadd.f32 %v3860, %v3888
    %v3890 = vpop.f32.mrf.mxu0
    %v3891 = vadd.f32 %v3862, %v3890
    %3892 = vmatmul.bf16.gmra.mxu0 %v1658
    %v3893 = vpop.f32.mrf.mxu0
    %v3894 = vadd.f32 %v3865, %v3893
    %v3895 = vpop.f32.mrf.mxu0
    %v3896 = vadd.f32 %v3867, %v3895
    %3897 = vmatmul.bf16.gmra.mxu0 %v1661
    %v3898 = vpop.f32.mrf.mxu0
    %v3899 = vadd.f32 %v3870, %v3898
    %v3900 = vpop.f32.mrf.mxu0
    %v3901 = vadd.f32 %v3872, %v3900
    %3902 = vmatmul.bf16.gmra.mxu0 %v1692
    %v3903 = vpop.f32.mrf.mxu0
    %v3904 = vadd.f32 %v3875, %v3903
    %v3905 = vpop.f32.mrf.mxu0
    %v3906 = vadd.f32 %v3877, %v3905
    %3907 = vdwg.mxu0
    %3908 = vmatpush.bf16.msra.mxu0 %v2865
    %3909 = vmatpush.bf16.msra.mxu0 %v2863
    %3910 = vmatpush.bf16.msra.mxu0 %v2861
    %3911 = vmatpush.bf16.msra.mxu0 %v2859
    %3912 = vmatpush.bf16.msra.mxu0 %v2857
    %3913 = vmatpush.bf16.msra.mxu0 %v2855
    %3914 = vmatpush.bf16.msra.mxu0 %v2853
    %3915 = vmatpush.bf16.msra.mxu0 %v2851
    %3916 = vmatmul.bf16.gmra.mxu0 %v1656
    %v3917 = vpop.f32.mrf.mxu0
    %v3918 = vadd.f32 %v3889, %v3917
    %v3919 = vpop.f32.mrf.mxu0
    %v3920 = vadd.f32 %v3891, %v3919
    %3921 = vmatmul.bf16.gmra.mxu0 %v1659
    %v3922 = vpop.f32.mrf.mxu0
    %v3923 = vadd.f32 %v3894, %v3922
    %v3924 = vpop.f32.mrf.mxu0
    %v3925 = vadd.f32 %v3896, %v3924
    %3926 = vmatmul.bf16.gmra.mxu0 %v1662
    %v3927 = vpop.f32.mrf.mxu0
    %v3928 = vadd.f32 %v3899, %v3927
    %v3929 = vpop.f32.mrf.mxu0
    %v3930 = vadd.f32 %v3901, %v3929
    %3931 = vmatmul.bf16.gmra.mxu0 %v1693
    %v3932 = vpop.f32.mrf.mxu0
    %v3933 = vadd.f32 %v3904, %v3932
    %v3934 = vpop.f32.mrf.mxu0
    %v3935 = vadd.f32 %v3906, %v3934
    %3936 = vdwg.mxu0
    %3937 = vmatpush.bf16.msra.mxu0 %v2881
    %3938 = vmatpush.bf16.msra.mxu0 %v2879
    %3939 = vmatpush.bf16.msra.mxu0 %v2877
    %3940 = vmatpush.bf16.msra.mxu0 %v2875
    %3941 = vmatpush.bf16.msra.mxu0 %v2873
    %3942 = vmatpush.bf16.msra.mxu0 %v2871
    %3943 = vmatpush.bf16.msra.mxu0 %v2869
    %3944 = vmatpush.bf16.msra.mxu0 %v2867
    %3945 = vmatmul.bf16.gmra.mxu0 %v1628
    %v3946 = vpop.f32.mrf.mxu0
    %v3947 = vadd.f32 %v3918, %v3946
    %v3948 = vpop.f32.mrf.mxu0
    %v3949 = vadd.f32 %v3920, %v3948
    %3950 = vmatmul.bf16.gmra.mxu0 %v1631
    %v3951 = vpop.f32.mrf.mxu0
    %v3952 = vadd.f32 %v3923, %v3951
    %v3953 = vpop.f32.mrf.mxu0
    %v3954 = vadd.f32 %v3925, %v3953
    %3955 = vmatmul.bf16.gmra.mxu0 %v1680
    %v3956 = vpop.f32.mrf.mxu0
    %v3957 = vadd.f32 %v3928, %v3956
    %v3958 = vpop.f32.mrf.mxu0
    %v3959 = vadd.f32 %v3930, %v3958
    %3960 = vmatmul.bf16.gmra.mxu0 %v1702
    %v3961 = vpop.f32.mrf.mxu0
    %v3962 = vadd.f32 %v3933, %v3961
    %v3963 = vpop.f32.mrf.mxu0
    %v3964 = vadd.f32 %v3935, %v3963
    %3965 = vdwg.mxu0
    %3966 = vmatpush.bf16.msra.mxu0 %v2897
    %3967 = vmatpush.bf16.msra.mxu0 %v2895
    %3968 = vmatpush.bf16.msra.mxu0 %v2893
    %3969 = vmatpush.bf16.msra.mxu0 %v2891
    %3970 = vmatpush.bf16.msra.mxu0 %v2889
    %3971 = vmatpush.bf16.msra.mxu0 %v2887
    %3972 = vmatpush.bf16.msra.mxu0 %v2885
    %3973 = vmatpush.bf16.msra.mxu0 %v2883
    %3974 = vmatmul.bf16.gmra.mxu0 %v1629
    %v3975 = vpop.f32.mrf.mxu0
    %v3976 = vadd.f32 %v3947, %v3975
    %v3977 = vpop.f32.mrf.mxu0
    %v3978 = vadd.f32 %v3949, %v3977
    %3979 = vmatmul.bf16.gmra.mxu0 %v1632
    %v3980 = vpop.f32.mrf.mxu0
    %v3981 = vadd.f32 %v3952, %v3980
    %v3982 = vpop.f32.mrf.mxu0
    %v3983 = vadd.f32 %v3954, %v3982
    %3984 = vmatmul.bf16.gmra.mxu0 %v1681
    %v3985 = vpop.f32.mrf.mxu0
    %v3986 = vadd.f32 %v3957, %v3985
    %v3987 = vpop.f32.mrf.mxu0
    %v3988 = vadd.f32 %v3959, %v3987
    %3989 = vmatmul.bf16.gmra.mxu0 %v1703
    %v3990 = vpop.f32.mrf.mxu0
    %v3991 = vadd.f32 %v3962, %v3990
    %v3992 = vpop.f32.mrf.mxu0
    %v3993 = vadd.f32 %v3964, %v3992
    %3994 = vdwg.mxu0
    %3995 = vmatpush.bf16.msra.mxu0 %v2913
    %3996 = vmatpush.bf16.msra.mxu0 %v2911
    %3997 = vmatpush.bf16.msra.mxu0 %v2909
    %3998 = vmatpush.bf16.msra.mxu0 %v2907
    %3999 = vmatpush.bf16.msra.mxu0 %v2905
    %4000 = vmatpush.bf16.msra.mxu0 %v2903
    %4001 = vmatpush.bf16.msra.mxu0 %v2901
    %4002 = vmatpush.bf16.msra.mxu0 %v2899
    %4003 = vmatmul.bf16.gmra.mxu0 %v1630
    %v4004 = vpop.f32.mrf.mxu0
    %v4005 = vadd.f32 %v3976, %v4004
    %v4006 = vpop.f32.mrf.mxu0
    %v4007 = vadd.f32 %v3978, %v4006
    %4008 = vmatmul.bf16.gmra.mxu0 %v1633
    %v4009 = vpop.f32.mrf.mxu0
    %v4010 = vadd.f32 %v3981, %v4009
    %v4011 = vpop.f32.mrf.mxu0
    %v4012 = vadd.f32 %v3983, %v4011
    %4013 = vmatmul.bf16.gmra.mxu0 %v1682
    %v4014 = vpop.f32.mrf.mxu0
    %v4015 = vadd.f32 %v3986, %v4014
    %v4016 = vpop.f32.mrf.mxu0
    %v4017 = vadd.f32 %v3988, %v4016
    %4018 = vmatmul.bf16.gmra.mxu0 %v1704
    %v4019 = vpop.f32.mrf.mxu0
    %v4020 = vadd.f32 %v3991, %v4019
    %v4021 = vpop.f32.mrf.mxu0
    %v4022 = vadd.f32 %v3993, %v4021
    %4023 = vdwg.mxu0
    %4040 = vrot.lane.b32.xlu0 %v3570, 96
    %v4041 = vpop.permute.xlu0 %4040
    %4042 = vrot.lane.b32.xlu0 %v4005, 96
    %v4043 = vpop.permute.xlu0 %4042
    %4044 = vrot.lane.b32.xlu0 %v3572, 96
    %v4045 = vpop.permute.xlu0 %4044
    %4046 = vrot.lane.b32.xlu0 %v4007, 96
    %v4047 = vpop.permute.xlu0 %4046
    %4048 = vrot.lane.b32.xlu0 %v3575, 96
    %v4049 = vpop.permute.xlu0 %4048
    %4050 = vrot.lane.b32.xlu0 %v4010, 96
    %v4051 = vpop.permute.xlu0 %4050
    %4052 = vrot.lane.b32.xlu0 %v3577, 96
    %v4053 = vpop.permute.xlu0 %4052
    %4054 = vrot.lane.b32.xlu0 %v4012, 96
    %v4055 = vpop.permute.xlu0 %4054
    %4056 = vrot.lane.b32.xlu0 %v3580, 96
    %v4057 = vpop.permute.xlu0 %4056
    %4058 = vrot.lane.b32.xlu0 %v4015, 96
    %v4059 = vpop.permute.xlu0 %4058
    %4060 = vrot.lane.b32.xlu0 %v3582, 96
    %v4061 = vpop.permute.xlu0 %4060
    %4062 = vrot.lane.b32.xlu0 %v4017, 96
    %v4063 = vpop.permute.xlu0 %4062
    %4064 = vrot.lane.b32.xlu0 %v3585, 96
    %v4065 = vpop.permute.xlu0 %4064
    %4066 = vrot.lane.b32.xlu0 %v4020, 96
    %v4067 = vpop.permute.xlu0 %4066
    %4068 = vrot.lane.b32.xlu0 %v3587, 96
    %v4069 = vpop.permute.xlu0 %4068
    %4070 = vrot.lane.b32.xlu0 %v4022, 96
    %v4071 = vpop.permute.xlu0 %4070
    %vm4072 = vcmask 785408
    %v4073 = vsel %vm4072, %v4041, %v4043
    %v4074 = vsel %vm4072, %v4045, %v4047
    %v4075 = vsel %vm4072, %v4049, %v4051
    %v4076 = vsel %vm4072, %v4053, %v4055
    %v4077 = vsel %vm4072, %v4057, %v4059
    %v4078 = vsel %vm4072, %v4061, %v4063
    %v4079 = vsel %vm4072, %v4065, %v4067
    %v4080 = vsel %vm4072, %v4069, %v4071
    %v4105 = vsel %vm4072, %v4043, %v4041
    %v4106 = vsel %vm4072, %v4047, %v4045
    %v4107 = vsel %vm4072, %v4051, %v4049
    %v4108 = vsel %vm4072, %v4055, %v4053
    %v4109 = vsel %vm4072, %v4059, %v4057
    %v4110 = vsel %vm4072, %v4063, %v4061
    %v4111 = vsel %vm4072, %v4067, %v4065
    %v4112 = vsel %vm4072, %v4071, %v4069
    %v4113 = vmax.f32 %v3570, %v4073
    %v4114 = vmax.f32 %v4005, %v4105
    %v4115 = vmax.f32 %v3572, %v4074
    %v4116 = vmax.f32 %v4007, %v4106
    %v4117 = vmax.f32 %v3575, %v4075
    %v4118 = vmax.f32 %v4010, %v4107
    %v4119 = vmax.f32 %v3577, %v4076
    %v4120 = vmax.f32 %v4012, %v4108
    %v4121 = vmax.f32 %v3580, %v4077
    %v4122 = vmax.f32 %v4015, %v4109
    %v4123 = vmax.f32 %v3582, %v4078
    %v4124 = vmax.f32 %v4017, %v4110
    %v4125 = vmax.f32 %v3585, %v4079
    %v4126 = vmax.f32 %v4020, %v4111
    %v4127 = vmax.f32 %v3587, %v4080
    %v4128 = vmax.f32 %v4022, %v4112
    %v4129 = vmax.f32 %v4113, %v4115
    %v4130 = vmax.f32 %v4114, %v4116
    %v4131 = vmax.f32 %v4117, %v4119
    %v4132 = vmax.f32 %v4118, %v4120
    %v4133 = vmax.f32 %v4121, %v4123
    %v4134 = vmax.f32 %v4122, %v4124
    %v4135 = vmax.f32 %v4125, %v4127
    %v4136 = vmax.f32 %v4126, %v4128
    %v4137 = vmax.f32 %v4129, 0.0
    %v4138 = vmax.f32 %v4130, 0.0
    %v4139 = vmax.f32 %v4131, 0.0
    %v4140 = vmax.f32 %v4132, 0.0
    %v4141 = vmax.f32 %v4133, 0.0
    %v4142 = vmax.f32 %v4134, 0.0
    %v4143 = vmax.f32 %v4135, 0.0
    %v4144 = vmax.f32 %v4136, 0.0
    %v4145 = vpack.c.bf16 %v4138, %v4137
    %v4146 = vpack.c.bf16 %v4140, %v4139
    %v4147 = vpack.c.bf16 %v4142, %v4141
    %v4148 = vpack.c.bf16 %v4144, %v4143
    %v4150 = vunpack.c.l.b16 %v4145
    %v4151 = vunpack.c.h.b16 %v4145
    %v4152 = vpack.c.b16 %v4150, %v4150
    %v4153 = vpack.c.b16 %v4151, %v4151
    %v4157 = vunpack.c.l.b16 %v4146
    %v4158 = vunpack.c.h.b16 %v4146
    %v4159 = vpack.c.b16 %v4157, %v4157
    %v4160 = vpack.c.b16 %v4158, %v4158
    %v4164 = vunpack.c.l.b16 %v4147
    %v4165 = vunpack.c.h.b16 %v4147
    %v4166 = vpack.c.b16 %v4164, %v4164
    %v4167 = vpack.c.b16 %v4165, %v4165
    %v4171 = vunpack.c.l.b16 %v4148
    %v4172 = vunpack.c.h.b16 %v4148
    %v4173 = vpack.c.b16 %v4171, %v4171
    %v4174 = vpack.c.b16 %v4172, %v4172
    %v4177 = vld [vmem:[#allocation4] sm:$0xf]
    %v4178 = vld [vmem:[#allocation4 + $0x4] sm:$0xf]
    %v4179 = vld [vmem:[#allocation4 + $0x8] sm:$0xf]
    %v4180 = vld [vmem:[#allocation4 + $0xc] sm:$0xf]
    %v4181 = vld [vmem:[#allocation4 + $0x10] sm:$0xf]
    %v4182 = vld [vmem:[#allocation4 + $0x14] sm:$0xf]
    %v4183 = vld [vmem:[#allocation4 + $0x18] sm:$0xf]
    %v4184 = vld [vmem:[#allocation4 + $0x1c] sm:$0xf]
    %v4185 = vld [vmem:[#allocation4 + $0x20] sm:$0xf]
    %v4186 = vld [vmem:[#allocation4 + $0x24] sm:$0xf]
    %v4187 = vld [vmem:[#allocation4 + $0x28] sm:$0xf]
    %v4188 = vld [vmem:[#allocation4 + $0x2c] sm:$0xf]
    %v4189 = vld [vmem:[#allocation4 + $0x30] sm:$0xf]
    %v4190 = vld [vmem:[#allocation4 + $0x34] sm:$0xf]
    %v4191 = vld [vmem:[#allocation4 + $0x38] sm:$0xf]
    %v4192 = vld [vmem:[#allocation4 + $0x3c] sm:$0xf]
    %v4193 = vld [vmem:[#allocation4 + $0x40] sm:$0xf]
    %v4194 = vld [vmem:[#allocation4 + $0x44] sm:$0xf]
    %v4195 = vld [vmem:[#allocation4 + $0x48] sm:$0xf]
    %v4196 = vld [vmem:[#allocation4 + $0x4c] sm:$0xf]
    %v4197 = vld [vmem:[#allocation4 + $0x50] sm:$0xf]
    %v4198 = vld [vmem:[#allocation4 + $0x54] sm:$0xf]
    %v4199 = vld [vmem:[#allocation4 + $0x58] sm:$0xf]
    %v4200 = vld [vmem:[#allocation4 + $0x5c] sm:$0xf]
    %v4201 = vld [vmem:[#allocation4 + $0x60] sm:$0xf]
    %v4202 = vld [vmem:[#allocation4 + $0x64] sm:$0xf]
    %v4203 = vld [vmem:[#allocation4 + $0x68] sm:$0xf]
    %v4204 = vld [vmem:[#allocation4 + $0x6c] sm:$0xf]
    %v4205 = vld [vmem:[#allocation4 + $0x70] sm:$0xf]
    %v4206 = vld [vmem:[#allocation4 + $0x74] sm:$0xf]
    %v4207 = vld [vmem:[#allocation4 + $0x78] sm:$0xf]
    %v4208 = vld [vmem:[#allocation4 + $0x7c] sm:$0xf]
    %v4209 = vld [vmem:[#allocation4 + $0x80] sm:$0xf]
    %v4210 = vld [vmem:[#allocation4 + $0x84] sm:$0xf]
    %v4211 = vld [vmem:[#allocation4 + $0x88] sm:$0xf]
    %v4212 = vld [vmem:[#allocation4 + $0x8c] sm:$0xf]
    %v4213 = vld [vmem:[#allocation4 + $0x90] sm:$0xf]
    %v4214 = vld [vmem:[#allocation4 + $0x94] sm:$0xf]
    %v4215 = vld [vmem:[#allocation4 + $0x98] sm:$0xf]
    %v4216 = vld [vmem:[#allocation4 + $0x9c] sm:$0xf]
    %v4217 = vld [vmem:[#allocation4 + $0xa0] sm:$0xf]
    %v4218 = vld [vmem:[#allocation4 + $0xa4] sm:$0xf]
    %v4219 = vld [vmem:[#allocation4 + $0xa8] sm:$0xf]
    %v4220 = vld [vmem:[#allocation4 + $0xac] sm:$0xf]
    %v4221 = vld [vmem:[#allocation4 + $0xb0] sm:$0xf]
    %v4222 = vld [vmem:[#allocation4 + $0xb4] sm:$0xf]
    %v4223 = vld [vmem:[#allocation4 + $0xb8] sm:$0xf]
    %v4224 = vld [vmem:[#allocation4 + $0xbc] sm:$0xf]
    %v4225 = vld [vmem:[#allocation4 + $0xc0] sm:$0xf]
    %v4226 = vld [vmem:[#allocation4 + $0xc4] sm:$0xf]
    %v4227 = vld [vmem:[#allocation4 + $0xc8] sm:$0xf]
    %v4228 = vld [vmem:[#allocation4 + $0xcc] sm:$0xf]
    %v4229 = vld [vmem:[#allocation4 + $0xd0] sm:$0xf]
    %v4230 = vld [vmem:[#allocation4 + $0xd4] sm:$0xf]
    %v4231 = vld [vmem:[#allocation4 + $0xd8] sm:$0xf]
    %v4232 = vld [vmem:[#allocation4 + $0xdc] sm:$0xf]
    %v4233 = vld [vmem:[#allocation4 + $0xe0] sm:$0xf]
    %v4234 = vld [vmem:[#allocation4 + $0xe4] sm:$0xf]
    %v4235 = vld [vmem:[#allocation4 + $0xe8] sm:$0xf]
    %v4236 = vld [vmem:[#allocation4 + $0xec] sm:$0xf]
    %v4237 = vld [vmem:[#allocation4 + $0xf0] sm:$0xf]
    %v4238 = vld [vmem:[#allocation4 + $0xf4] sm:$0xf]
    %v4239 = vld [vmem:[#allocation4 + $0xf8] sm:$0xf]
    %v4240 = vld [vmem:[#allocation4 + $0xfc] sm:$0xf]
    %v4241 = vld [vmem:[#allocation4 + $0x100] sm:$0xf]
    %v4242 = vld [vmem:[#allocation4 + $0x104] sm:$0xf]
    %v4243 = vld [vmem:[#allocation4 + $0x108] sm:$0xf]
    %v4244 = vld [vmem:[#allocation4 + $0x10c] sm:$0xf]
    %v4245 = vld [vmem:[#allocation4 + $0x110] sm:$0xf]
    %v4246 = vld [vmem:[#allocation4 + $0x114] sm:$0xf]
    %v4247 = vld [vmem:[#allocation4 + $0x118] sm:$0xf]
    %v4248 = vld [vmem:[#allocation4 + $0x11c] sm:$0xf]
    %v4249 = vld [vmem:[#allocation4 + $0x120] sm:$0xf]
    %v4250 = vld [vmem:[#allocation4 + $0x124] sm:$0xf]
    %v4251 = vld [vmem:[#allocation4 + $0x128] sm:$0xf]
    %v4252 = vld [vmem:[#allocation4 + $0x12c] sm:$0xf]
    %v4253 = vld [vmem:[#allocation4 + $0x130] sm:$0xf]
    %v4254 = vld [vmem:[#allocation4 + $0x134] sm:$0xf]
    %v4255 = vld [vmem:[#allocation4 + $0x138] sm:$0xf]
    %v4256 = vld [vmem:[#allocation4 + $0x13c] sm:$0xf]
    %v4257 = vld [vmem:[#allocation4 + $0x140] sm:$0xf]
    %v4258 = vld [vmem:[#allocation4 + $0x144] sm:$0xf]
    %v4259 = vld [vmem:[#allocation4 + $0x148] sm:$0xf]
    %v4260 = vld [vmem:[#allocation4 + $0x14c] sm:$0xf]
    %v4261 = vld [vmem:[#allocation4 + $0x150] sm:$0xf]
    %v4262 = vld [vmem:[#allocation4 + $0x154] sm:$0xf]
    %v4263 = vld [vmem:[#allocation4 + $0x158] sm:$0xf]
    %v4264 = vld [vmem:[#allocation4 + $0x15c] sm:$0xf]
    %v4265 = vld [vmem:[#allocation4 + $0x160] sm:$0xf]
    %v4266 = vld [vmem:[#allocation4 + $0x164] sm:$0xf]
    %v4267 = vld [vmem:[#allocation4 + $0x168] sm:$0xf]
    %v4268 = vld [vmem:[#allocation4 + $0x16c] sm:$0xf]
    %v4269 = vld [vmem:[#allocation4 + $0x170] sm:$0xf]
    %v4270 = vld [vmem:[#allocation4 + $0x174] sm:$0xf]
    %v4271 = vld [vmem:[#allocation4 + $0x178] sm:$0xf]
    %v4272 = vld [vmem:[#allocation4 + $0x17c] sm:$0xf]
    %v4273 = vld [vmem:[#allocation4 + $0x180] sm:$0xf]
    %v4274 = vld [vmem:[#allocation4 + $0x184] sm:$0xf]
    %v4275 = vld [vmem:[#allocation4 + $0x188] sm:$0xf]
    %v4276 = vld [vmem:[#allocation4 + $0x18c] sm:$0xf]
    %v4277 = vld [vmem:[#allocation4 + $0x190] sm:$0xf]
    %v4278 = vld [vmem:[#allocation4 + $0x194] sm:$0xf]
    %v4279 = vld [vmem:[#allocation4 + $0x198] sm:$0xf]
    %v4280 = vld [vmem:[#allocation4 + $0x19c] sm:$0xf]
    %v4281 = vld [vmem:[#allocation4 + $0x1a0] sm:$0xf]
    %v4282 = vld [vmem:[#allocation4 + $0x1a4] sm:$0xf]
    %v4283 = vld [vmem:[#allocation4 + $0x1a8] sm:$0xf]
    %v4284 = vld [vmem:[#allocation4 + $0x1ac] sm:$0xf]
    %v4285 = vld [vmem:[#allocation4 + $0x1b0] sm:$0xf]
    %v4286 = vld [vmem:[#allocation4 + $0x1b4] sm:$0xf]
    %v4287 = vld [vmem:[#allocation4 + $0x1b8] sm:$0xf]
    %v4288 = vld [vmem:[#allocation4 + $0x1bc] sm:$0xf]
    %v4289 = vld [vmem:[#allocation4 + $0x1c0] sm:$0xf]
    %v4290 = vld [vmem:[#allocation4 + $0x1c4] sm:$0xf]
    %v4291 = vld [vmem:[#allocation4 + $0x1c8] sm:$0xf]
    %v4292 = vld [vmem:[#allocation4 + $0x1cc] sm:$0xf]
    %v4293 = vld [vmem:[#allocation4 + $0x1d0] sm:$0xf]
    %v4294 = vld [vmem:[#allocation4 + $0x1d4] sm:$0xf]
    %v4295 = vld [vmem:[#allocation4 + $0x1d8] sm:$0xf]
    %v4296 = vld [vmem:[#allocation4 + $0x1dc] sm:$0xf]
    %v4297 = vld [vmem:[#allocation4 + $0x1e0] sm:$0xf]
    %v4298 = vld [vmem:[#allocation4 + $0x1e4] sm:$0xf]
    %v4299 = vld [vmem:[#allocation4 + $0x1e8] sm:$0xf]
    %v4300 = vld [vmem:[#allocation4 + $0x1ec] sm:$0xf]
    %v4301 = vld [vmem:[#allocation4 + $0x1f0] sm:$0xf]
    %v4302 = vld [vmem:[#allocation4 + $0x1f4] sm:$0xf]
    %v4303 = vld [vmem:[#allocation4 + $0x1f8] sm:$0xf]
    %v4304 = vld [vmem:[#allocation4 + $0x1fc] sm:$0xf]
    %v4305 = vld [vmem:[%s6] sm:$0x1]
    %v4307 = vperm.slane %v4305, 0
    %v4437 = vunpack.c.l.b16 %v4177
    %v4438 = vunpack.c.l.b16 %v4178
    %v4439 = vunpack.c.l.b16 %v4179
    %v4440 = vunpack.c.l.b16 %v4180
    %v4441 = vunpack.c.l.b16 %v4181
    %v4442 = vunpack.c.l.b16 %v4182
    %v4443 = vunpack.c.l.b16 %v4183
    %v4444 = vunpack.c.l.b16 %v4184
    %v4445 = vunpack.c.l.b16 %v4185
    %v4446 = vunpack.c.l.b16 %v4186
    %v4447 = vunpack.c.l.b16 %v4187
    %v4448 = vunpack.c.l.b16 %v4188
    %v4449 = vunpack.c.l.b16 %v4189
    %v4450 = vunpack.c.l.b16 %v4190
    %v4451 = vunpack.c.l.b16 %v4191
    %v4452 = vunpack.c.l.b16 %v4192
    %v4453 = vunpack.c.l.b16 %v4193
    %v4454 = vunpack.c.l.b16 %v4194
    %v4455 = vunpack.c.l.b16 %v4195
    %v4456 = vunpack.c.l.b16 %v4196
    %v4457 = vunpack.c.l.b16 %v4197
    %v4458 = vunpack.c.l.b16 %v4198
    %v4459 = vunpack.c.l.b16 %v4199
    %v4460 = vunpack.c.l.b16 %v4200
    %v4461 = vunpack.c.l.b16 %v4201
    %v4462 = vunpack.c.l.b16 %v4202
    %v4463 = vunpack.c.l.b16 %v4203
    %v4464 = vunpack.c.l.b16 %v4204
    %v4465 = vunpack.c.l.b16 %v4205
    %v4466 = vunpack.c.l.b16 %v4206
    %v4467 = vunpack.c.l.b16 %v4207
    %v4468 = vunpack.c.l.b16 %v4208
    %v4469 = vunpack.c.l.b16 %v4209
    %v4470 = vunpack.c.l.b16 %v4210
    %v4471 = vunpack.c.l.b16 %v4211
    %v4472 = vunpack.c.l.b16 %v4212
    %v4473 = vunpack.c.l.b16 %v4213
    %v4474 = vunpack.c.l.b16 %v4214
    %v4475 = vunpack.c.l.b16 %v4215
    %v4476 = vunpack.c.l.b16 %v4216
    %v4477 = vunpack.c.l.b16 %v4217
    %v4478 = vunpack.c.l.b16 %v4218
    %v4479 = vunpack.c.l.b16 %v4219
    %v4480 = vunpack.c.l.b16 %v4220
    %v4481 = vunpack.c.l.b16 %v4221
    %v4482 = vunpack.c.l.b16 %v4222
    %v4483 = vunpack.c.l.b16 %v4223
    %v4484 = vunpack.c.l.b16 %v4224
    %v4485 = vunpack.c.l.b16 %v4225
    %v4486 = vunpack.c.l.b16 %v4226
    %v4487 = vunpack.c.l.b16 %v4227
    %v4488 = vunpack.c.l.b16 %v4228
    %v4489 = vunpack.c.l.b16 %v4229
    %v4490 = vunpack.c.l.b16 %v4230
    %v4491 = vunpack.c.l.b16 %v4231
    %v4492 = vunpack.c.l.b16 %v4232
    %v4493 = vunpack.c.l.b16 %v4233
    %v4494 = vunpack.c.l.b16 %v4234
    %v4495 = vunpack.c.l.b16 %v4235
    %v4496 = vunpack.c.l.b16 %v4236
    %v4497 = vunpack.c.l.b16 %v4237
    %v4498 = vunpack.c.l.b16 %v4238
    %v4499 = vunpack.c.l.b16 %v4239
    %v4500 = vunpack.c.l.b16 %v4240
    %v4501 = vunpack.c.l.b16 %v4241
    %v4502 = vunpack.c.l.b16 %v4242
    %v4503 = vunpack.c.l.b16 %v4243
    %v4504 = vunpack.c.l.b16 %v4244
    %v4505 = vunpack.c.l.b16 %v4245
    %v4506 = vunpack.c.l.b16 %v4246
    %v4507 = vunpack.c.l.b16 %v4247
    %v4508 = vunpack.c.l.b16 %v4248
    %v4509 = vunpack.c.l.b16 %v4249
    %v4510 = vunpack.c.l.b16 %v4250
    %v4511 = vunpack.c.l.b16 %v4251
    %v4512 = vunpack.c.l.b16 %v4252
    %v4513 = vunpack.c.l.b16 %v4253
    %v4514 = vunpack.c.l.b16 %v4254
    %v4515 = vunpack.c.l.b16 %v4255
    %v4516 = vunpack.c.l.b16 %v4256
    %v4517 = vunpack.c.l.b16 %v4257
    %v4518 = vunpack.c.l.b16 %v4258
    %v4519 = vunpack.c.l.b16 %v4259
    %v4520 = vunpack.c.l.b16 %v4260
    %v4521 = vunpack.c.l.b16 %v4261
    %v4522 = vunpack.c.l.b16 %v4262
    %v4523 = vunpack.c.l.b16 %v4263
    %v4524 = vunpack.c.l.b16 %v4264
    %v4525 = vunpack.c.l.b16 %v4265
    %v4526 = vunpack.c.l.b16 %v4266
    %v4527 = vunpack.c.l.b16 %v4267
    %v4528 = vunpack.c.l.b16 %v4268
    %v4529 = vunpack.c.l.b16 %v4269
    %v4530 = vunpack.c.l.b16 %v4270
    %v4531 = vunpack.c.l.b16 %v4271
    %v4532 = vunpack.c.l.b16 %v4272
    %v4533 = vunpack.c.l.b16 %v4273
    %v4534 = vunpack.c.l.b16 %v4274
    %v4535 = vunpack.c.l.b16 %v4275
    %v4536 = vunpack.c.l.b16 %v4276
    %v4537 = vunpack.c.l.b16 %v4277
    %v4538 = vunpack.c.l.b16 %v4278
    %v4539 = vunpack.c.l.b16 %v4279
    %v4540 = vunpack.c.l.b16 %v4280
    %v4541 = vunpack.c.l.b16 %v4281
    %v4542 = vunpack.c.l.b16 %v4282
    %v4543 = vunpack.c.l.b16 %v4283
    %v4544 = vunpack.c.l.b16 %v4284
    %v4545 = vunpack.c.l.b16 %v4285
    %v4546 = vunpack.c.l.b16 %v4286
    %v4547 = vunpack.c.l.b16 %v4287
    %v4548 = vunpack.c.l.b16 %v4288
    %v4549 = vunpack.c.l.b16 %v4289
    %v4550 = vunpack.c.l.b16 %v4290
    %v4551 = vunpack.c.l.b16 %v4291
    %v4552 = vunpack.c.l.b16 %v4292
    %v4553 = vunpack.c.l.b16 %v4293
    %v4554 = vunpack.c.l.b16 %v4294
    %v4555 = vunpack.c.l.b16 %v4295
    %v4556 = vunpack.c.l.b16 %v4296
    %v4557 = vunpack.c.l.b16 %v4297
    %v4558 = vunpack.c.l.b16 %v4298
    %v4559 = vunpack.c.l.b16 %v4299
    %v4560 = vunpack.c.l.b16 %v4300
    %v4561 = vunpack.c.l.b16 %v4301
    %v4562 = vunpack.c.l.b16 %v4302
    %v4563 = vunpack.c.l.b16 %v4303
    %v4564 = vunpack.c.l.b16 %v4304
    %v4565 = vpack.c.b16 %v4438, %v4437
    %v4566 = vpack.c.b16 %v4440, %v4439
    %v4567 = vpack.c.b16 %v4442, %v4441
    %v4568 = vpack.c.b16 %v4444, %v4443
    %v4569 = vpack.c.b16 %v4446, %v4445
    %v4570 = vpack.c.b16 %v4448, %v4447
    %v4571 = vpack.c.b16 %v4450, %v4449
    %v4572 = vpack.c.b16 %v4452, %v4451
    %v4573 = vpack.c.b16 %v4454, %v4453
    %v4574 = vpack.c.b16 %v4456, %v4455
    %v4575 = vpack.c.b16 %v4458, %v4457
    %v4576 = vpack.c.b16 %v4460, %v4459
    %v4577 = vpack.c.b16 %v4462, %v4461
    %v4578 = vpack.c.b16 %v4464, %v4463
    %v4579 = vpack.c.b16 %v4466, %v4465
    %v4580 = vpack.c.b16 %v4468, %v4467
    %v4581 = vpack.c.b16 %v4470, %v4469
    %v4582 = vpack.c.b16 %v4472, %v4471
    %v4583 = vpack.c.b16 %v4474, %v4473
    %v4584 = vpack.c.b16 %v4476, %v4475
    %v4585 = vpack.c.b16 %v4478, %v4477
    %v4586 = vpack.c.b16 %v4480, %v4479
    %v4587 = vpack.c.b16 %v4482, %v4481
    %v4588 = vpack.c.b16 %v4484, %v4483
    %v4589 = vpack.c.b16 %v4486, %v4485
    %v4590 = vpack.c.b16 %v4488, %v4487
    %v4591 = vpack.c.b16 %v4490, %v4489
    %v4592 = vpack.c.b16 %v4492, %v4491
    %v4593 = vpack.c.b16 %v4494, %v4493
    %v4594 = vpack.c.b16 %v4496, %v4495
    %v4595 = vpack.c.b16 %v4498, %v4497
    %v4596 = vpack.c.b16 %v4500, %v4499
    %v4597 = vpack.c.b16 %v4502, %v4501
    %v4598 = vpack.c.b16 %v4504, %v4503
    %v4599 = vpack.c.b16 %v4506, %v4505
    %v4600 = vpack.c.b16 %v4508, %v4507
    %v4601 = vpack.c.b16 %v4510, %v4509
    %v4602 = vpack.c.b16 %v4512, %v4511
    %v4603 = vpack.c.b16 %v4514, %v4513
    %v4604 = vpack.c.b16 %v4516, %v4515
    %v4605 = vpack.c.b16 %v4518, %v4517
    %v4606 = vpack.c.b16 %v4520, %v4519
    %v4607 = vpack.c.b16 %v4522, %v4521
    %v4608 = vpack.c.b16 %v4524, %v4523
    %v4609 = vpack.c.b16 %v4526, %v4525
    %v4610 = vpack.c.b16 %v4528, %v4527
    %v4611 = vpack.c.b16 %v4530, %v4529
    %v4612 = vpack.c.b16 %v4532, %v4531
    %v4613 = vpack.c.b16 %v4534, %v4533
    %v4614 = vpack.c.b16 %v4536, %v4535
    %v4615 = vpack.c.b16 %v4538, %v4537
    %v4616 = vpack.c.b16 %v4540, %v4539
    %v4617 = vpack.c.b16 %v4542, %v4541
    %v4618 = vpack.c.b16 %v4544, %v4543
    %v4619 = vpack.c.b16 %v4546, %v4545
    %v4620 = vpack.c.b16 %v4548, %v4547
    %v4621 = vpack.c.b16 %v4550, %v4549
    %v4622 = vpack.c.b16 %v4552, %v4551
    %v4623 = vpack.c.b16 %v4554, %v4553
    %v4624 = vpack.c.b16 %v4556, %v4555
    %v4625 = vpack.c.b16 %v4558, %v4557
    %v4626 = vpack.c.b16 %v4560, %v4559
    %v4627 = vpack.c.b16 %v4562, %v4561
    %v4628 = vpack.c.b16 %v4564, %v4563
    %4693 = vmatpush.bf16.msra.mxu0 %v4572
    %4694 = vmatpush.bf16.msra.mxu0 %v4571
    %4695 = vmatpush.bf16.msra.mxu0 %v4570
    %4696 = vmatpush.bf16.msra.mxu0 %v4569
    %4697 = vmatpush.bf16.msra.mxu0 %v4568
    %4698 = vmatpush.bf16.msra.mxu0 %v4567
    %4699 = vmatpush.bf16.msra.mxu0 %v4566
    %4700 = vmatpush.bf16.msra.mxu0 %v4565
    %4701 = vmatmul.bf16.gmra.mxu0 %v4152
    %v4702 = vpop.f32.mrf.mxu0
    %v4703 = vadd.f32 %v4307, %v4702
    %v4704 = vpop.f32.mrf.mxu0
    %4705 = vdwg.mxu0
    %4706 = vmatpush.bf16.msra.mxu0 %v4580
    %4707 = vmatpush.bf16.msra.mxu0 %v4579
    %4708 = vmatpush.bf16.msra.mxu0 %v4578
    %4709 = vmatpush.bf16.msra.mxu0 %v4577
    %4710 = vmatpush.bf16.msra.mxu0 %v4576
    %4711 = vmatpush.bf16.msra.mxu0 %v4575
    %4712 = vmatpush.bf16.msra.mxu0 %v4574
    %4713 = vmatpush.bf16.msra.mxu0 %v4573
    %4714 = vmatmul.bf16.gmra.mxu0 %v4153
    %v4715 = vpop.f32.mrf.mxu0
    %v4716 = vadd.f32 %v4703, %v4715
    %v4717 = vpop.f32.mrf.mxu0
    %4718 = vdwg.mxu0
    %4719 = vmatpush.bf16.msra.mxu0 %v4588
    %4720 = vmatpush.bf16.msra.mxu0 %v4587
    %4721 = vmatpush.bf16.msra.mxu0 %v4586
    %4722 = vmatpush.bf16.msra.mxu0 %v4585
    %4723 = vmatpush.bf16.msra.mxu0 %v4584
    %4724 = vmatpush.bf16.msra.mxu0 %v4583
    %4725 = vmatpush.bf16.msra.mxu0 %v4582
    %4726 = vmatpush.bf16.msra.mxu0 %v4581
    %4727 = vmatmul.bf16.gmra.mxu0 %v4159
    %v4728 = vpop.f32.mrf.mxu0
    %v4729 = vadd.f32 %v4716, %v4728
    %v4730 = vpop.f32.mrf.mxu0
    %4731 = vdwg.mxu0
    %4732 = vmatpush.bf16.msra.mxu0 %v4596
    %4733 = vmatpush.bf16.msra.mxu0 %v4595
    %4734 = vmatpush.bf16.msra.mxu0 %v4594
    %4735 = vmatpush.bf16.msra.mxu0 %v4593
    %4736 = vmatpush.bf16.msra.mxu0 %v4592
    %4737 = vmatpush.bf16.msra.mxu0 %v4591
    %4738 = vmatpush.bf16.msra.mxu0 %v4590
    %4739 = vmatpush.bf16.msra.mxu0 %v4589
    %4740 = vmatmul.bf16.gmra.mxu0 %v4160
    %v4741 = vpop.f32.mrf.mxu0
    %v4742 = vadd.f32 %v4729, %v4741
    %v4743 = vpop.f32.mrf.mxu0
    %4744 = vdwg.mxu0
    %4745 = vmatpush.bf16.msra.mxu0 %v4604
    %4746 = vmatpush.bf16.msra.mxu0 %v4603
    %4747 = vmatpush.bf16.msra.mxu0 %v4602
    %4748 = vmatpush.bf16.msra.mxu0 %v4601
    %4749 = vmatpush.bf16.msra.mxu0 %v4600
    %4750 = vmatpush.bf16.msra.mxu0 %v4599
    %4751 = vmatpush.bf16.msra.mxu0 %v4598
    %4752 = vmatpush.bf16.msra.mxu0 %v4597
    %4753 = vmatmul.bf16.gmra.mxu0 %v4166
    %v4754 = vpop.f32.mrf.mxu0
    %v4755 = vadd.f32 %v4742, %v4754
    %v4756 = vpop.f32.mrf.mxu0
    %4757 = vdwg.mxu0
    %4758 = vmatpush.bf16.msra.mxu0 %v4612
    %4759 = vmatpush.bf16.msra.mxu0 %v4611
    %4760 = vmatpush.bf16.msra.mxu0 %v4610
    %4761 = vmatpush.bf16.msra.mxu0 %v4609
    %4762 = vmatpush.bf16.msra.mxu0 %v4608
    %4763 = vmatpush.bf16.msra.mxu0 %v4607
    %4764 = vmatpush.bf16.msra.mxu0 %v4606
    %4765 = vmatpush.bf16.msra.mxu0 %v4605
    %4766 = vmatmul.bf16.gmra.mxu0 %v4167
    %v4767 = vpop.f32.mrf.mxu0
    %v4768 = vadd.f32 %v4755, %v4767
    %v4769 = vpop.f32.mrf.mxu0
    %4770 = vdwg.mxu0
    %4771 = vmatpush.bf16.msra.mxu0 %v4620
    %4772 = vmatpush.bf16.msra.mxu0 %v4619
    %4773 = vmatpush.bf16.msra.mxu0 %v4618
    %4774 = vmatpush.bf16.msra.mxu0 %v4617
    %4775 = vmatpush.bf16.msra.mxu0 %v4616
    %4776 = vmatpush.bf16.msra.mxu0 %v4615
    %4777 = vmatpush.bf16.msra.mxu0 %v4614
    %4778 = vmatpush.bf16.msra.mxu0 %v4613
    %4779 = vmatmul.bf16.gmra.mxu0 %v4173
    %v4780 = vpop.f32.mrf.mxu0
    %v4781 = vadd.f32 %v4768, %v4780
    %v4782 = vpop.f32.mrf.mxu0
    %4783 = vdwg.mxu0
    %4784 = vmatpush.bf16.msra.mxu0 %v4628
    %4785 = vmatpush.bf16.msra.mxu0 %v4627
    %4786 = vmatpush.bf16.msra.mxu0 %v4626
    %4787 = vmatpush.bf16.msra.mxu0 %v4625
    %4788 = vmatpush.bf16.msra.mxu0 %v4624
    %4789 = vmatpush.bf16.msra.mxu0 %v4623
    %4790 = vmatpush.bf16.msra.mxu0 %v4622
    %4791 = vmatpush.bf16.msra.mxu0 %v4621
    %4792 = vmatmul.bf16.gmra.mxu0 %v4174
    %v4793 = vpop.f32.mrf.mxu0
    %v4794 = vadd.f32 %v4781, %v4793
    %v4795 = vpop.f32.mrf.mxu0
    %4796 = vdwg.mxu0
    %v4797 = vmax.f32 %v4794, 0.0
    %v4798 = vpack.c.bf16 %v4797, %v4797
    %v4799 = vld [vmem:[%s7] sm:$0xf]
    %v4800 = vld [vmem:[%s7 + $0x4] sm:$0xf]
    %v4801 = vld [vmem:[%s7 + $0x8] sm:$0xf]
    %v4802 = vld [vmem:[%s7 + $0xc] sm:$0xf]
    %v4803 = vld [vmem:[%s7 + $0x10] sm:$0xf]
    %v4804 = vld [vmem:[%s7 + $0x14] sm:$0xf]
    %v4805 = vld [vmem:[%s7 + $0x18] sm:$0xf]
    %v4806 = vld [vmem:[%s7 + $0x1c] sm:$0xf]
    %v4807 = vld [vmem:[%s7 + $0x20] sm:$0xf]
    %v4808 = vld [vmem:[%s7 + $0x24] sm:$0xf]
    %v4809 = vld [vmem:[%s7 + $0x28] sm:$0xf]
    %v4810 = vld [vmem:[%s7 + $0x2c] sm:$0xf]
    %v4811 = vld [vmem:[%s7 + $0x30] sm:$0xf]
    %v4812 = vld [vmem:[%s7 + $0x34] sm:$0xf]
    %v4813 = vld [vmem:[%s7 + $0x38] sm:$0xf]
    %v4814 = vld [vmem:[%s7 + $0x3c] sm:$0xf]
    %v4815 = vld [vmem:[%s8] sm:$0x1]
    %v4817 = vperm.slane %v4815, 0
    %v4835 = vunpack.c.l.b16 %v4799
    %v4836 = vunpack.c.l.b16 %v4800
    %v4837 = vunpack.c.l.b16 %v4801
    %v4838 = vunpack.c.l.b16 %v4802
    %v4839 = vunpack.c.l.b16 %v4803
    %v4840 = vunpack.c.l.b16 %v4804
    %v4841 = vunpack.c.l.b16 %v4805
    %v4842 = vunpack.c.l.b16 %v4806
    %v4843 = vunpack.c.l.b16 %v4807
    %v4844 = vunpack.c.l.b16 %v4808
    %v4845 = vunpack.c.l.b16 %v4809
    %v4846 = vunpack.c.l.b16 %v4810
    %v4847 = vunpack.c.l.b16 %v4811
    %v4848 = vunpack.c.l.b16 %v4812
    %v4849 = vunpack.c.l.b16 %v4813
    %v4850 = vunpack.c.l.b16 %v4814
    %v4851 = vpack.c.b16 %v4836, %v4835
    %v4852 = vpack.c.b16 %v4838, %v4837
    %v4853 = vpack.c.b16 %v4840, %v4839
    %v4854 = vpack.c.b16 %v4842, %v4841
    %v4855 = vpack.c.b16 %v4844, %v4843
    %v4856 = vpack.c.b16 %v4846, %v4845
    %v4857 = vpack.c.b16 %v4848, %v4847
    %v4858 = vpack.c.b16 %v4850, %v4849
    %4867 = vmatpush.bf16.msra.mxu0 %v4858
    %4868 = vmatpush.bf16.msra.mxu0 %v4857
    %4869 = vmatpush.bf16.msra.mxu0 %v4856
    %4870 = vmatpush.bf16.msra.mxu0 %v4855
    %4871 = vmatpush.bf16.msra.mxu0 %v4854
    %4872 = vmatpush.bf16.msra.mxu0 %v4853
    %4873 = vmatpush.bf16.msra.mxu0 %v4852
    %4874 = vmatpush.bf16.msra.mxu0 %v4851
    %4875 = vmatmul.bf16.gmra.mxu0 %v4798
    %v4876 = vpop.f32.mrf.mxu0
    %v4877 = vadd.f32 %v4817, %v4876
    %v4878 = vpop.f32.mrf.mxu0
    %4879 = vdwg.mxu0
    %4880 = vmax.xlane.f32.xlu0 %v4877
    %v4881 = vpop.xlane.xlu0 %4880
    %v4882 = vsub.f32 %v4877, %v4881
    %v4883 = vmul.f32 %v4882, 1.442695
    %v4884 = vpow.pop %v4883
    %4885 = vadd.xlane.f32.xlu0 %v4884
    %v4886 = vpop.xlane.xlu0 %4885
    %v4887 = vlog2.pop %v4886
    %v4888 = vmul.f32 %v4887, 0.6931472
    %v4889 = vsub.f32 %v4882, %v4888
    %4890 = vst [vmem:[%s9] sm:$0xff] %v4889
    // Predicated region
    $region46: #{forward.1} parent=1 // pred_check
      _
    $region47: #{forward.1} parent=1 // pred_check_branch
      %4892 = sbr.rel (0) target = $region49
    $region48: #{forward.1} parent=1 // pred_region
      _
    $region49: #{forward.1} parent=1 // pred_fallthru
      _
    // Predicated region
    $region50: #{forward.1} parent=1 // pred_check
      _
    $region51: #{forward.1} parent=1 // pred_check_branch
      %4894 = sbr.rel (0) target = $region53
    $region52: #{forward.1} parent=1 // pred_region
      _
    $region53: #{forward.1} parent=1 // pred_fallthru
      _
    %4895 = vsyncpa [#allocation3], 1
    %4896 = vsyncpa [#allocation5], 1

</llo_original>
